<compile_context>
chip_gen: v5e
topology: v5e:2x2
jax: 0.10.0
libtpu: 0.0.40
codegen_flags: <defaults>
</compile_context>

<pallas_src>
import functools

import jax
import jax.numpy as jnp
from jax.experimental import pallas as pl
from jax.experimental.pallas import tpu as pltpu

PAD = 128  # lane padding for all feature dimensions


# ----------------------------------------------------------------------------
# Fused Pallas kernel: the whole GCN forward (all GCNConv layers)
# ----------------------------------------------------------------------------
def _gcn_fused_kernel(num_conv_layers, score_lanes,
                      x_ref, adj_ref, wf_ref, bf_ref, v_ref, bv_ref,
                      attvec_ref, out_ref, aggf_ref, aggc_ref):
    P = out_ref.shape[-1]
    adj_lo = adj_ref[...]                      # [N, N] bf16 (row=dst, col=src)
    adj_hi = adj_lo.astype(jnp.float32)        # exact upcast (small integers), once
    h = x_ref[...]                             # [N, P] lane-padded features

    for l in range(num_conv_layers):           # static unroll over layers
        H = score_lanes[l]                     # this layer's output dim == score lane

        # --- fused projections: [w1 | w2_main | w3] (+ folded att cols) ------
        proj = jnp.dot(h, wf_ref[l], preferred_element_type=jnp.float32) + bf_ref[l]
        x_sum_ext = proj[:, 0:P]                # [N, P]; lane H = x_sum @ att2^T
        x_prod = jnp.tanh(proj[:, P:2 * P])     # [N, P]  (w2 "ones" col folded into bias)
        x_self_ext = proj[:, 2 * P:3 * P]       # [N, P]; lane H = x_self @ att3^T

        # --- aggregation slabs written in place (no concatenate) ------------
        is_zero = x_prod == 0.0
        log_abs = jnp.log(jnp.where(is_zero, 1.0, jnp.abs(x_prod)))
        aggf_ref[:, 0:P] = x_sum_ext                       # f32 value channels
        aggf_ref[:, P:2 * P] = log_abs                     # keep log_abs in f32!
        aggc_ref[:, 0:P] = jnp.where(x_prod < 0.0, 1.0, 0.0).astype(jnp.bfloat16)
        aggc_ref[:, P:2 * P] = jnp.where(is_zero, 1.0, 0.0).astype(jnp.bfloat16)

        # scatter_add + log-domain scatter_mul as two adjacency matmuls:
        #   f32 matmul for real-valued channels, bf16 matmul for exact counts.
        aggf = jnp.dot(adj_hi, aggf_ref[...], preferred_element_type=jnp.float32)
        aggc = jnp.dot(adj_lo, aggc_ref[...], preferred_element_type=jnp.float32)
        sum_agg = aggf[:, 0:P]           # scatter_add (+ att2 score at lane H)
        log_sum = aggf[:, P:2 * P]       # sum of log|x_prod| over in-neighbours
        neg_cnt = aggc[:, 0:P]           # #negative factors (exact int in f32 < 2^24)
        zero_hit = aggc[:, P:2 * P]      # #exact-zero factors

        parity = jnp.bitwise_and(neg_cnt.astype(jnp.int32), 1).astype(jnp.float32)
        sign = 1.0 - 2.0 * parity
        # exp(log_sum) may underflow to 0 for very high-degree nodes; that
        # matches the true product underflowing, so it is benign.
        prod_pre = jnp.where(zero_hit > 0.5, 0.0, sign * jnp.exp(log_sum))

        prod_agg = jnp.dot(prod_pre, v_ref[l],
                           preferred_element_type=jnp.float32) + bv_ref[l]  # [N,P]; lane H = att1 score

        # --- attention mixing: scores are single-lane slices (no XLU reduce) -
        s1 = jax.nn.sigmoid(prod_agg[:, H:H + 1])
        s2 = jax.nn.sigmoid(sum_agg[:, H:H + 1])
        s3 = jax.nn.sigmoid(x_self_ext[:, H:H + 1])

        # att_vec (pre-scaled by 1/3) lives in SMEM, row-major flattened.
        l0 = s1 * attvec_ref[l, 0] + s2 * attvec_ref[l, 1] + s3 * attvec_ref[l, 2]
        l1 = s1 * attvec_ref[l, 3] + s2 * attvec_ref[l, 4] + s3 * attvec_ref[l, 5]
        l2 = s1 * attvec_ref[l, 6] + s2 * attvec_ref[l, 7] + s3 * attvec_ref[l, 8]

        m = jnp.maximum(jnp.maximum(l0, l1), l2)
        e0 = jnp.exp(l0 - m)
        e1 = jnp.exp(l1 - m)
        e2 = jnp.exp(l2 - m)
        den = e0 + e1 + e2
        inv_den = pl.reciprocal(den, approx=True)
        inv_den = inv_den * (2.0 - den * inv_den)   # one Newton step (f32 accuracy)

        rst = (e0 * inv_den) * prod_agg + (e1 * inv_den) * sum_agg + (e2 * inv_den) * x_self_ext
        if l < num_conv_layers - 1:
            rst = jnp.maximum(rst, 0.0)
            # TODO(synk): F.dropout is implemented as eval-mode identity (training=False).
        h = rst

    out_ref[...] = h


# ----------------------------------------------------------------------------
# One-time parameter preparation (hoisted out of the forward pass)
# ----------------------------------------------------------------------------
def prepare_gcn_params(layer_params, pad=PAD):
    """Pad / transpose / stack per-layer weights; fold att1/att2/att3 into the
    weight matrices as extra output columns at lane H (the score lane)."""
    L = len(layer_params)
    wf = jnp.zeros((L, pad, 3 * pad), jnp.float32)
    bf = jnp.zeros((L, 1, 3 * pad), jnp.float32)
    vw = jnp.zeros((L, pad, pad), jnp.float32)
    bv = jnp.zeros((L, 1, pad), jnp.float32)
    attvec = jnp.zeros((L, 9), jnp.float32)
    score_lanes = []
    for l, p in enumerate(layer_params):
        H, D = p['w1'].shape          # hidden_out, emb_in
        R = p['w2'].shape[0]          # rank
        assert H + 1 <= pad and R <= pad and D <= pad, "dims must fit the 128 lane pad"
        score_lanes.append(int(H))    # score lane = H (first padded lane of each slab)

        att1v = p['att1'][0]          # [H]
        att2v = p['att2'][0]
        att3v = p['att3'][0]
        w2_main = p['w2'][:, :D]
        b2_eff = p['b2'] + p['w2'][:, D]      # fold the "cat(x, ones)" column into bias

        wf = wf.at[l, :D, 0:H].set(p['w1'].T)
        wf = wf.at[l, :D, H].set(p['w1'].T @ att2v)            # folded att2 column
        wf = wf.at[l, :D, pad:pad + R].set(w2_main.T)
        wf = wf.at[l, :D, 2 * pad:2 * pad + H].set(p['w3'].T)
        wf = wf.at[l, :D, 2 * pad + H].set(p['w3'].T @ att3v)  # folded att3 column

        bf = bf.at[l, 0, 0:H].set(p['b1'])
        bf = bf.at[l, 0, H].set(jnp.dot(p['b1'], att2v))
        bf = bf.at[l, 0, pad:pad + R].set(b2_eff)
        bf = bf.at[l, 0, 2 * pad:2 * pad + H].set(p['b3'])
        bf = bf.at[l, 0, 2 * pad + H].set(jnp.dot(p['b3'], att3v))

        vw = vw.at[l, :R, :H].set(p['v'].T)
        vw = vw.at[l, :R, H].set(p['v'].T @ att1v)             # folded att1 column
        bv = bv.at[l, 0, :H].set(p['bv'])
        bv = bv.at[l, 0, H].set(jnp.dot(p['bv'], att1v))

        attvec = attvec.at[l].set(p['att_vec'].reshape(-1) / 3.0)  # pre-scale by 1/T
    return dict(wf=wf, bf=bf, v=vw, bv=bv, attvec=attvec,
                num_conv_layers=L, score_lanes=tuple(score_lanes),
                out_dim=layer_params[-1]['w1'].shape[0])


def _vmem_limit_bytes(N, P, L):
    est = (6 * N * N                       # adj bf16 input + f32 upcast
           + 4 * N * P * 16                # activations / temps / agg scratch
           + 4 * L * (3 * P * P + P * P + 8 * P))
    return int(min(64 << 20, max(16 << 20, 2 * est)))


def gcn_forward(x, adj, prepped):
    """Whole GCN forward in one pallas_call. x: [N, D] f32, adj: [N, N] (0/1 counts)."""
    N, D = x.shape
    P = PAD
    L = prepped['num_conv_layers']
    x_pad = jnp.zeros((N, P), jnp.float32).at[:, :D].set(x)
    # bf16 adjacency: 0/1 / small multiplicities are exact in bf16 (up to 256).
    adj_lo = adj.astype(jnp.bfloat16)

    vmem = pl.BlockSpec(memory_space=pltpu.MemorySpace.VMEM)
    smem = pl.BlockSpec(memory_space=pltpu.MemorySpace.SMEM)

    kernel = functools.partial(_gcn_fused_kernel, L, prepped['score_lanes'])
    out = pl.pallas_call(
        kernel,
        out_shape=jax.ShapeDtypeStruct((N, P), jnp.float32),
        in_specs=[vmem, vmem, vmem, vmem, vmem, vmem, smem],
        out_specs=vmem,
        scratch_shapes=[pltpu.VMEM((N, 2 * P), jnp.float32),    # x_sum | log_abs
                        pltpu.VMEM((N, 2 * P), jnp.bfloat16)],  # neg_cnt | zero_cnt
        compiler_params=pltpu.CompilerParams(
            vmem_limit_bytes=_vmem_limit_bytes(N, P, L)),
    )(x_pad, adj_lo, prepped['wf'], prepped['bf'], prepped['v'], prepped['bv'],
      prepped['attvec'])
    return out[:, :prepped['out_dim']]


# ----------------------------------------------------------------------------
# Deterministic parameter init (shapes from GCNConv.__init__)
# ----------------------------------------------------------------------------
def _init_linear(key, out_dim, in_dim, bias=True):
    kw, kb = jax.random.split(key)
    bound = 1.0 / jnp.sqrt(jnp.float32(in_dim))
    w = jax.random.uniform(kw, (out_dim, in_dim), jnp.float32, -bound, bound)
    b = (jax.random.uniform(kb, (out_dim,), jnp.float32, -bound, bound)
         if bias else None)
    return w, b


def init_gcnconv(key, emb_dim, hidden_dim, rank_dim):
    ks = jax.random.split(key, 8)
    w1, b1 = _init_linear(ks[0], hidden_dim, emb_dim)
    w2, b2 = _init_linear(ks[1], rank_dim, emb_dim + 1)
    w3, b3 = _init_linear(ks[2], hidden_dim, emb_dim)
    v, bv = _init_linear(ks[3], hidden_dim, rank_dim)
    att1, _ = _init_linear(ks[4], 1, hidden_dim, bias=False)
    att2, _ = _init_linear(ks[5], 1, hidden_dim, bias=False)
    att3, _ = _init_linear(ks[6], 1, hidden_dim, bias=False)
    att_vec, _ = _init_linear(ks[7], 3, 3, bias=False)
    return dict(w1=w1, b1=b1, w2=w2, b2=b2, w3=w3, b3=b3, v=v, bv=bv,
                att1=att1, att2=att2, att3=att3, att_vec=att_vec)


def init_gcn(key, num_layers, in_dim, num_hidden, num_classes, rank):
    keys = jax.random.split(key, num_layers + 1)
    params = [init_gcnconv(keys[0], in_dim, num_hidden, rank)]
    for l in range(1, num_layers):
        params.append(init_gcnconv(keys[l], num_hidden, num_hidden, rank))
    params.append(init_gcnconv(keys[num_layers], num_hidden, num_classes, rank))
    return params


# ----------------------------------------------------------------------------
# Pure-JAX reference (edge-list scatter semantics) for verification
# ----------------------------------------------------------------------------
def _gcn_conv_ref(x, edge_index, p, apply_relu):
    N = x.shape[0]
    row, col = edge_index[0], edge_index[1]
    x_sum = x @ p['w1'].T + p['b1']
    x_prod = jnp.tanh(jnp.concatenate([x, jnp.ones((N, 1), x.dtype)], 1) @ p['w2'].T + p['b2'])
    x_self = x @ p['w3'].T + p['b3']
    sum_agg = jnp.zeros((N, x_sum.shape[1]), x.dtype).at[col].add(x_sum[row])
    prod_agg = jnp.ones((N, x_prod.shape[1]), x.dtype).at[col].multiply(x_prod[row])
    prod_agg = prod_agg @ p['v'].T + p['bv']
    s = jax.nn.sigmoid(jnp.concatenate(
        [prod_agg @ p['att1'].T, sum_agg @ p['att2'].T, x_self @ p['att3'].T], axis=1))
    att = jax.nn.softmax((s @ p['att_vec'].T) / 3.0, axis=1)
    rst = att[:, 0:1] * prod_agg + att[:, 1:2] * sum_agg + att[:, 2:3] * x_self
    return jnp.maximum(rst, 0.0) if apply_relu else rst


def _gcn_ref(x, edge_index, layer_params, num_layers):
    h = x
    for l in range(num_layers):
        h = _gcn_conv_ref(h, edge_index, layer_params[l], apply_relu=True)
    return _gcn_conv_ref(h, edge_index, layer_params[num_layers], apply_relu=False)


# ----------------------------------------------------------------------------
if __name__ == "__main__":
    N, IN_DIM, HIDDEN, RANK, CLASSES, NUM_LAYERS = 32, 16, 32, 16, 8, 2

    key = jax.random.PRNGKey(0)
    k_x, k_p = jax.random.split(key)

    x = jax.random.normal(k_x, (N, IN_DIM), jnp.float32)

    # Deterministic simple graph (no duplicate edges), every node has >= 1 in-edge
    # so that max(col)+1 == N (matches the PyTorch scatter output size).
    idx = jnp.arange(N)
    row = jnp.concatenate([idx, (idx + 3) % N])
    col = jnp.concatenate([(idx + 1) % N, idx])
    edge_index = jnp.stack([row, col]).astype(jnp.int32)   # [2, 2N]

    # Dense adjacency: adj[c, n] = multiplicity of edge n -> c.
    adj = jnp.zeros((N, N), jnp.float32).at[col, row].add(1.0)

    params = init_gcn(k_p, NUM_LAYERS, IN_DIM, HIDDEN, CLASSES, RANK)
    prepped = prepare_gcn_params(params)           # one-time weight prep

    logits = gcn_forward(x, adj, prepped)
    logits = jax.block_until_ready(logits)

    ref = _gcn_ref(x, edge_index, params, NUM_LAYERS)
    assert logits.shape == (N, CLASSES)
    assert jnp.allclose(logits, ref, rtol=1e-4, atol=1e-4), (
        float(jnp.max(jnp.abs(logits - ref))))

    print("KERNEL_OK")
</pallas_src>

<mosaic_0001>
module attributes {stable_mosaic.version = 11 : i64} {
  func.func @_gcn_fused_kernel(%arg0: memref<32x128xf32, #tpu.memory_space<vmem>>, %arg1: memref<32x32xbf16, #tpu.memory_space<vmem>>, %arg2: memref<3x128x384xf32, #tpu.memory_space<vmem>>, %arg3: memref<3x1x384xf32, #tpu.memory_space<vmem>>, %arg4: memref<3x128x128xf32, #tpu.memory_space<vmem>>, %arg5: memref<3x1x128xf32, #tpu.memory_space<vmem>>, %arg6: memref<3x9xf32, #tpu.memory_space<smem>>, %arg7: memref<32x128xf32, #tpu.memory_space<vmem>>, %arg8: memref<32x256xf32, #tpu.memory_space<vmem>>, %arg9: memref<32x256xbf16, #tpu.memory_space<vmem>>) attributes {dimension_semantics = [], scalar_prefetch = 0 : i64, scratch_operands = 2 : i64, tpu.core_type = #tpu.core_type<tc>} {
    %c0 = arith.constant 0 : index
    %c0_0 = arith.constant 0 : index
    %0 = vector.load %arg1[%c0, %c0_0] : memref<32x32xbf16, #tpu.memory_space<vmem>>, vector<32x32xbf16>
    %1 = arith.extf %0 : vector<32x32xbf16> to vector<32x32xf32>
    %c0_1 = arith.constant 0 : index
    %c0_2 = arith.constant 0 : index
    %2 = vector.load %arg0[%c0_1, %c0_2] : memref<32x128xf32, #tpu.memory_space<vmem>>, vector<32x128xf32>
    %c0_3 = arith.constant 0 : index
    %c0_4 = arith.constant 0 : index
    %c0_5 = arith.constant 0 : index
    %3 = vector.load %arg2[%c0_3, %c0_4, %c0_5] : memref<3x128x384xf32, #tpu.memory_space<vmem>>, vector<1x128x384xf32>
    %4 = vector.shape_cast %3 : vector<1x128x384xf32> to vector<128x384xf32>
    %cst = arith.constant dense<0.000000e+00> : vector<32x384xf32>
    %5 = tpu.matmul %2, %4, %cst {dimension_numbers = #tpu.dot_dimension_numbers<[1], [0], [0], [1], [0, 0, 1, 1], [], []>} : vector<32x128xf32>, vector<128x384xf32>, vector<32x384xf32> -> vector<32x384xf32>
    %c0_6 = arith.constant 0 : index
    %c0_7 = arith.constant 0 : index
    %c0_8 = arith.constant 0 : index
    %6 = vector.load %arg3[%c0_6, %c0_7, %c0_8] : memref<3x1x384xf32, #tpu.memory_space<vmem>>, vector<1x1x384xf32>
    %7 = vector.shape_cast %6 : vector<1x1x384xf32> to vector<1x384xf32>
    %8 = vector.broadcast %7 : vector<1x384xf32> to vector<32x384xf32>
    %9 = arith.addf %5, %8 : vector<32x384xf32>
    %10 = vector.extract_strided_slice %9 {offsets = [0, 0], sizes = [32, 128], strides = [1, 1]} : vector<32x384xf32> to vector<32x128xf32>
    %11 = vector.extract_strided_slice %9 {offsets = [0, 128], sizes = [32, 128], strides = [1, 1]} : vector<32x384xf32> to vector<32x128xf32>
    %12 = math.tanh %11 : vector<32x128xf32>
    %13 = vector.extract_strided_slice %9 {offsets = [0, 256], sizes = [32, 128], strides = [1, 1]} : vector<32x384xf32> to vector<32x128xf32>
    %cst_9 = arith.constant 0.000000e+00 : f32
    %14 = vector.broadcast %cst_9 : f32 to vector<32x128xf32>
    %15 = arith.cmpf oeq, %12, %14 : vector<32x128xf32>
    %16 = math.absf %12 : vector<32x128xf32>
    %cst_10 = arith.constant 1.000000e+00 : f32
    %17 = vector.broadcast %cst_10 : f32 to vector<32x128xf32>
    %18 = arith.select %15, %17, %16 : vector<32x128xi1>, vector<32x128xf32>
    %19 = math.log %18 : vector<32x128xf32>
    %c0_11 = arith.constant 0 : index
    %c0_12 = arith.constant 0 : index
    %20 = vector.load %arg8[%c0_11, %c0_12] : memref<32x256xf32, #tpu.memory_space<vmem>>, vector<32x128xf32>
    tpu.vector_store %arg8[%c0_11, %c0_12], %10 {strides = array<i32>} : memref<32x256xf32, #tpu.memory_space<vmem>>, vector<32x128xf32>,
    %c0_13 = arith.constant 0 : index
    %c128 = arith.constant 128 : index
    %21 = vector.load %arg8[%c0_13, %c128] : memref<32x256xf32, #tpu.memory_space<vmem>>, vector<32x128xf32>
    tpu.vector_store %arg8[%c0_13, %c128], %19 {strides = array<i32>} : memref<32x256xf32, #tpu.memory_space<vmem>>, vector<32x128xf32>,
    %cst_14 = arith.constant 0.000000e+00 : f32
    %22 = vector.broadcast %cst_14 : f32 to vector<32x128xf32>
    %23 = arith.cmpf olt, %12, %22 : vector<32x128xf32>
    %cst_15 = arith.constant 1.000000e+00 : f32
    %cst_16 = arith.constant 0.000000e+00 : f32
    %24 = vector.broadcast %cst_15 : f32 to vector<32x128xf32>
    %25 = vector.broadcast %cst_16 : f32 to vector<32x128xf32>
    %26 = arith.select %23, %24, %25 : vector<32x128xi1>, vector<32x128xf32>
    %27 = arith.truncf %26 : vector<32x128xf32> to vector<32x128xbf16>
    %c0_17 = arith.constant 0 : index
    %c0_18 = arith.constant 0 : index
    %28 = vector.load %arg9[%c0_17, %c0_18] : memref<32x256xbf16, #tpu.memory_space<vmem>>, vector<32x128xbf16>
    tpu.vector_store %arg9[%c0_17, %c0_18], %27 {strides = array<i32>} : memref<32x256xbf16, #tpu.memory_space<vmem>>, vector<32x128xbf16>,
    %cst_19 = arith.constant 1.000000e+00 : f32
    %cst_20 = arith.constant 0.000000e+00 : f32
    %29 = vector.broadcast %cst_19 : f32 to vector<32x128xf32>
    %30 = vector.broadcast %cst_20 : f32 to vector<32x128xf32>
    %31 = arith.select %15, %29, %30 : vector<32x128xi1>, vector<32x128xf32>
    %32 = arith.truncf %31 : vector<32x128xf32> to vector<32x128xbf16>
    %c0_21 = arith.constant 0 : index
    %c128_22 = arith.constant 128 : index
    %33 = vector.load %arg9[%c0_21, %c128_22] : memref<32x256xbf16, #tpu.memory_space<vmem>>, vector<32x128xbf16>
    tpu.vector_store %arg9[%c0_21, %c128_22], %32 {strides = array<i32>} : memref<32x256xbf16, #tpu.memory_space<vmem>>, vector<32x128xbf16>,
    %c0_23 = arith.constant 0 : index
    %c0_24 = arith.constant 0 : index
    %34 = vector.load %arg8[%c0_23, %c0_24] : memref<32x256xf32, #tpu.memory_space<vmem>>, vector<32x256xf32>
    %cst_25 = arith.constant dense<0.000000e+00> : vector<32x256xf32>
    %35 = tpu.matmul %1, %34, %cst_25 {dimension_numbers = #tpu.dot_dimension_numbers<[1], [0], [0], [1], [0, 0, 1, 1], [], []>} : vector<32x32xf32>, vector<32x256xf32>, vector<32x256xf32> -> vector<32x256xf32>
    %c0_26 = arith.constant 0 : index
    %c0_27 = arith.constant 0 : index
    %36 = vector.load %arg9[%c0_26, %c0_27] : memref<32x256xbf16, #tpu.memory_space<vmem>>, vector<32x256xbf16>
    %cst_28 = arith.constant dense<0.000000e+00> : vector<32x256xf32>
    %37 = tpu.matmul %0, %36, %cst_28 {dimension_numbers = #tpu.dot_dimension_numbers<[1], [0], [0], [1], [0, 0, 1, 1], [], []>} : vector<32x32xbf16>, vector<32x256xbf16>, vector<32x256xf32> -> vector<32x256xf32>
    %38 = vector.extract_strided_slice %35 {offsets = [0, 0], sizes = [32, 128], strides = [1, 1]} : vector<32x256xf32> to vector<32x128xf32>
    %39 = vector.extract_strided_slice %35 {offsets = [0, 128], sizes = [32, 128], strides = [1, 1]} : vector<32x256xf32> to vector<32x128xf32>
    %40 = vector.extract_strided_slice %37 {offsets = [0, 0], sizes = [32, 128], strides = [1, 1]} : vector<32x256xf32> to vector<32x128xf32>
    %41 = vector.extract_strided_slice %37 {offsets = [0, 128], sizes = [32, 128], strides = [1, 1]} : vector<32x256xf32> to vector<32x128xf32>
    %42 = arith.fptosi %40 : vector<32x128xf32> to vector<32x128xi32>
    %c1_i32 = arith.constant 1 : i32
    %43 = vector.broadcast %c1_i32 : i32 to vector<32x128xi32>
    %44 = arith.andi %42, %43 : vector<32x128xi32>
    %45 = arith.sitofp %44 : vector<32x128xi32> to vector<32x128xf32>
    %cst_29 = arith.constant 2.000000e+00 : f32
    %46 = vector.broadcast %cst_29 : f32 to vector<32x128xf32>
    %47 = arith.mulf %46, %45 : vector<32x128xf32>
    %cst_30 = arith.constant 1.000000e+00 : f32
    %48 = vector.broadcast %cst_30 : f32 to vector<32x128xf32>
    %49 = arith.subf %48, %47 : vector<32x128xf32>
    %cst_31 = arith.constant 5.000000e-01 : f32
    %50 = vector.broadcast %cst_31 : f32 to vector<32x128xf32>
    %51 = arith.cmpf ogt, %41, %50 : vector<32x128xf32>
    %52 = math.exp %39 : vector<32x128xf32>
    %53 = arith.mulf %49, %52 : vector<32x128xf32>
    %cst_32 = arith.constant 0.000000e+00 : f32
    %54 = vector.broadcast %cst_32 : f32 to vector<32x128xf32>
    %55 = arith.select %51, %54, %53 : vector<32x128xi1>, vector<32x128xf32>
    %c0_33 = arith.constant 0 : index
    %c0_34 = arith.constant 0 : index
    %c0_35 = arith.constant 0 : index
    %56 = vector.load %arg4[%c0_33, %c0_34, %c0_35] : memref<3x128x128xf32, #tpu.memory_space<vmem>>, vector<1x128x128xf32>
    %57 = vector.shape_cast %56 : vector<1x128x128xf32> to vector<128x128xf32>
    %cst_36 = arith.constant dense<0.000000e+00> : vector<32x128xf32>
    %58 = tpu.matmul %55, %57, %cst_36 {dimension_numbers = #tpu.dot_dimension_numbers<[1], [0], [0], [1], [0, 0, 1, 1], [], []>} : vector<32x128xf32>, vector<128x128xf32>, vector<32x128xf32> -> vector<32x128xf32>
    %c0_37 = arith.constant 0 : index
    %c0_38 = arith.constant 0 : index
    %c0_39 = arith.constant 0 : index
    %59 = vector.load %arg5[%c0_37, %c0_38, %c0_39] : memref<3x1x128xf32, #tpu.memory_space<vmem>>, vector<1x1x128xf32>
    %60 = vector.shape_cast %59 : vector<1x1x128xf32> to vector<1x128xf32>
    %61 = vector.broadcast %60 : vector<1x128xf32> to vector<32x128xf32>
    %62 = arith.addf %58, %61 : vector<32x128xf32>
    %63 = vector.extract_strided_slice %62 {offsets = [0, 32], sizes = [32, 1], strides = [1, 1]} : vector<32x128xf32> to vector<32x1xf32>
    %64 = arith.negf %63 : vector<32x1xf32>
    %65 = math.exp %64 : vector<32x1xf32>
    %cst_40 = arith.constant 1.000000e+00 : f32
    %66 = vector.broadcast %cst_40 : f32 to vector<32x1xf32>
    %67 = arith.addf %66, %65 : vector<32x1xf32>
    %68 = arith.divf %66, %67 : vector<32x1xf32>
    %69 = vector.extract_strided_slice %38 {offsets = [0, 32], sizes = [32, 1], strides = [1, 1]} : vector<32x128xf32> to vector<32x1xf32>
    %70 = arith.negf %69 : vector<32x1xf32>
    %71 = math.exp %70 : vector<32x1xf32>
    %cst_41 = arith.constant 1.000000e+00 : f32
    %72 = vector.broadcast %cst_41 : f32 to vector<32x1xf32>
    %73 = arith.addf %72, %71 : vector<32x1xf32>
    %74 = arith.divf %72, %73 : vector<32x1xf32>
    %75 = vector.extract_strided_slice %13 {offsets = [0, 32], sizes = [32, 1], strides = [1, 1]} : vector<32x128xf32> to vector<32x1xf32>
    %76 = arith.negf %75 : vector<32x1xf32>
    %77 = math.exp %76 : vector<32x1xf32>
    %cst_42 = arith.constant 1.000000e+00 : f32
    %78 = vector.broadcast %cst_42 : f32 to vector<32x1xf32>
    %79 = arith.addf %78, %77 : vector<32x1xf32>
    %80 = arith.divf %78, %79 : vector<32x1xf32>
    %c0_43 = arith.constant 0 : index
    %c0_44 = arith.constant 0 : index
    %81 = memref.load %arg6[%c0_43, %c0_44] : memref<3x9xf32, #tpu.memory_space<smem>>
    %82 = vector.broadcast %81 : f32 to vector<32x1xf32>
    %83 = arith.mulf %68, %82 : vector<32x1xf32>
    %c0_45 = arith.constant 0 : index
    %c1 = arith.constant 1 : index
    %84 = memref.load %arg6[%c0_45, %c1] : memref<3x9xf32, #tpu.memory_space<smem>>
    %85 = vector.broadcast %84 : f32 to vector<32x1xf32>
    %86 = arith.mulf %74, %85 : vector<32x1xf32>
    %87 = arith.addf %83, %86 : vector<32x1xf32>
    %c0_46 = arith.constant 0 : index
    %c2 = arith.constant 2 : index
    %88 = memref.load %arg6[%c0_46, %c2] : memref<3x9xf32, #tpu.memory_space<smem>>
    %89 = vector.broadcast %88 : f32 to vector<32x1xf32>
    %90 = arith.mulf %80, %89 : vector<32x1xf32>
    %91 = arith.addf %87, %90 : vector<32x1xf32>
    %c0_47 = arith.constant 0 : index
    %c3 = arith.constant 3 : index
    %92 = memref.load %arg6[%c0_47, %c3] : memref<3x9xf32, #tpu.memory_space<smem>>
    %93 = vector.broadcast %92 : f32 to vector<32x1xf32>
    %94 = arith.mulf %68, %93 : vector<32x1xf32>
    %c0_48 = arith.constant 0 : index
    %c4 = arith.constant 4 : index
    %95 = memref.load %arg6[%c0_48, %c4] : memref<3x9xf32, #tpu.memory_space<smem>>
    %96 = vector.broadcast %95 : f32 to vector<32x1xf32>
    %97 = arith.mulf %74, %96 : vector<32x1xf32>
    %98 = arith.addf %94, %97 : vector<32x1xf32>
    %c0_49 = arith.constant 0 : index
    %c5 = arith.constant 5 : index
    %99 = memref.load %arg6[%c0_49, %c5] : memref<3x9xf32, #tpu.memory_space<smem>>
    %100 = vector.broadcast %99 : f32 to vector<32x1xf32>
    %101 = arith.mulf %80, %100 : vector<32x1xf32>
    %102 = arith.addf %98, %101 : vector<32x1xf32>
    %c0_50 = arith.constant 0 : index
    %c6 = arith.constant 6 : index
    %103 = memref.load %arg6[%c0_50, %c6] : memref<3x9xf32, #tpu.memory_space<smem>>
    %104 = vector.broadcast %103 : f32 to vector<32x1xf32>
    %105 = arith.mulf %68, %104 : vector<32x1xf32>
    %c0_51 = arith.constant 0 : index
    %c7 = arith.constant 7 : index
    %106 = memref.load %arg6[%c0_51, %c7] : memref<3x9xf32, #tpu.memory_space<smem>>
    %107 = vector.broadcast %106 : f32 to vector<32x1xf32>
    %108 = arith.mulf %74, %107 : vector<32x1xf32>
    %109 = arith.addf %105, %108 : vector<32x1xf32>
    %c0_52 = arith.constant 0 : index
    %c8 = arith.constant 8 : index
    %110 = memref.load %arg6[%c0_52, %c8] : memref<3x9xf32, #tpu.memory_space<smem>>
    %111 = vector.broadcast %110 : f32 to vector<32x1xf32>
    %112 = arith.mulf %80, %111 : vector<32x1xf32>
    %113 = arith.addf %109, %112 : vector<32x1xf32>
    %114 = arith.maximumf %91, %102 : vector<32x1xf32>
    %115 = arith.maximumf %114, %113 : vector<32x1xf32>
    %116 = arith.subf %91, %115 : vector<32x1xf32>
    %117 = math.exp %116 : vector<32x1xf32>
    %118 = arith.subf %102, %115 : vector<32x1xf32>
    %119 = math.exp %118 : vector<32x1xf32>
    %120 = arith.subf %113, %115 : vector<32x1xf32>
    %121 = math.exp %120 : vector<32x1xf32>
    %122 = arith.addf %117, %119 : vector<32x1xf32>
    %123 = arith.addf %122, %121 : vector<32x1xf32>
    %124 = tpu.reciprocal %123 {approx = true} : vector<32x1xf32> -> vector<32x1xf32>
    %125 = arith.mulf %123, %124 : vector<32x1xf32>
    %cst_53 = arith.constant 2.000000e+00 : f32
    %126 = vector.broadcast %cst_53 : f32 to vector<32x1xf32>
    %127 = arith.subf %126, %125 : vector<32x1xf32>
    %128 = arith.mulf %124, %127 : vector<32x1xf32>
    %129 = arith.mulf %117, %128 : vector<32x1xf32>
    %130 = vector.broadcast %129 : vector<32x1xf32> to vector<32x128xf32>
    %131 = arith.mulf %130, %62 : vector<32x128xf32>
    %132 = arith.mulf %119, %128 : vector<32x1xf32>
    %133 = vector.broadcast %132 : vector<32x1xf32> to vector<32x128xf32>
    %134 = arith.mulf %133, %38 : vector<32x128xf32>
    %135 = arith.addf %131, %134 : vector<32x128xf32>
    %136 = arith.mulf %121, %128 : vector<32x1xf32>
    %137 = vector.broadcast %136 : vector<32x1xf32> to vector<32x128xf32>
    %138 = arith.mulf %137, %13 : vector<32x128xf32>
    %139 = arith.addf %135, %138 : vector<32x128xf32>
    %cst_54 = arith.constant 0.000000e+00 : f32
    %140 = vector.broadcast %cst_54 : f32 to vector<32x128xf32>
    %141 = arith.maximumf %139, %140 : vector<32x128xf32>
    %c1_55 = arith.constant 1 : index
    %c0_56 = arith.constant 0 : index
    %c0_57 = arith.constant 0 : index
    %142 = vector.load %arg2[%c1_55, %c0_56, %c0_57] : memref<3x128x384xf32, #tpu.memory_space<vmem>>, vector<1x128x384xf32>
    %143 = vector.shape_cast %142 : vector<1x128x384xf32> to vector<128x384xf32>
    %cst_58 = arith.constant dense<0.000000e+00> : vector<32x384xf32>
    %144 = tpu.matmul %141, %143, %cst_58 {dimension_numbers = #tpu.dot_dimension_numbers<[1], [0], [0], [1], [0, 0, 1, 1], [], []>} : vector<32x128xf32>, vector<128x384xf32>, vector<32x384xf32> -> vector<32x384xf32>
    %c1_59 = arith.constant 1 : index
    %c0_60 = arith.constant 0 : index
    %c0_61 = arith.constant 0 : index
    %145 = vector.load %arg3[%c1_59, %c0_60, %c0_61] : memref<3x1x384xf32, #tpu.memory_space<vmem>>, vector<1x1x384xf32>
    %146 = vector.shape_cast %145 : vector<1x1x384xf32> to vector<1x384xf32>
    %147 = vector.broadcast %146 : vector<1x384xf32> to vector<32x384xf32>
    %148 = arith.addf %144, %147 : vector<32x384xf32>
    %149 = vector.extract_strided_slice %148 {offsets = [0, 0], sizes = [32, 128], strides = [1, 1]} : vector<32x384xf32> to vector<32x128xf32>
    %150 = vector.extract_strided_slice %148 {offsets = [0, 128], sizes = [32, 128], strides = [1, 1]} : vector<32x384xf32> to vector<32x128xf32>
    %151 = math.tanh %150 : vector<32x128xf32>
    %152 = vector.extract_strided_slice %148 {offsets = [0, 256], sizes = [32, 128], strides = [1, 1]} : vector<32x384xf32> to vector<32x128xf32>
    %cst_62 = arith.constant 0.000000e+00 : f32
    %153 = vector.broadcast %cst_62 : f32 to vector<32x128xf32>
    %154 = arith.cmpf oeq, %151, %153 : vector<32x128xf32>
    %155 = math.absf %151 : vector<32x128xf32>
    %cst_63 = arith.constant 1.000000e+00 : f32
    %156 = vector.broadcast %cst_63 : f32 to vector<32x128xf32>
    %157 = arith.select %154, %156, %155 : vector<32x128xi1>, vector<32x128xf32>
    %158 = math.log %157 : vector<32x128xf32>
    %c0_64 = arith.constant 0 : index
    %c0_65 = arith.constant 0 : index
    %159 = vector.load %arg8[%c0_64, %c0_65] : memref<32x256xf32, #tpu.memory_space<vmem>>, vector<32x128xf32>
    tpu.vector_store %arg8[%c0_64, %c0_65], %149 {strides = array<i32>} : memref<32x256xf32, #tpu.memory_space<vmem>>, vector<32x128xf32>,
    %c0_66 = arith.constant 0 : index
    %c128_67 = arith.constant 128 : index
    %160 = vector.load %arg8[%c0_66, %c128_67] : memref<32x256xf32, #tpu.memory_space<vmem>>, vector<32x128xf32>
    tpu.vector_store %arg8[%c0_66, %c128_67], %158 {strides = array<i32>} : memref<32x256xf32, #tpu.memory_space<vmem>>, vector<32x128xf32>,
    %cst_68 = arith.constant 0.000000e+00 : f32
    %161 = vector.broadcast %cst_68 : f32 to vector<32x128xf32>
    %162 = arith.cmpf olt, %151, %161 : vector<32x128xf32>
    %cst_69 = arith.constant 1.000000e+00 : f32
    %cst_70 = arith.constant 0.000000e+00 : f32
    %163 = vector.broadcast %cst_69 : f32 to vector<32x128xf32>
    %164 = vector.broadcast %cst_70 : f32 to vector<32x128xf32>
    %165 = arith.select %162, %163, %164 : vector<32x128xi1>, vector<32x128xf32>
    %166 = arith.truncf %165 : vector<32x128xf32> to vector<32x128xbf16>
    %c0_71 = arith.constant 0 : index
    %c0_72 = arith.constant 0 : index
    %167 = vector.load %arg9[%c0_71, %c0_72] : memref<32x256xbf16, #tpu.memory_space<vmem>>, vector<32x128xbf16>
    tpu.vector_store %arg9[%c0_71, %c0_72], %166 {strides = array<i32>} : memref<32x256xbf16, #tpu.memory_space<vmem>>, vector<32x128xbf16>,
    %cst_73 = arith.constant 1.000000e+00 : f32
    %cst_74 = arith.constant 0.000000e+00 : f32
    %168 = vector.broadcast %cst_73 : f32 to vector<32x128xf32>
    %169 = vector.broadcast %cst_74 : f32 to vector<32x128xf32>
    %170 = arith.select %154, %168, %169 : vector<32x128xi1>, vector<32x128xf32>
    %171 = arith.truncf %170 : vector<32x128xf32> to vector<32x128xbf16>
    %c0_75 = arith.constant 0 : index
    %c128_76 = arith.constant 128 : index
    %172 = vector.load %arg9[%c0_75, %c128_76] : memref<32x256xbf16, #tpu.memory_space<vmem>>, vector<32x128xbf16>
    tpu.vector_store %arg9[%c0_75, %c128_76], %171 {strides = array<i32>} : memref<32x256xbf16, #tpu.memory_space<vmem>>, vector<32x128xbf16>,
    %c0_77 = arith.constant 0 : index
    %c0_78 = arith.constant 0 : index
    %173 = vector.load %arg8[%c0_77, %c0_78] : memref<32x256xf32, #tpu.memory_space<vmem>>, vector<32x256xf32>
    %cst_79 = arith.constant dense<0.000000e+00> : vector<32x256xf32>
    %174 = tpu.matmul %1, %173, %cst_79 {dimension_numbers = #tpu.dot_dimension_numbers<[1], [0], [0], [1], [0, 0, 1, 1], [], []>} : vector<32x32xf32>, vector<32x256xf32>, vector<32x256xf32> -> vector<32x256xf32>
    %c0_80 = arith.constant 0 : index
    %c0_81 = arith.constant 0 : index
    %175 = vector.load %arg9[%c0_80, %c0_81] : memref<32x256xbf16, #tpu.memory_space<vmem>>, vector<32x256xbf16>
    %cst_82 = arith.constant dense<0.000000e+00> : vector<32x256xf32>
    %176 = tpu.matmul %0, %175, %cst_82 {dimension_numbers = #tpu.dot_dimension_numbers<[1], [0], [0], [1], [0, 0, 1, 1], [], []>} : vector<32x32xbf16>, vector<32x256xbf16>, vector<32x256xf32> -> vector<32x256xf32>
    %177 = vector.extract_strided_slice %174 {offsets = [0, 0], sizes = [32, 128], strides = [1, 1]} : vector<32x256xf32> to vector<32x128xf32>
    %178 = vector.extract_strided_slice %174 {offsets = [0, 128], sizes = [32, 128], strides = [1, 1]} : vector<32x256xf32> to vector<32x128xf32>
    %179 = vector.extract_strided_slice %176 {offsets = [0, 0], sizes = [32, 128], strides = [1, 1]} : vector<32x256xf32> to vector<32x128xf32>
    %180 = vector.extract_strided_slice %176 {offsets = [0, 128], sizes = [32, 128], strides = [1, 1]} : vector<32x256xf32> to vector<32x128xf32>
    %181 = arith.fptosi %179 : vector<32x128xf32> to vector<32x128xi32>
    %c1_i32_83 = arith.constant 1 : i32
    %182 = vector.broadcast %c1_i32_83 : i32 to vector<32x128xi32>
    %183 = arith.andi %181, %182 : vector<32x128xi32>
    %184 = arith.sitofp %183 : vector<32x128xi32> to vector<32x128xf32>
    %cst_84 = arith.constant 2.000000e+00 : f32
    %185 = vector.broadcast %cst_84 : f32 to vector<32x128xf32>
    %186 = arith.mulf %185, %184 : vector<32x128xf32>
    %cst_85 = arith.constant 1.000000e+00 : f32
    %187 = vector.broadcast %cst_85 : f32 to vector<32x128xf32>
    %188 = arith.subf %187, %186 : vector<32x128xf32>
    %cst_86 = arith.constant 5.000000e-01 : f32
    %189 = vector.broadcast %cst_86 : f32 to vector<32x128xf32>
    %190 = arith.cmpf ogt, %180, %189 : vector<32x128xf32>
    %191 = math.exp %178 : vector<32x128xf32>
    %192 = arith.mulf %188, %191 : vector<32x128xf32>
    %cst_87 = arith.constant 0.000000e+00 : f32
    %193 = vector.broadcast %cst_87 : f32 to vector<32x128xf32>
    %194 = arith.select %190, %193, %192 : vector<32x128xi1>, vector<32x128xf32>
    %c1_88 = arith.constant 1 : index
    %c0_89 = arith.constant 0 : index
    %c0_90 = arith.constant 0 : index
    %195 = vector.load %arg4[%c1_88, %c0_89, %c0_90] : memref<3x128x128xf32, #tpu.memory_space<vmem>>, vector<1x128x128xf32>
    %196 = vector.shape_cast %195 : vector<1x128x128xf32> to vector<128x128xf32>
    %cst_91 = arith.constant dense<0.000000e+00> : vector<32x128xf32>
    %197 = tpu.matmul %194, %196, %cst_91 {dimension_numbers = #tpu.dot_dimension_numbers<[1], [0], [0], [1], [0, 0, 1, 1], [], []>} : vector<32x128xf32>, vector<128x128xf32>, vector<32x128xf32> -> vector<32x128xf32>
    %c1_92 = arith.constant 1 : index
    %c0_93 = arith.constant 0 : index
    %c0_94 = arith.constant 0 : index
    %198 = vector.load %arg5[%c1_92, %c0_93, %c0_94] : memref<3x1x128xf32, #tpu.memory_space<vmem>>, vector<1x1x128xf32>
    %199 = vector.shape_cast %198 : vector<1x1x128xf32> to vector<1x128xf32>
    %200 = vector.broadcast %199 : vector<1x128xf32> to vector<32x128xf32>
    %201 = arith.addf %197, %200 : vector<32x128xf32>
    %202 = vector.extract_strided_slice %201 {offsets = [0, 32], sizes = [32, 1], strides = [1, 1]} : vector<32x128xf32> to vector<32x1xf32>
    %203 = arith.negf %202 : vector<32x1xf32>
    %204 = math.exp %203 : vector<32x1xf32>
    %cst_95 = arith.constant 1.000000e+00 : f32
    %205 = vector.broadcast %cst_95 : f32 to vector<32x1xf32>
    %206 = arith.addf %205, %204 : vector<32x1xf32>
    %207 = arith.divf %205, %206 : vector<32x1xf32>
    %208 = vector.extract_strided_slice %177 {offsets = [0, 32], sizes = [32, 1], strides = [1, 1]} : vector<32x128xf32> to vector<32x1xf32>
    %209 = arith.negf %208 : vector<32x1xf32>
    %210 = math.exp %209 : vector<32x1xf32>
    %cst_96 = arith.constant 1.000000e+00 : f32
    %211 = vector.broadcast %cst_96 : f32 to vector<32x1xf32>
    %212 = arith.addf %211, %210 : vector<32x1xf32>
    %213 = arith.divf %211, %212 : vector<32x1xf32>
    %214 = vector.extract_strided_slice %152 {offsets = [0, 32], sizes = [32, 1], strides = [1, 1]} : vector<32x128xf32> to vector<32x1xf32>
    %215 = arith.negf %214 : vector<32x1xf32>
    %216 = math.exp %215 : vector<32x1xf32>
    %cst_97 = arith.constant 1.000000e+00 : f32
    %217 = vector.broadcast %cst_97 : f32 to vector<32x1xf32>
    %218 = arith.addf %217, %216 : vector<32x1xf32>
    %219 = arith.divf %217, %218 : vector<32x1xf32>
    %c1_98 = arith.constant 1 : index
    %c0_99 = arith.constant 0 : index
    %220 = memref.load %arg6[%c1_98, %c0_99] : memref<3x9xf32, #tpu.memory_space<smem>>
    %221 = vector.broadcast %220 : f32 to vector<32x1xf32>
    %222 = arith.mulf %207, %221 : vector<32x1xf32>
    %c1_100 = arith.constant 1 : index
    %c1_101 = arith.constant 1 : index
    %223 = memref.load %arg6[%c1_100, %c1_101] : memref<3x9xf32, #tpu.memory_space<smem>>
    %224 = vector.broadcast %223 : f32 to vector<32x1xf32>
    %225 = arith.mulf %213, %224 : vector<32x1xf32>
    %226 = arith.addf %222, %225 : vector<32x1xf32>
    %c1_102 = arith.constant 1 : index
    %c2_103 = arith.constant 2 : index
    %227 = memref.load %arg6[%c1_102, %c2_103] : memref<3x9xf32, #tpu.memory_space<smem>>
    %228 = vector.broadcast %227 : f32 to vector<32x1xf32>
    %229 = arith.mulf %219, %228 : vector<32x1xf32>
    %230 = arith.addf %226, %229 : vector<32x1xf32>
    %c1_104 = arith.constant 1 : index
    %c3_105 = arith.constant 3 : index
    %231 = memref.load %arg6[%c1_104, %c3_105] : memref<3x9xf32, #tpu.memory_space<smem>>
    %232 = vector.broadcast %231 : f32 to vector<32x1xf32>
    %233 = arith.mulf %207, %232 : vector<32x1xf32>
    %c1_106 = arith.constant 1 : index
    %c4_107 = arith.constant 4 : index
    %234 = memref.load %arg6[%c1_106, %c4_107] : memref<3x9xf32, #tpu.memory_space<smem>>
    %235 = vector.broadcast %234 : f32 to vector<32x1xf32>
    %236 = arith.mulf %213, %235 : vector<32x1xf32>
    %237 = arith.addf %233, %236 : vector<32x1xf32>
    %c1_108 = arith.constant 1 : index
    %c5_109 = arith.constant 5 : index
    %238 = memref.load %arg6[%c1_108, %c5_109] : memref<3x9xf32, #tpu.memory_space<smem>>
    %239 = vector.broadcast %238 : f32 to vector<32x1xf32>
    %240 = arith.mulf %219, %239 : vector<32x1xf32>
    %241 = arith.addf %237, %240 : vector<32x1xf32>
    %c1_110 = arith.constant 1 : index
    %c6_111 = arith.constant 6 : index
    %242 = memref.load %arg6[%c1_110, %c6_111] : memref<3x9xf32, #tpu.memory_space<smem>>
    %243 = vector.broadcast %242 : f32 to vector<32x1xf32>
    %244 = arith.mulf %207, %243 : vector<32x1xf32>
    %c1_112 = arith.constant 1 : index
    %c7_113 = arith.constant 7 : index
    %245 = memref.load %arg6[%c1_112, %c7_113] : memref<3x9xf32, #tpu.memory_space<smem>>
    %246 = vector.broadcast %245 : f32 to vector<32x1xf32>
    %247 = arith.mulf %213, %246 : vector<32x1xf32>
    %248 = arith.addf %244, %247 : vector<32x1xf32>
    %c1_114 = arith.constant 1 : index
    %c8_115 = arith.constant 8 : index
    %249 = memref.load %arg6[%c1_114, %c8_115] : memref<3x9xf32, #tpu.memory_space<smem>>
    %250 = vector.broadcast %249 : f32 to vector<32x1xf32>
    %251 = arith.mulf %219, %250 : vector<32x1xf32>
    %252 = arith.addf %248, %251 : vector<32x1xf32>
    %253 = arith.maximumf %230, %241 : vector<32x1xf32>
    %254 = arith.maximumf %253, %252 : vector<32x1xf32>
    %255 = arith.subf %230, %254 : vector<32x1xf32>
    %256 = math.exp %255 : vector<32x1xf32>
    %257 = arith.subf %241, %254 : vector<32x1xf32>
    %258 = math.exp %257 : vector<32x1xf32>
    %259 = arith.subf %252, %254 : vector<32x1xf32>
    %260 = math.exp %259 : vector<32x1xf32>
    %261 = arith.addf %256, %258 : vector<32x1xf32>
    %262 = arith.addf %261, %260 : vector<32x1xf32>
    %263 = tpu.reciprocal %262 {approx = true} : vector<32x1xf32> -> vector<32x1xf32>
    %264 = arith.mulf %262, %263 : vector<32x1xf32>
    %cst_116 = arith.constant 2.000000e+00 : f32
    %265 = vector.broadcast %cst_116 : f32 to vector<32x1xf32>
    %266 = arith.subf %265, %264 : vector<32x1xf32>
    %267 = arith.mulf %263, %266 : vector<32x1xf32>
    %268 = arith.mulf %256, %267 : vector<32x1xf32>
    %269 = vector.broadcast %268 : vector<32x1xf32> to vector<32x128xf32>
    %270 = arith.mulf %269, %201 : vector<32x128xf32>
    %271 = arith.mulf %258, %267 : vector<32x1xf32>
    %272 = vector.broadcast %271 : vector<32x1xf32> to vector<32x128xf32>
    %273 = arith.mulf %272, %177 : vector<32x128xf32>
    %274 = arith.addf %270, %273 : vector<32x128xf32>
    %275 = arith.mulf %260, %267 : vector<32x1xf32>
    %276 = vector.broadcast %275 : vector<32x1xf32> to vector<32x128xf32>
    %277 = arith.mulf %276, %152 : vector<32x128xf32>
    %278 = arith.addf %274, %277 : vector<32x128xf32>
    %cst_117 = arith.constant 0.000000e+00 : f32
    %279 = vector.broadcast %cst_117 : f32 to vector<32x128xf32>
    %280 = arith.maximumf %278, %279 : vector<32x128xf32>
    %c2_118 = arith.constant 2 : index
    %c0_119 = arith.constant 0 : index
    %c0_120 = arith.constant 0 : index
    %281 = vector.load %arg2[%c2_118, %c0_119, %c0_120] : memref<3x128x384xf32, #tpu.memory_space<vmem>>, vector<1x128x384xf32>
    %282 = vector.shape_cast %281 : vector<1x128x384xf32> to vector<128x384xf32>
    %cst_121 = arith.constant dense<0.000000e+00> : vector<32x384xf32>
    %283 = tpu.matmul %280, %282, %cst_121 {dimension_numbers = #tpu.dot_dimension_numbers<[1], [0], [0], [1], [0, 0, 1, 1], [], []>} : vector<32x128xf32>, vector<128x384xf32>, vector<32x384xf32> -> vector<32x384xf32>
    %c2_122 = arith.constant 2 : index
    %c0_123 = arith.constant 0 : index
    %c0_124 = arith.constant 0 : index
    %284 = vector.load %arg3[%c2_122, %c0_123, %c0_124] : memref<3x1x384xf32, #tpu.memory_space<vmem>>, vector<1x1x384xf32>
    %285 = vector.shape_cast %284 : vector<1x1x384xf32> to vector<1x384xf32>
    %286 = vector.broadcast %285 : vector<1x384xf32> to vector<32x384xf32>
    %287 = arith.addf %283, %286 : vector<32x384xf32>
    %288 = vector.extract_strided_slice %287 {offsets = [0, 0], sizes = [32, 128], strides = [1, 1]} : vector<32x384xf32> to vector<32x128xf32>
    %289 = vector.extract_strided_slice %287 {offsets = [0, 128], sizes = [32, 128], strides = [1, 1]} : vector<32x384xf32> to vector<32x128xf32>
    %290 = math.tanh %289 : vector<32x128xf32>
    %291 = vector.extract_strided_slice %287 {offsets = [0, 256], sizes = [32, 128], strides = [1, 1]} : vector<32x384xf32> to vector<32x128xf32>
    %cst_125 = arith.constant 0.000000e+00 : f32
    %292 = vector.broadcast %cst_125 : f32 to vector<32x128xf32>
    %293 = arith.cmpf oeq, %290, %292 : vector<32x128xf32>
    %294 = math.absf %290 : vector<32x128xf32>
    %cst_126 = arith.constant 1.000000e+00 : f32
    %295 = vector.broadcast %cst_126 : f32 to vector<32x128xf32>
    %296 = arith.select %293, %295, %294 : vector<32x128xi1>, vector<32x128xf32>
    %297 = math.log %296 : vector<32x128xf32>
    %c0_127 = arith.constant 0 : index
    %c0_128 = arith.constant 0 : index
    %298 = vector.load %arg8[%c0_127, %c0_128] : memref<32x256xf32, #tpu.memory_space<vmem>>, vector<32x128xf32>
    tpu.vector_store %arg8[%c0_127, %c0_128], %288 {strides = array<i32>} : memref<32x256xf32, #tpu.memory_space<vmem>>, vector<32x128xf32>,
    %c0_129 = arith.constant 0 : index
    %c128_130 = arith.constant 128 : index
    %299 = vector.load %arg8[%c0_129, %c128_130] : memref<32x256xf32, #tpu.memory_space<vmem>>, vector<32x128xf32>
    tpu.vector_store %arg8[%c0_129, %c128_130], %297 {strides = array<i32>} : memref<32x256xf32, #tpu.memory_space<vmem>>, vector<32x128xf32>,
    %cst_131 = arith.constant 0.000000e+00 : f32
    %300 = vector.broadcast %cst_131 : f32 to vector<32x128xf32>
    %301 = arith.cmpf olt, %290, %300 : vector<32x128xf32>
    %cst_132 = arith.constant 1.000000e+00 : f32
    %cst_133 = arith.constant 0.000000e+00 : f32
    %302 = vector.broadcast %cst_132 : f32 to vector<32x128xf32>
    %303 = vector.broadcast %cst_133 : f32 to vector<32x128xf32>
    %304 = arith.select %301, %302, %303 : vector<32x128xi1>, vector<32x128xf32>
    %305 = arith.truncf %304 : vector<32x128xf32> to vector<32x128xbf16>
    %c0_134 = arith.constant 0 : index
    %c0_135 = arith.constant 0 : index
    %306 = vector.load %arg9[%c0_134, %c0_135] : memref<32x256xbf16, #tpu.memory_space<vmem>>, vector<32x128xbf16>
    tpu.vector_store %arg9[%c0_134, %c0_135], %305 {strides = array<i32>} : memref<32x256xbf16, #tpu.memory_space<vmem>>, vector<32x128xbf16>,
    %cst_136 = arith.constant 1.000000e+00 : f32
    %cst_137 = arith.constant 0.000000e+00 : f32
    %307 = vector.broadcast %cst_136 : f32 to vector<32x128xf32>
    %308 = vector.broadcast %cst_137 : f32 to vector<32x128xf32>
    %309 = arith.select %293, %307, %308 : vector<32x128xi1>, vector<32x128xf32>
    %310 = arith.truncf %309 : vector<32x128xf32> to vector<32x128xbf16>
    %c0_138 = arith.constant 0 : index
    %c128_139 = arith.constant 128 : index
    %311 = vector.load %arg9[%c0_138, %c128_139] : memref<32x256xbf16, #tpu.memory_space<vmem>>, vector<32x128xbf16>
    tpu.vector_store %arg9[%c0_138, %c128_139], %310 {strides = array<i32>} : memref<32x256xbf16, #tpu.memory_space<vmem>>, vector<32x128xbf16>,
    %c0_140 = arith.constant 0 : index
    %c0_141 = arith.constant 0 : index
    %312 = vector.load %arg8[%c0_140, %c0_141] : memref<32x256xf32, #tpu.memory_space<vmem>>, vector<32x256xf32>
    %cst_142 = arith.constant dense<0.000000e+00> : vector<32x256xf32>
    %313 = tpu.matmul %1, %312, %cst_142 {dimension_numbers = #tpu.dot_dimension_numbers<[1], [0], [0], [1], [0, 0, 1, 1], [], []>} : vector<32x32xf32>, vector<32x256xf32>, vector<32x256xf32> -> vector<32x256xf32>
    %c0_143 = arith.constant 0 : index
    %c0_144 = arith.constant 0 : index
    %314 = vector.load %arg9[%c0_143, %c0_144] : memref<32x256xbf16, #tpu.memory_space<vmem>>, vector<32x256xbf16>
    %cst_145 = arith.constant dense<0.000000e+00> : vector<32x256xf32>
    %315 = tpu.matmul %0, %314, %cst_145 {dimension_numbers = #tpu.dot_dimension_numbers<[1], [0], [0], [1], [0, 0, 1, 1], [], []>} : vector<32x32xbf16>, vector<32x256xbf16>, vector<32x256xf32> -> vector<32x256xf32>
    %316 = vector.extract_strided_slice %313 {offsets = [0, 0], sizes = [32, 128], strides = [1, 1]} : vector<32x256xf32> to vector<32x128xf32>
    %317 = vector.extract_strided_slice %313 {offsets = [0, 128], sizes = [32, 128], strides = [1, 1]} : vector<32x256xf32> to vector<32x128xf32>
    %318 = vector.extract_strided_slice %315 {offsets = [0, 0], sizes = [32, 128], strides = [1, 1]} : vector<32x256xf32> to vector<32x128xf32>
    %319 = vector.extract_strided_slice %315 {offsets = [0, 128], sizes = [32, 128], strides = [1, 1]} : vector<32x256xf32> to vector<32x128xf32>
    %320 = arith.fptosi %318 : vector<32x128xf32> to vector<32x128xi32>
    %c1_i32_146 = arith.constant 1 : i32
    %321 = vector.broadcast %c1_i32_146 : i32 to vector<32x128xi32>
    %322 = arith.andi %320, %321 : vector<32x128xi32>
    %323 = arith.sitofp %322 : vector<32x128xi32> to vector<32x128xf32>
    %cst_147 = arith.constant 2.000000e+00 : f32
    %324 = vector.broadcast %cst_147 : f32 to vector<32x128xf32>
    %325 = arith.mulf %324, %323 : vector<32x128xf32>
    %cst_148 = arith.constant 1.000000e+00 : f32
    %326 = vector.broadcast %cst_148 : f32 to vector<32x128xf32>
    %327 = arith.subf %326, %325 : vector<32x128xf32>
    %cst_149 = arith.constant 5.000000e-01 : f32
    %328 = vector.broadcast %cst_149 : f32 to vector<32x128xf32>
    %329 = arith.cmpf ogt, %319, %328 : vector<32x128xf32>
    %330 = math.exp %317 : vector<32x128xf32>
    %331 = arith.mulf %327, %330 : vector<32x128xf32>
    %cst_150 = arith.constant 0.000000e+00 : f32
    %332 = vector.broadcast %cst_150 : f32 to vector<32x128xf32>
    %333 = arith.select %329, %332, %331 : vector<32x128xi1>, vector<32x128xf32>
    %c2_151 = arith.constant 2 : index
    %c0_152 = arith.constant 0 : index
    %c0_153 = arith.constant 0 : index
    %334 = vector.load %arg4[%c2_151, %c0_152, %c0_153] : memref<3x128x128xf32, #tpu.memory_space<vmem>>, vector<1x128x128xf32>
    %335 = vector.shape_cast %334 : vector<1x128x128xf32> to vector<128x128xf32>
    %cst_154 = arith.constant dense<0.000000e+00> : vector<32x128xf32>
    %336 = tpu.matmul %333, %335, %cst_154 {dimension_numbers = #tpu.dot_dimension_numbers<[1], [0], [0], [1], [0, 0, 1, 1], [], []>} : vector<32x128xf32>, vector<128x128xf32>, vector<32x128xf32> -> vector<32x128xf32>
    %c2_155 = arith.constant 2 : index
    %c0_156 = arith.constant 0 : index
    %c0_157 = arith.constant 0 : index
    %337 = vector.load %arg5[%c2_155, %c0_156, %c0_157] : memref<3x1x128xf32, #tpu.memory_space<vmem>>, vector<1x1x128xf32>
    %338 = vector.shape_cast %337 : vector<1x1x128xf32> to vector<1x128xf32>
    %339 = vector.broadcast %338 : vector<1x128xf32> to vector<32x128xf32>
    %340 = arith.addf %336, %339 : vector<32x128xf32>
    %341 = vector.extract_strided_slice %340 {offsets = [0, 8], sizes = [32, 1], strides = [1, 1]} : vector<32x128xf32> to vector<32x1xf32>
    %342 = arith.negf %341 : vector<32x1xf32>
    %343 = math.exp %342 : vector<32x1xf32>
    %cst_158 = arith.constant 1.000000e+00 : f32
    %344 = vector.broadcast %cst_158 : f32 to vector<32x1xf32>
    %345 = arith.addf %344, %343 : vector<32x1xf32>
    %346 = arith.divf %344, %345 : vector<32x1xf32>
    %347 = vector.extract_strided_slice %316 {offsets = [0, 8], sizes = [32, 1], strides = [1, 1]} : vector<32x128xf32> to vector<32x1xf32>
    %348 = arith.negf %347 : vector<32x1xf32>
    %349 = math.exp %348 : vector<32x1xf32>
    %cst_159 = arith.constant 1.000000e+00 : f32
    %350 = vector.broadcast %cst_159 : f32 to vector<32x1xf32>
    %351 = arith.addf %350, %349 : vector<32x1xf32>
    %352 = arith.divf %350, %351 : vector<32x1xf32>
    %353 = vector.extract_strided_slice %291 {offsets = [0, 8], sizes = [32, 1], strides = [1, 1]} : vector<32x128xf32> to vector<32x1xf32>
    %354 = arith.negf %353 : vector<32x1xf32>
    %355 = math.exp %354 : vector<32x1xf32>
    %cst_160 = arith.constant 1.000000e+00 : f32
    %356 = vector.broadcast %cst_160 : f32 to vector<32x1xf32>
    %357 = arith.addf %356, %355 : vector<32x1xf32>
    %358 = arith.divf %356, %357 : vector<32x1xf32>
    %c2_161 = arith.constant 2 : index
    %c0_162 = arith.constant 0 : index
    %359 = memref.load %arg6[%c2_161, %c0_162] : memref<3x9xf32, #tpu.memory_space<smem>>
    %360 = vector.broadcast %359 : f32 to vector<32x1xf32>
    %361 = arith.mulf %346, %360 : vector<32x1xf32>
    %c2_163 = arith.constant 2 : index
    %c1_164 = arith.constant 1 : index
    %362 = memref.load %arg6[%c2_163, %c1_164] : memref<3x9xf32, #tpu.memory_space<smem>>
    %363 = vector.broadcast %362 : f32 to vector<32x1xf32>
    %364 = arith.mulf %352, %363 : vector<32x1xf32>
    %365 = arith.addf %361, %364 : vector<32x1xf32>
    %c2_165 = arith.constant 2 : index
    %c2_166 = arith.constant 2 : index
    %366 = memref.load %arg6[%c2_165, %c2_166] : memref<3x9xf32, #tpu.memory_space<smem>>
    %367 = vector.broadcast %366 : f32 to vector<32x1xf32>
    %368 = arith.mulf %358, %367 : vector<32x1xf32>
    %369 = arith.addf %365, %368 : vector<32x1xf32>
    %c2_167 = arith.constant 2 : index
    %c3_168 = arith.constant 3 : index
    %370 = memref.load %arg6[%c2_167, %c3_168] : memref<3x9xf32, #tpu.memory_space<smem>>
    %371 = vector.broadcast %370 : f32 to vector<32x1xf32>
    %372 = arith.mulf %346, %371 : vector<32x1xf32>
    %c2_169 = arith.constant 2 : index
    %c4_170 = arith.constant 4 : index
    %373 = memref.load %arg6[%c2_169, %c4_170] : memref<3x9xf32, #tpu.memory_space<smem>>
    %374 = vector.broadcast %373 : f32 to vector<32x1xf32>
    %375 = arith.mulf %352, %374 : vector<32x1xf32>
    %376 = arith.addf %372, %375 : vector<32x1xf32>
    %c2_171 = arith.constant 2 : index
    %c5_172 = arith.constant 5 : index
    %377 = memref.load %arg6[%c2_171, %c5_172] : memref<3x9xf32, #tpu.memory_space<smem>>
    %378 = vector.broadcast %377 : f32 to vector<32x1xf32>
    %379 = arith.mulf %358, %378 : vector<32x1xf32>
    %380 = arith.addf %376, %379 : vector<32x1xf32>
    %c2_173 = arith.constant 2 : index
    %c6_174 = arith.constant 6 : index
    %381 = memref.load %arg6[%c2_173, %c6_174] : memref<3x9xf32, #tpu.memory_space<smem>>
    %382 = vector.broadcast %381 : f32 to vector<32x1xf32>
    %383 = arith.mulf %346, %382 : vector<32x1xf32>
    %c2_175 = arith.constant 2 : index
    %c7_176 = arith.constant 7 : index
    %384 = memref.load %arg6[%c2_175, %c7_176] : memref<3x9xf32, #tpu.memory_space<smem>>
    %385 = vector.broadcast %384 : f32 to vector<32x1xf32>
    %386 = arith.mulf %352, %385 : vector<32x1xf32>
    %387 = arith.addf %383, %386 : vector<32x1xf32>
    %c2_177 = arith.constant 2 : index
    %c8_178 = arith.constant 8 : index
    %388 = memref.load %arg6[%c2_177, %c8_178] : memref<3x9xf32, #tpu.memory_space<smem>>
    %389 = vector.broadcast %388 : f32 to vector<32x1xf32>
    %390 = arith.mulf %358, %389 : vector<32x1xf32>
    %391 = arith.addf %387, %390 : vector<32x1xf32>
    %392 = arith.maximumf %369, %380 : vector<32x1xf32>
    %393 = arith.maximumf %392, %391 : vector<32x1xf32>
    %394 = arith.subf %369, %393 : vector<32x1xf32>
    %395 = math.exp %394 : vector<32x1xf32>
    %396 = arith.subf %380, %393 : vector<32x1xf32>
    %397 = math.exp %396 : vector<32x1xf32>
    %398 = arith.subf %391, %393 : vector<32x1xf32>
    %399 = math.exp %398 : vector<32x1xf32>
    %400 = arith.addf %395, %397 : vector<32x1xf32>
    %401 = arith.addf %400, %399 : vector<32x1xf32>
    %402 = tpu.reciprocal %401 {approx = true} : vector<32x1xf32> -> vector<32x1xf32>
    %403 = arith.mulf %401, %402 : vector<32x1xf32>
    %cst_179 = arith.constant 2.000000e+00 : f32
    %404 = vector.broadcast %cst_179 : f32 to vector<32x1xf32>
    %405 = arith.subf %404, %403 : vector<32x1xf32>
    %406 = arith.mulf %402, %405 : vector<32x1xf32>
    %407 = arith.mulf %395, %406 : vector<32x1xf32>
    %408 = vector.broadcast %407 : vector<32x1xf32> to vector<32x128xf32>
    %409 = arith.mulf %408, %340 : vector<32x128xf32>
    %410 = arith.mulf %397, %406 : vector<32x1xf32>
    %411 = vector.broadcast %410 : vector<32x1xf32> to vector<32x128xf32>
    %412 = arith.mulf %411, %316 : vector<32x128xf32>
    %413 = arith.addf %409, %412 : vector<32x128xf32>
    %414 = arith.mulf %399, %406 : vector<32x1xf32>
    %415 = vector.broadcast %414 : vector<32x1xf32> to vector<32x128xf32>
    %416 = arith.mulf %415, %291 : vector<32x128xf32>
    %417 = arith.addf %413, %416 : vector<32x128xf32>
    %c0_180 = arith.constant 0 : index
    %c0_181 = arith.constant 0 : index
    %418 = vector.load %arg7[%c0_180, %c0_181] : memref<32x128xf32, #tpu.memory_space<vmem>>, vector<32x128xf32>
    tpu.vector_store %arg7[%c0_180, %c0_181], %417 {strides = array<i32>} : memref<32x128xf32, #tpu.memory_space<vmem>>, vector<32x128xf32>,
    return
  }
}

</mosaic_0001>

<llo_original>
// kernel: tpu_custom_call.1
$region0: #{tpu_custom_call.1}
  #allocation0 [shape = 'u32[]', space=smem, size = 0x4, offset = 0x4, fixed_abs, tag = 'smem constant byte address 0x4 - core index']
  #allocation1 [shape = 'u32[72,128]{1,0:T(1,128)}', space=vmem, size = 0x9000, scoped, tag = 'internal scratch']
  #allocation2 [shape = 'f32[32,256]{1,0:T(8,128)}', space=vmem, size = 0x8000, scoped, tag = 'scratch operand']
  #allocation3 [shape = 'bf16[32,256]{1,0:T(8,128)(2,1)}', space=vmem, size = 0x4000, scoped, tag = 'scratch operand']
  %s0 = inlined_call_operand.hbm [shape: f32[32,128], index: 0, kind: input, shape index: {}]
  %s1 = inlined_call_operand.hbm [shape: bf16[32,32], index: 1, kind: input, shape index: {}]
  %s2 = inlined_call_operand.hbm [shape: f32[3,128,384], index: 2, kind: input, shape index: {}]
  %s3 = inlined_call_operand.hbm [shape: f32[3,1,384], index: 3, kind: input, shape index: {}]
  %s4 = inlined_call_operand.hbm [shape: f32[3,128,128], index: 4, kind: input, shape index: {}]
  %s5 = inlined_call_operand.hbm [shape: f32[3,1,128], index: 5, kind: input, shape index: {}]
  %s6 = inlined_call_operand.vmem [shape: f32[3,9], index: 6, kind: input, shape index: {}]
  %s7 = inlined_call_operand.hbm [shape: f32[32,128], index: 7, kind: output, shape index: {}]
  %s8 = sld [smem:[#allocation0]]
  $region66: #{tpu_custom_call.1} parent=0
    _
  %s10 = ssub.s32 1, %s8
  %s11 = scalar_select 0, %s10, %s8
  $region1: #{tpu_custom_call.1} parent=0
    #allocation4 [shape = 'u8[16384]{0}', space=vmem, size = 0x4000, scoped, tag = 'input window, operand 0, single buffered']
    #allocation5 [shape = 's32[1]{0}', space=sflag, size = 0x4, scoped, tag = 'scoped memory for tpu_custom_call.1']
    #allocation6 [shape = 's32[1]{0}', space=sflag, size = 0x4, scoped, tag = 'scoped memory for tpu_custom_call.1']
    #allocation7 [shape = 's32[1]{0}', space=sflag, size = 0x4, scoped, tag = 'scoped memory for tpu_custom_call.1']
    #allocation8 [shape = 'u8[8192]{0}', space=vmem, size = 0x2000, scoped, tag = 'input window, operand 1, single buffered']
    #allocation9 [shape = 's32[1]{0}', space=sflag, size = 0x4, scoped, tag = 'scoped memory for tpu_custom_call.1']
    #allocation10 [shape = 'u8[589824]{0}', space=vmem, size = 0x90000, scoped, tag = 'input window, operand 2, single buffered']
    #allocation11 [shape = 'u8[4608]{0}', space=vmem, size = 0x1400, scoped, tag = 'input window, operand 3, single buffered']
    #allocation12 [shape = 's32[1]{0}', space=sflag, size = 0x4, scoped, tag = 'scoped memory for tpu_custom_call.1']
    #allocation13 [shape = 'u8[196608]{0}', space=vmem, size = 0x30000, scoped, tag = 'input window, operand 4, single buffered']
    #allocation14 [shape = 'u8[1536]{0}', space=vmem, size = 0x800, scoped, tag = 'input window, operand 5, single buffered']
    #allocation15 [shape = 's32[1]{0}', space=sflag, size = 0x4, scoped, tag = 'scoped memory for tpu_custom_call.1']
    #allocation16 [shape = 'u8[2048]{0}', space=smem, size = 0x800, scoped, tag = 'input window, operand 6, single buffered']
    #allocation17 [shape = 'u8[16384]{0}', space=vmem, size = 0x4000, scoped, tag = 'output window, operand 0, single buffered']
    %12 = vsyncpa [#allocation5], 0
    %13 = vsyncpa [#allocation9], 0
    %14 = vsyncpa [#allocation12], 0
    %15 = vsyncpa [#allocation15], 0
    %16 = vsyncpa [#allocation7], 0
    %17 = vsyncpa [#allocation6], 0
    // Predicated region
    $region2: #{tpu_custom_call.1} parent=1 // pred_check
      _
    $region3: #{tpu_custom_call.1} parent=1 // pred_check_branch
      %19 = sbr.rel (0) target = $region5
    $region4: #{tpu_custom_call.1} parent=1 // pred_region
      %21 = vsyncadd [#allocation5], 0
      %s22 = sshll.u32 %s0, 4
      %s23 = int_to_ptr.hbm [resolvable:$true] %s22
      %s24 = sshll.u32 [#allocation4], 4
      %s25 = int_to_ptr.vmem [resolvable:$true] %s24
      %30 = dma.hbm_to_vmem [thread:$0]  %s23, 512, %s25, [#allocation5], 128, 128, 8
    $region5: #{tpu_custom_call.1} parent=1 // pred_fallthru
      _
    // Predicated region
    $region6: #{tpu_custom_call.1} parent=1 // pred_check
      _
    $region7: #{tpu_custom_call.1} parent=1 // pred_check_branch
      %32 = sbr.rel (0) target = $region9
    $region8: #{tpu_custom_call.1} parent=1 // pred_region
      %34 = vsyncadd [#allocation9], 0
      %s35 = sshll.u32 %s1, 4
      %s36 = int_to_ptr.hbm [resolvable:$true] %s35
      %s37 = sshll.u32 [#allocation8], 4
      %s38 = int_to_ptr.vmem [resolvable:$true] %s37
      %43 = dma.hbm_to_vmem [thread:$0]  %s36, 256, %s38, [#allocation9], 64, 64, 4
    $region9: #{tpu_custom_call.1} parent=1 // pred_fallthru
      _
    // Predicated region
    $region10: #{tpu_custom_call.1} parent=1 // pred_check
      _
    $region11: #{tpu_custom_call.1} parent=1 // pred_check_branch
      %45 = sbr.rel (0) target = $region13
    $region12: #{tpu_custom_call.1} parent=1 // pred_region
      %47 = vsyncadd [#allocation9], 0
      %s48 = sshll.u32 %s2, 4
      %s49 = int_to_ptr.hbm [resolvable:$true] %s48
      %s50 = sshll.u32 [#allocation10], 4
      %s51 = int_to_ptr.vmem [resolvable:$true] %s50
      %56 = dma.hbm_to_vmem [thread:$0]  %s49, 18432, %s51, [#allocation9], 384, 384, 24
    $region13: #{tpu_custom_call.1} parent=1 // pred_fallthru
      _
    // Predicated region
    $region14: #{tpu_custom_call.1} parent=1 // pred_check
      _
    $region15: #{tpu_custom_call.1} parent=1 // pred_check_branch
      %58 = sbr.rel (0) target = $region17
    $region16: #{tpu_custom_call.1} parent=1 // pred_region
      %60 = vsyncadd [#allocation12], 0
      %s61 = sshll.u32 %s3, 4
      %s62 = int_to_ptr.hbm [resolvable:$true] %s61
      %s63 = sshll.u32 [#allocation11], 4
      %s64 = int_to_ptr.vmem [resolvable:$true] %s63
      %69 = dma.hbm_to_vmem [thread:$0]  %s62, 144, %s64, [#allocation12], 48, 48, 3
    $region17: #{tpu_custom_call.1} parent=1 // pred_fallthru
      _
    // Predicated region
    $region18: #{tpu_custom_call.1} parent=1 // pred_check
      _
    $region19: #{tpu_custom_call.1} parent=1 // pred_check_branch
      %71 = sbr.rel (0) target = $region21
    $region20: #{tpu_custom_call.1} parent=1 // pred_region
      %73 = vsyncadd [#allocation12], 0
      %s74 = sshll.u32 %s4, 4
      %s75 = int_to_ptr.hbm [resolvable:$true] %s74
      %s76 = sshll.u32 [#allocation13], 4
      %s77 = int_to_ptr.vmem [resolvable:$true] %s76
      %82 = dma.hbm_to_vmem [thread:$0]  %s75, 6144, %s77, [#allocation12], 128, 128, 8
    $region21: #{tpu_custom_call.1} parent=1 // pred_fallthru
      _
    // Predicated region
    $region22: #{tpu_custom_call.1} parent=1 // pred_check
      _
    $region23: #{tpu_custom_call.1} parent=1 // pred_check_branch
      %84 = sbr.rel (0) target = $region25
    $region24: #{tpu_custom_call.1} parent=1 // pred_region
      %86 = vsyncadd [#allocation15], 0
      %s87 = sshll.u32 %s5, 4
      %s88 = int_to_ptr.hbm [resolvable:$true] %s87
      %s89 = sshll.u32 [#allocation14], 4
      %s90 = int_to_ptr.vmem [resolvable:$true] %s89
      %95 = dma.hbm_to_vmem [thread:$0]  %s88, 48, %s90, [#allocation15], 16, 16, 1
    $region25: #{tpu_custom_call.1} parent=1 // pred_fallthru
      _
    // Predicated region
    $region26: #{tpu_custom_call.1} parent=1 // pred_check
      _
    $region27: #{tpu_custom_call.1} parent=1 // pred_check_branch
      %97 = sbr.rel (0) target = $region29
    $region28: #{tpu_custom_call.1} parent=1 // pred_region
      %99 = vsyncadd [#allocation7], 0
      %s101 = sshll.u32 %s6, 4
      %s102 = int_to_ptr.vmem [resolvable:$true] %s101
      %104 = dma.vmem_to_smem %s102, 64, [#allocation16], [#allocation7]
    $region29: #{tpu_custom_call.1} parent=1 // pred_fallthru
      _
    // Predicated region
    $region30: #{tpu_custom_call.1} parent=1 // pred_check
      _
    $region31: #{tpu_custom_call.1} parent=1 // pred_check_branch
      %106 = sbr.rel (0) target = $region33
    $region32: #{tpu_custom_call.1} parent=1 // pred_region
      %108 = dma.done [#allocation5], 512
    $region33: #{tpu_custom_call.1} parent=1 // pred_fallthru
      _
    // Predicated region
    $region34: #{tpu_custom_call.1} parent=1 // pred_check
      _
    $region35: #{tpu_custom_call.1} parent=1 // pred_check_branch
      %110 = sbr.rel (0) target = $region37
    $region36: #{tpu_custom_call.1} parent=1 // pred_region
      %112 = dma.done [#allocation9], 256
    $region37: #{tpu_custom_call.1} parent=1 // pred_fallthru
      _
    // Predicated region
    $region38: #{tpu_custom_call.1} parent=1 // pred_check
      _
    $region39: #{tpu_custom_call.1} parent=1 // pred_check_branch
      %114 = sbr.rel (0) target = $region41
    $region40: #{tpu_custom_call.1} parent=1 // pred_region
      %116 = dma.done [#allocation9], 18432
    $region41: #{tpu_custom_call.1} parent=1 // pred_fallthru
      _
    // Predicated region
    $region42: #{tpu_custom_call.1} parent=1 // pred_check
      _
    $region43: #{tpu_custom_call.1} parent=1 // pred_check_branch
      %118 = sbr.rel (0) target = $region45
    $region44: #{tpu_custom_call.1} parent=1 // pred_region
      %120 = dma.done [#allocation12], 144
    $region45: #{tpu_custom_call.1} parent=1 // pred_fallthru
      _
    // Predicated region
    $region46: #{tpu_custom_call.1} parent=1 // pred_check
      _
    $region47: #{tpu_custom_call.1} parent=1 // pred_check_branch
      %122 = sbr.rel (0) target = $region49
    $region48: #{tpu_custom_call.1} parent=1 // pred_region
      %124 = dma.done [#allocation12], 6144
    $region49: #{tpu_custom_call.1} parent=1 // pred_fallthru
      _
    // Predicated region
    $region50: #{tpu_custom_call.1} parent=1 // pred_check
      _
    $region51: #{tpu_custom_call.1} parent=1 // pred_check_branch
      %126 = sbr.rel (0) target = $region53
    $region52: #{tpu_custom_call.1} parent=1 // pred_region
      %128 = dma.done [#allocation15], 48
    $region53: #{tpu_custom_call.1} parent=1 // pred_fallthru
      _
    // Predicated region
    $region54: #{tpu_custom_call.1} parent=1 // pred_check
      _
    $region55: #{tpu_custom_call.1} parent=1 // pred_check_branch
      %130 = sbr.rel (0) target = $region57
    $region56: #{tpu_custom_call.1} parent=1 // pred_region
      %132 = dma.done [#allocation7], 64
    $region57: #{tpu_custom_call.1} parent=1 // pred_fallthru
      _
    %133 = sfence
    %v135 = vld [vmem:[#allocation8] sm:$0xf]
    %v136 = vld [vmem:[#allocation8 + $0x4] sm:$0xf]
    %v137 = vld [vmem:[#allocation8 + $0x8] sm:$0xf]
    %v138 = vld [vmem:[#allocation8 + $0xc] sm:$0xf]
    %v139 = vunpack.c.l.bf16 %v135
    %v140 = vunpack.c.l.bf16 %v136
    %v141 = vunpack.c.l.bf16 %v137
    %v142 = vunpack.c.l.bf16 %v138
    %v143 = vld [vmem:[#allocation4] sm:$0xff]
    %v144 = vld [vmem:[#allocation4 + $0x8] sm:$0xff]
    %v145 = vld [vmem:[#allocation4 + $0x10] sm:$0xff]
    %v146 = vld [vmem:[#allocation4 + $0x18] sm:$0xff]
    %v147 = vld [vmem:[#allocation10] sm:$0xff]
    %v148 = vld [vmem:[#allocation10 + $0x8] sm:$0xff]
    %v149 = vld [vmem:[#allocation10 + $0x10] sm:$0xff]
    %v150 = vld [vmem:[#allocation10 + $0x18] sm:$0xff]
    %v151 = vld [vmem:[#allocation10 + $0x20] sm:$0xff]
    %v152 = vld [vmem:[#allocation10 + $0x28] sm:$0xff]
    %v153 = vld [vmem:[#allocation10 + $0x30] sm:$0xff]
    %v154 = vld [vmem:[#allocation10 + $0x38] sm:$0xff]
    %v155 = vld [vmem:[#allocation10 + $0x40] sm:$0xff]
    %v156 = vld [vmem:[#allocation10 + $0x48] sm:$0xff]
    %v157 = vld [vmem:[#allocation10 + $0x50] sm:$0xff]
    %v158 = vld [vmem:[#allocation10 + $0x58] sm:$0xff]
    %v159 = vld [vmem:[#allocation10 + $0x60] sm:$0xff]
    %v160 = vld [vmem:[#allocation10 + $0x68] sm:$0xff]
    %v161 = vld [vmem:[#allocation10 + $0x70] sm:$0xff]
    %v162 = vld [vmem:[#allocation10 + $0x78] sm:$0xff]
    %v163 = vld [vmem:[#allocation10 + $0x80] sm:$0xff]
    %v164 = vld [vmem:[#allocation10 + $0x88] sm:$0xff]
    %v165 = vld [vmem:[#allocation10 + $0x90] sm:$0xff]
    %v166 = vld [vmem:[#allocation10 + $0x98] sm:$0xff]
    %v167 = vld [vmem:[#allocation10 + $0xa0] sm:$0xff]
    %v168 = vld [vmem:[#allocation10 + $0xa8] sm:$0xff]
    %v169 = vld [vmem:[#allocation10 + $0xb0] sm:$0xff]
    %v170 = vld [vmem:[#allocation10 + $0xb8] sm:$0xff]
    %v171 = vld [vmem:[#allocation10 + $0xc0] sm:$0xff]
    %v172 = vld [vmem:[#allocation10 + $0xc8] sm:$0xff]
    %v173 = vld [vmem:[#allocation10 + $0xd0] sm:$0xff]
    %v174 = vld [vmem:[#allocation10 + $0xd8] sm:$0xff]
    %v175 = vld [vmem:[#allocation10 + $0xe0] sm:$0xff]
    %v176 = vld [vmem:[#allocation10 + $0xe8] sm:$0xff]
    %v177 = vld [vmem:[#allocation10 + $0xf0] sm:$0xff]
    %v178 = vld [vmem:[#allocation10 + $0xf8] sm:$0xff]
    %v179 = vld [vmem:[#allocation10 + $0x100] sm:$0xff]
    %v180 = vld [vmem:[#allocation10 + $0x108] sm:$0xff]
    %v181 = vld [vmem:[#allocation10 + $0x110] sm:$0xff]
    %v182 = vld [vmem:[#allocation10 + $0x118] sm:$0xff]
    %v183 = vld [vmem:[#allocation10 + $0x120] sm:$0xff]
    %v184 = vld [vmem:[#allocation10 + $0x128] sm:$0xff]
    %v185 = vld [vmem:[#allocation10 + $0x130] sm:$0xff]
    %v186 = vld [vmem:[#allocation10 + $0x138] sm:$0xff]
    %v187 = vld [vmem:[#allocation10 + $0x140] sm:$0xff]
    %v188 = vld [vmem:[#allocation10 + $0x148] sm:$0xff]
    %v189 = vld [vmem:[#allocation10 + $0x150] sm:$0xff]
    %v190 = vld [vmem:[#allocation10 + $0x158] sm:$0xff]
    %v191 = vld [vmem:[#allocation10 + $0x160] sm:$0xff]
    %v192 = vld [vmem:[#allocation10 + $0x168] sm:$0xff]
    %v193 = vld [vmem:[#allocation10 + $0x170] sm:$0xff]
    %v194 = vld [vmem:[#allocation10 + $0x178] sm:$0xff]
    %v195 = vld [vmem:[#allocation11] sm:$0x7]
    %v197 = vperm.slane %v195, 0
    %v198 = vperm.slane %v195, 1
    %v199 = vperm.slane %v195, 2
    %203 = vmatpush.msra.mxu0 %v192
    %204 = vmatpush.msra.mxu0 %v189
    %205 = vmatpush.msra.mxu0 %v186
    %206 = vmatpush.msra.mxu0 %v183
    %207 = vmatpush.msra.mxu0 %v180
    %208 = vmatpush.msra.mxu0 %v177
    %209 = vmatpush.msra.mxu0 %v174
    %210 = vmatpush.msra.mxu0 %v171
    %211 = vmatpush.msra.mxu0 %v168
    %212 = vmatpush.msra.mxu0 %v165
    %213 = vmatpush.msra.mxu0 %v162
    %214 = vmatpush.msra.mxu0 %v159
    %215 = vmatpush.msra.mxu0 %v156
    %216 = vmatpush.msra.mxu0 %v153
    %217 = vmatpush.msra.mxu0 %v150
    %218 = vmatpush.msra.mxu0 %v147
    %219 = vmatmul.f32.gmra.mxu0 %v143
    %v220 = vpop.f32.mrf.mxu0
    %v221 = vadd.f32 %v197, %v220
    %222 = vmatmul.f32.gmra.mxu0 %v144
    %v223 = vpop.f32.mrf.mxu0
    %v224 = vadd.f32 %v197, %v223
    %225 = vmatmul.f32.gmra.mxu0 %v145
    %v226 = vpop.f32.mrf.mxu0
    %v227 = vadd.f32 %v197, %v226
    %228 = vmatmul.f32.gmra.mxu0 %v146
    %v229 = vpop.f32.mrf.mxu0
    %v230 = vadd.f32 %v197, %v229
    %231 = vdwg.mxu0
    %232 = vmatpush.msra.mxu0 %v193
    %233 = vmatpush.msra.mxu0 %v190
    %234 = vmatpush.msra.mxu0 %v187
    %235 = vmatpush.msra.mxu0 %v184
    %236 = vmatpush.msra.mxu0 %v181
    %237 = vmatpush.msra.mxu0 %v178
    %238 = vmatpush.msra.mxu0 %v175
    %239 = vmatpush.msra.mxu0 %v172
    %240 = vmatpush.msra.mxu0 %v169
    %241 = vmatpush.msra.mxu0 %v166
    %242 = vmatpush.msra.mxu0 %v163
    %243 = vmatpush.msra.mxu0 %v160
    %244 = vmatpush.msra.mxu0 %v157
    %245 = vmatpush.msra.mxu0 %v154
    %246 = vmatpush.msra.mxu0 %v151
    %247 = vmatpush.msra.mxu0 %v148
    %248 = vmatmul.f32.gmra.mxu0 %v143
    %v249 = vpop.f32.mrf.mxu0
    %v250 = vadd.f32 %v198, %v249
    %251 = vmatmul.f32.gmra.mxu0 %v144
    %v252 = vpop.f32.mrf.mxu0
    %v253 = vadd.f32 %v198, %v252
    %254 = vmatmul.f32.gmra.mxu0 %v145
    %v255 = vpop.f32.mrf.mxu0
    %v256 = vadd.f32 %v198, %v255
    %257 = vmatmul.f32.gmra.mxu0 %v146
    %v258 = vpop.f32.mrf.mxu0
    %v259 = vadd.f32 %v198, %v258
    %260 = vdwg.mxu0
    %261 = vmatpush.msra.mxu0 %v194
    %262 = vmatpush.msra.mxu0 %v191
    %263 = vmatpush.msra.mxu0 %v188
    %264 = vmatpush.msra.mxu0 %v185
    %265 = vmatpush.msra.mxu0 %v182
    %266 = vmatpush.msra.mxu0 %v179
    %267 = vmatpush.msra.mxu0 %v176
    %268 = vmatpush.msra.mxu0 %v173
    %269 = vmatpush.msra.mxu0 %v170
    %270 = vmatpush.msra.mxu0 %v167
    %271 = vmatpush.msra.mxu0 %v164
    %272 = vmatpush.msra.mxu0 %v161
    %273 = vmatpush.msra.mxu0 %v158
    %274 = vmatpush.msra.mxu0 %v155
    %275 = vmatpush.msra.mxu0 %v152
    %276 = vmatpush.msra.mxu0 %v149
    %277 = vmatmul.f32.gmra.mxu0 %v143
    %v278 = vpop.f32.mrf.mxu0
    %v279 = vadd.f32 %v199, %v278
    %280 = vmatmul.f32.gmra.mxu0 %v144
    %v281 = vpop.f32.mrf.mxu0
    %v282 = vadd.f32 %v199, %v281
    %283 = vmatmul.f32.gmra.mxu0 %v145
    %v284 = vpop.f32.mrf.mxu0
    %v285 = vadd.f32 %v199, %v284
    %286 = vmatmul.f32.gmra.mxu0 %v146
    %v287 = vpop.f32.mrf.mxu0
    %v288 = vadd.f32 %v199, %v287
    %289 = vdwg.mxu0
    %v290 = vtanh.pop %v250
    %v291 = vtanh.pop %v253
    %v292 = vtanh.pop %v256
    %v293 = vtanh.pop %v259
    %vm294 = vcmp.eq.f32.partialorder %v290, 0.0
    %vm295 = vcmp.eq.f32.partialorder %v291, 0.0
    %vm296 = vcmp.eq.f32.partialorder %v292, 0.0
    %vm297 = vcmp.eq.f32.partialorder %v293, 0.0
    %v298 = vand.u32 2147483647, %v290
    %v299 = vand.u32 2147483647, %v291
    %v300 = vand.u32 2147483647, %v292
    %v301 = vand.u32 2147483647, %v293
    %v302 = vsel %vm294, 1.0, %v298
    %v303 = vsel %vm295, 1.0, %v299
    %v304 = vsel %vm296, 1.0, %v300
    %v305 = vsel %vm297, 1.0, %v301
    %v306 = vlog2.pop %v302
    %v307 = vmul.f32 %v306, 0.6931472
    %v308 = vlog2.pop %v303
    %v309 = vmul.f32 %v308, 0.6931472
    %v310 = vlog2.pop %v304
    %v311 = vmul.f32 %v310, 0.6931472
    %v312 = vlog2.pop %v305
    %v313 = vmul.f32 %v312, 0.6931472
    %314 = vst [vmem:[#allocation2] sm:$0xff] %v221
    %315 = vst [vmem:[#allocation2 + $0x10] sm:$0xff] %v224
    %316 = vst [vmem:[#allocation2 + $0x20] sm:$0xff] %v227
    %317 = vst [vmem:[#allocation2 + $0x30] sm:$0xff] %v230
    %318 = vst [vmem:[#allocation2 + $0x8] sm:$0xff] %v307
    %319 = vst [vmem:[#allocation2 + $0x18] sm:$0xff] %v309
    %320 = vst [vmem:[#allocation2 + $0x28] sm:$0xff] %v311
    %321 = vst [vmem:[#allocation2 + $0x38] sm:$0xff] %v313
    %vm322 = vcmp.lt.f32.partialorder %v290, 0.0
    %vm323 = vcmp.lt.f32.partialorder %v291, 0.0
    %vm324 = vcmp.lt.f32.partialorder %v292, 0.0
    %vm325 = vcmp.lt.f32.partialorder %v293, 0.0
    %v326 = vsel %vm322, 1.0, 0.0
    %v327 = vsel %vm323, 1.0, 0.0
    %v328 = vsel %vm324, 1.0, 0.0
    %v329 = vsel %vm325, 1.0, 0.0
    %v330 = vpack.c.bf16 %v326, %v326
    %v331 = vpack.c.bf16 %v327, %v327
    %v332 = vpack.c.bf16 %v328, %v328
    %v333 = vpack.c.bf16 %v329, %v329
    %334 = vst [vmem:[#allocation3] sm:$0xf] %v330
    %335 = vst [vmem:[#allocation3 + $0x8] sm:$0xf] %v331
    %336 = vst [vmem:[#allocation3 + $0x10] sm:$0xf] %v332
    %337 = vst [vmem:[#allocation3 + $0x18] sm:$0xf] %v333
    %v338 = vsel %vm294, 1.0, 0.0
    %v339 = vsel %vm295, 1.0, 0.0
    %v340 = vsel %vm296, 1.0, 0.0
    %v341 = vsel %vm297, 1.0, 0.0
    %v342 = vpack.c.bf16 %v338, %v338
    %v343 = vpack.c.bf16 %v339, %v339
    %v344 = vpack.c.bf16 %v340, %v340
    %v345 = vpack.c.bf16 %v341, %v341
    %346 = vst [vmem:[#allocation3 + $0x4] sm:$0xf] %v342
    %347 = vst [vmem:[#allocation3 + $0xc] sm:$0xf] %v343
    %348 = vst [vmem:[#allocation3 + $0x14] sm:$0xf] %v344
    %349 = vst [vmem:[#allocation3 + $0x1c] sm:$0xf] %v345
    %v350 = vld [vmem:[#allocation2] sm:$0xff]
    %v351 = vld [vmem:[#allocation2 + $0x8] sm:$0xff]
    %v352 = vld [vmem:[#allocation2 + $0x10] sm:$0xff]
    %v353 = vld [vmem:[#allocation2 + $0x18] sm:$0xff]
    %v354 = vld [vmem:[#allocation2 + $0x20] sm:$0xff]
    %v355 = vld [vmem:[#allocation2 + $0x28] sm:$0xff]
    %v356 = vld [vmem:[#allocation2 + $0x30] sm:$0xff]
    %v357 = vld [vmem:[#allocation2 + $0x38] sm:$0xff]
    %vm358 = vcmask 261120
    %v360 = vsel %vm358, %v139, 0
    %v363 = vsel %vm358, %v140, 0
    %v366 = vsel %vm358, %v141, 0
    %v369 = vsel %vm358, %v142, 0
    %371 = vmatpush.msra.mxu0 0.0
    %372 = vmatpush.msra.mxu0 0.0
    %373 = vmatpush.msra.mxu0 0.0
    %374 = vmatpush.msra.mxu0 0.0
    %375 = vmatpush.msra.mxu0 0.0
    %376 = vmatpush.msra.mxu0 0.0
    %377 = vmatpush.msra.mxu0 0.0
    %378 = vmatpush.msra.mxu0 0.0
    %379 = vmatpush.msra.mxu0 0.0
    %380 = vmatpush.msra.mxu0 0.0
    %381 = vmatpush.msra.mxu0 0.0
    %382 = vmatpush.msra.mxu0 0.0
    %383 = vmatpush.msra.mxu0 %v356
    %384 = vmatpush.msra.mxu0 %v354
    %385 = vmatpush.msra.mxu0 %v352
    %386 = vmatpush.msra.mxu0 %v350
    %387 = vmatmul.f32.gmra.mxu0 %v360
    %v388 = vpop.f32.mrf.mxu0
    %v389 = vadd.f32 0.0, %v388
    %390 = vmatmul.f32.gmra.mxu0 %v363
    %v391 = vpop.f32.mrf.mxu0
    %v392 = vadd.f32 0.0, %v391
    %393 = vmatmul.f32.gmra.mxu0 %v366
    %v394 = vpop.f32.mrf.mxu0
    %v395 = vadd.f32 0.0, %v394
    %396 = vmatmul.f32.gmra.mxu0 %v369
    %v397 = vpop.f32.mrf.mxu0
    %v398 = vadd.f32 0.0, %v397
    %399 = vdwg.mxu0
    %400 = vmatpush.msra.mxu0 0.0
    %401 = vmatpush.msra.mxu0 0.0
    %402 = vmatpush.msra.mxu0 0.0
    %403 = vmatpush.msra.mxu0 0.0
    %404 = vmatpush.msra.mxu0 0.0
    %405 = vmatpush.msra.mxu0 0.0
    %406 = vmatpush.msra.mxu0 0.0
    %407 = vmatpush.msra.mxu0 0.0
    %408 = vmatpush.msra.mxu0 0.0
    %409 = vmatpush.msra.mxu0 0.0
    %410 = vmatpush.msra.mxu0 0.0
    %411 = vmatpush.msra.mxu0 0.0
    %412 = vmatpush.msra.mxu0 %v357
    %413 = vmatpush.msra.mxu0 %v355
    %414 = vmatpush.msra.mxu0 %v353
    %415 = vmatpush.msra.mxu0 %v351
    %416 = vmatmul.f32.gmra.mxu0 %v360
    %v417 = vpop.f32.mrf.mxu0
    %v418 = vadd.f32 0.0, %v417
    %419 = vmatmul.f32.gmra.mxu0 %v363
    %v420 = vpop.f32.mrf.mxu0
    %v421 = vadd.f32 0.0, %v420
    %422 = vmatmul.f32.gmra.mxu0 %v366
    %v423 = vpop.f32.mrf.mxu0
    %v424 = vadd.f32 0.0, %v423
    %425 = vmatmul.f32.gmra.mxu0 %v369
    %v426 = vpop.f32.mrf.mxu0
    %v427 = vadd.f32 0.0, %v426
    %428 = vdwg.mxu0
    %v429 = vld [vmem:[#allocation3] sm:$0xff]
    %v430 = vld [vmem:[#allocation3 + $0x8] sm:$0xff]
    %v431 = vld [vmem:[#allocation3 + $0x10] sm:$0xff]
    %v432 = vld [vmem:[#allocation3 + $0x18] sm:$0xff]
    %v437 = vunpack.c.l.b16 %v135
    %v438 = vunpack.c.l.b16 %v136
    %v439 = vunpack.c.l.b16 %v137
    %v440 = vunpack.c.l.b16 %v138
    %v441 = vpack.c.b16 %v438, %v437
    %v442 = vpack.c.b16 %v440, %v439
    %v447 = vunpack.c.l.b16 %v429
    %v448 = vunpack.c.h.b16 %v429
    %v449 = vunpack.c.l.b16 %v430
    %v450 = vunpack.c.h.b16 %v430
    %v451 = vunpack.c.l.b16 %v431
    %v452 = vunpack.c.h.b16 %v431
    %v453 = vunpack.c.l.b16 %v432
    %v454 = vunpack.c.h.b16 %v432
    %v455 = vpack.c.b16 %v449, %v447
    %v456 = vpack.c.b16 %v450, %v448
    %v457 = vpack.c.b16 %v453, %v451
    %v458 = vpack.c.b16 %v454, %v452
    %v464 = vsel %vm358, %v441, 0
    %v467 = vsel %vm358, %v442, 0
    %469 = vmatpush.bf16.msra.mxu0 0
    %470 = vmatpush.bf16.msra.mxu0 0
    %471 = vmatpush.bf16.msra.mxu0 0
    %472 = vmatpush.bf16.msra.mxu0 0
    %473 = vmatpush.bf16.msra.mxu0 0
    %474 = vmatpush.bf16.msra.mxu0 0
    %475 = vmatpush.bf16.msra.mxu0 %v457
    %476 = vmatpush.bf16.msra.mxu0 %v455
    %477 = vmatmul.bf16.gmra.mxu0 %v464
    %v478 = vpop.f32.mrf.mxu0
    %v479 = vadd.f32 0.0, %v478
    %v480 = vpop.f32.mrf.mxu0
    %v481 = vadd.f32 0.0, %v480
    %482 = vmatmul.bf16.gmra.mxu0 %v467
    %v483 = vpop.f32.mrf.mxu0
    %v484 = vadd.f32 0.0, %v483
    %v485 = vpop.f32.mrf.mxu0
    %v486 = vadd.f32 0.0, %v485
    %487 = vdwg.mxu0
    %488 = vmatpush.bf16.msra.mxu0 0
    %489 = vmatpush.bf16.msra.mxu0 0
    %490 = vmatpush.bf16.msra.mxu0 0
    %491 = vmatpush.bf16.msra.mxu0 0
    %492 = vmatpush.bf16.msra.mxu0 0
    %493 = vmatpush.bf16.msra.mxu0 0
    %494 = vmatpush.bf16.msra.mxu0 %v458
    %495 = vmatpush.bf16.msra.mxu0 %v456
    %496 = vmatmul.bf16.gmra.mxu0 %v464
    %v497 = vpop.f32.mrf.mxu0
    %v498 = vadd.f32 0.0, %v497
    %v499 = vpop.f32.mrf.mxu0
    %v500 = vadd.f32 0.0, %v499
    %501 = vmatmul.bf16.gmra.mxu0 %v467
    %v502 = vpop.f32.mrf.mxu0
    %v503 = vadd.f32 0.0, %v502
    %v504 = vpop.f32.mrf.mxu0
    %v505 = vadd.f32 0.0, %v504
    %506 = vdwg.mxu0
    %v507 = vcvt.f32.s32.to.zero.pseudo %v479
    %v508 = vcvt.f32.s32.to.zero.pseudo %v481
    %v509 = vcvt.f32.s32.to.zero.pseudo %v484
    %v510 = vcvt.f32.s32.to.zero.pseudo %v486
    %v511 = vand.u32 %v507, 1
    %v512 = vand.u32 %v508, 1
    %v513 = vand.u32 %v509, 1
    %v514 = vand.u32 %v510, 1
    %v515 = vcvt.s32.f32 %v511
    %v516 = vcvt.s32.f32 %v512
    %v517 = vcvt.s32.f32 %v513
    %v518 = vcvt.s32.f32 %v514
    %v519 = vmul.f32 %v515, 2.0
    %v520 = vmul.f32 %v516, 2.0
    %v521 = vmul.f32 %v517, 2.0
    %v522 = vmul.f32 %v518, 2.0
    %v523 = vsub.f32 1.0, %v519
    %v524 = vsub.f32 1.0, %v520
    %v525 = vsub.f32 1.0, %v521
    %v526 = vsub.f32 1.0, %v522
    %vm527 = vcmp.gt.f32.partialorder %v498, 0.5
    %vm528 = vcmp.gt.f32.partialorder %v500, 0.5
    %vm529 = vcmp.gt.f32.partialorder %v503, 0.5
    %vm530 = vcmp.gt.f32.partialorder %v505, 0.5
    %v531 = vmul.f32 %v418, 1.442695
    %v532 = vpow.pop %v531
    %v533 = vmul.f32 %v421, 1.442695
    %v534 = vpow.pop %v533
    %v535 = vmul.f32 %v424, 1.442695
    %v536 = vpow.pop %v535
    %v537 = vmul.f32 %v427, 1.442695
    %v538 = vpow.pop %v537
    %v539 = vmul.f32 %v523, %v532
    %v540 = vmul.f32 %v524, %v534
    %v541 = vmul.f32 %v525, %v536
    %v542 = vmul.f32 %v526, %v538
    %v543 = vsel %vm527, 0.0, %v539
    %v544 = vsel %vm528, 0.0, %v540
    %v545 = vsel %vm529, 0.0, %v541
    %v546 = vsel %vm530, 0.0, %v542
    %v547 = vld [vmem:[#allocation13] sm:$0xff]
    %v548 = vld [vmem:[#allocation13 + $0x8] sm:$0xff]
    %v549 = vld [vmem:[#allocation13 + $0x10] sm:$0xff]
    %v550 = vld [vmem:[#allocation13 + $0x18] sm:$0xff]
    %v551 = vld [vmem:[#allocation13 + $0x20] sm:$0xff]
    %v552 = vld [vmem:[#allocation13 + $0x28] sm:$0xff]
    %v553 = vld [vmem:[#allocation13 + $0x30] sm:$0xff]
    %v554 = vld [vmem:[#allocation13 + $0x38] sm:$0xff]
    %v555 = vld [vmem:[#allocation13 + $0x40] sm:$0xff]
    %v556 = vld [vmem:[#allocation13 + $0x48] sm:$0xff]
    %v557 = vld [vmem:[#allocation13 + $0x50] sm:$0xff]
    %v558 = vld [vmem:[#allocation13 + $0x58] sm:$0xff]
    %v559 = vld [vmem:[#allocation13 + $0x60] sm:$0xff]
    %v560 = vld [vmem:[#allocation13 + $0x68] sm:$0xff]
    %v561 = vld [vmem:[#allocation13 + $0x70] sm:$0xff]
    %v562 = vld [vmem:[#allocation13 + $0x78] sm:$0xff]
    %v563 = vld [vmem:[#allocation14] sm:$0x1]
    %v565 = vperm.slane %v563, 0
    %567 = vmatpush.msra.mxu0 %v562
    %568 = vmatpush.msra.mxu0 %v561
    %569 = vmatpush.msra.mxu0 %v560
    %570 = vmatpush.msra.mxu0 %v559
    %571 = vmatpush.msra.mxu0 %v558
    %572 = vmatpush.msra.mxu0 %v557
    %573 = vmatpush.msra.mxu0 %v556
    %574 = vmatpush.msra.mxu0 %v555
    %575 = vmatpush.msra.mxu0 %v554
    %576 = vmatpush.msra.mxu0 %v553
    %577 = vmatpush.msra.mxu0 %v552
    %578 = vmatpush.msra.mxu0 %v551
    %579 = vmatpush.msra.mxu0 %v550
    %580 = vmatpush.msra.mxu0 %v549
    %581 = vmatpush.msra.mxu0 %v548
    %582 = vmatpush.msra.mxu0 %v547
    %583 = vmatmul.f32.gmra.mxu0 %v543
    %v584 = vpop.f32.mrf.mxu0
    %v585 = vadd.f32 %v565, %v584
    %586 = vmatmul.f32.gmra.mxu0 %v544
    %v587 = vpop.f32.mrf.mxu0
    %v588 = vadd.f32 %v565, %v587
    %589 = vmatmul.f32.gmra.mxu0 %v545
    %v590 = vpop.f32.mrf.mxu0
    %v591 = vadd.f32 %v565, %v590
    %592 = vmatmul.f32.gmra.mxu0 %v546
    %v593 = vpop.f32.mrf.mxu0
    %v594 = vadd.f32 %v565, %v593
    %595 = vdwg.mxu0
    %v596 = vxor.u32 %v585, 2147483648
    %v597 = vxor.u32 %v588, 2147483648
    %v598 = vxor.u32 %v591, 2147483648
    %v599 = vxor.u32 %v594, 2147483648
    %v600 = vmul.f32 %v596, 1.442695
    %v601 = vpow.pop %v600
    %v602 = vmul.f32 %v597, 1.442695
    %v603 = vpow.pop %v602
    %v604 = vmul.f32 %v598, 1.442695
    %v605 = vpow.pop %v604
    %v606 = vmul.f32 %v599, 1.442695
    %v607 = vpow.pop %v606
    %v608 = vadd.f32 %v601, 1.0
    %v609 = vadd.f32 %v603, 1.0
    %v610 = vadd.f32 %v605, 1.0
    %v611 = vadd.f32 %v607, 1.0
    %v612 = vrcp.pop %v608
    %v613 = vmul.f32 %v608, %v612
    %v614 = vsub.f32 1.0, %v613
    %v615 = vmul.f32 %v612, %v614
    %v616 = vadd.f32 %v612, %v615
    %vm617 = vweird.f32 %v608
    %vm618 = vweird.f32 %v612
    %vm619 = vmor %vm617, %vm618
    %v620 = vsel %vm619, %v612, %v616
    %v621 = vand.u32 2147483647, %v608
    %vm622 = vcmp.eq.f32.partialorder %v621, 8.507059e+37
    %v623 = vand.u32 %v608, 2147483648
    %v624 = vor.u32 1.1754944e-38, %v623
    %v625 = vsel %vm622, %v624, %v620
    %v626 = vmul.f32 1.0, %v625
    %v627 = vrcp.pop %v609
    %v628 = vmul.f32 %v609, %v627
    %v629 = vsub.f32 1.0, %v628
    %v630 = vmul.f32 %v627, %v629
    %v631 = vadd.f32 %v627, %v630
    %vm632 = vweird.f32 %v609
    %vm633 = vweird.f32 %v627
    %vm634 = vmor %vm632, %vm633
    %v635 = vsel %vm634, %v627, %v631
    %v636 = vand.u32 2147483647, %v609
    %vm637 = vcmp.eq.f32.partialorder %v636, 8.507059e+37
    %v638 = vand.u32 %v609, 2147483648
    %v639 = vor.u32 1.1754944e-38, %v638
    %v640 = vsel %vm637, %v639, %v635
    %v641 = vmul.f32 1.0, %v640
    %v642 = vrcp.pop %v610
    %v643 = vmul.f32 %v610, %v642
    %v644 = vsub.f32 1.0, %v643
    %v645 = vmul.f32 %v642, %v644
    %v646 = vadd.f32 %v642, %v645
    %vm647 = vweird.f32 %v610
    %vm648 = vweird.f32 %v642
    %vm649 = vmor %vm647, %vm648
    %v650 = vsel %vm649, %v642, %v646
    %v651 = vand.u32 2147483647, %v610
    %vm652 = vcmp.eq.f32.partialorder %v651, 8.507059e+37
    %v653 = vand.u32 %v610, 2147483648
    %v654 = vor.u32 1.1754944e-38, %v653
    %v655 = vsel %vm652, %v654, %v650
    %v656 = vmul.f32 1.0, %v655
    %v657 = vrcp.pop %v611
    %v658 = vmul.f32 %v611, %v657
    %v659 = vsub.f32 1.0, %v658
    %v660 = vmul.f32 %v657, %v659
    %v661 = vadd.f32 %v657, %v660
    %vm662 = vweird.f32 %v611
    %vm663 = vweird.f32 %v657
    %vm664 = vmor %vm662, %vm663
    %v665 = vsel %vm664, %v657, %v661
    %v666 = vand.u32 2147483647, %v611
    %vm667 = vcmp.eq.f32.partialorder %v666, 8.507059e+37
    %v668 = vand.u32 %v611, 2147483648
    %v669 = vor.u32 1.1754944e-38, %v668
    %v670 = vsel %vm667, %v669, %v665
    %v671 = vmul.f32 1.0, %v670
    %v672 = vxor.u32 %v389, 2147483648
    %v673 = vxor.u32 %v392, 2147483648
    %v674 = vxor.u32 %v395, 2147483648
    %v675 = vxor.u32 %v398, 2147483648
    %v676 = vmul.f32 %v672, 1.442695
    %v677 = vpow.pop %v676
    %v678 = vmul.f32 %v673, 1.442695
    %v679 = vpow.pop %v678
    %v680 = vmul.f32 %v674, 1.442695
    %v681 = vpow.pop %v680
    %v682 = vmul.f32 %v675, 1.442695
    %v683 = vpow.pop %v682
    %v684 = vadd.f32 %v677, 1.0
    %v685 = vadd.f32 %v679, 1.0
    %v686 = vadd.f32 %v681, 1.0
    %v687 = vadd.f32 %v683, 1.0
    %v688 = vrcp.pop %v684
    %v689 = vmul.f32 %v684, %v688
    %v690 = vsub.f32 1.0, %v689
    %v691 = vmul.f32 %v688, %v690
    %v692 = vadd.f32 %v688, %v691
    %vm693 = vweird.f32 %v684
    %vm694 = vweird.f32 %v688
    %vm695 = vmor %vm693, %vm694
    %v696 = vsel %vm695, %v688, %v692
    %v697 = vand.u32 2147483647, %v684
    %vm698 = vcmp.eq.f32.partialorder %v697, 8.507059e+37
    %v699 = vand.u32 %v684, 2147483648
    %v700 = vor.u32 1.1754944e-38, %v699
    %v701 = vsel %vm698, %v700, %v696
    %v702 = vmul.f32 1.0, %v701
    %v703 = vrcp.pop %v685
    %v704 = vmul.f32 %v685, %v703
    %v705 = vsub.f32 1.0, %v704
    %v706 = vmul.f32 %v703, %v705
    %v707 = vadd.f32 %v703, %v706
    %vm708 = vweird.f32 %v685
    %vm709 = vweird.f32 %v703
    %vm710 = vmor %vm708, %vm709
    %v711 = vsel %vm710, %v703, %v707
    %v712 = vand.u32 2147483647, %v685
    %vm713 = vcmp.eq.f32.partialorder %v712, 8.507059e+37
    %v714 = vand.u32 %v685, 2147483648
    %v715 = vor.u32 1.1754944e-38, %v714
    %v716 = vsel %vm713, %v715, %v711
    %v717 = vmul.f32 1.0, %v716
    %v718 = vrcp.pop %v686
    %v719 = vmul.f32 %v686, %v718
    %v720 = vsub.f32 1.0, %v719
    %v721 = vmul.f32 %v718, %v720
    %v722 = vadd.f32 %v718, %v721
    %vm723 = vweird.f32 %v686
    %vm724 = vweird.f32 %v718
    %vm725 = vmor %vm723, %vm724
    %v726 = vsel %vm725, %v718, %v722
    %v727 = vand.u32 2147483647, %v686
    %vm728 = vcmp.eq.f32.partialorder %v727, 8.507059e+37
    %v729 = vand.u32 %v686, 2147483648
    %v730 = vor.u32 1.1754944e-38, %v729
    %v731 = vsel %vm728, %v730, %v726
    %v732 = vmul.f32 1.0, %v731
    %v733 = vrcp.pop %v687
    %v734 = vmul.f32 %v687, %v733
    %v735 = vsub.f32 1.0, %v734
    %v736 = vmul.f32 %v733, %v735
    %v737 = vadd.f32 %v733, %v736
    %vm738 = vweird.f32 %v687
    %vm739 = vweird.f32 %v733
    %vm740 = vmor %vm738, %vm739
    %v741 = vsel %vm740, %v733, %v737
    %v742 = vand.u32 2147483647, %v687
    %vm743 = vcmp.eq.f32.partialorder %v742, 8.507059e+37
    %v744 = vand.u32 %v687, 2147483648
    %v745 = vor.u32 1.1754944e-38, %v744
    %v746 = vsel %vm743, %v745, %v741
    %v747 = vmul.f32 1.0, %v746
    %v748 = vxor.u32 %v279, 2147483648
    %v749 = vxor.u32 %v282, 2147483648
    %v750 = vxor.u32 %v285, 2147483648
    %v751 = vxor.u32 %v288, 2147483648
    %v752 = vmul.f32 %v748, 1.442695
    %v753 = vpow.pop %v752
    %v754 = vmul.f32 %v749, 1.442695
    %v755 = vpow.pop %v754
    %v756 = vmul.f32 %v750, 1.442695
    %v757 = vpow.pop %v756
    %v758 = vmul.f32 %v751, 1.442695
    %v759 = vpow.pop %v758
    %v760 = vadd.f32 %v753, 1.0
    %v761 = vadd.f32 %v755, 1.0
    %v762 = vadd.f32 %v757, 1.0
    %v763 = vadd.f32 %v759, 1.0
    %v764 = vrcp.pop %v760
    %v765 = vmul.f32 %v760, %v764
    %v766 = vsub.f32 1.0, %v765
    %v767 = vmul.f32 %v764, %v766
    %v768 = vadd.f32 %v764, %v767
    %vm769 = vweird.f32 %v760
    %vm770 = vweird.f32 %v764
    %vm771 = vmor %vm769, %vm770
    %v772 = vsel %vm771, %v764, %v768
    %v773 = vand.u32 2147483647, %v760
    %vm774 = vcmp.eq.f32.partialorder %v773, 8.507059e+37
    %v775 = vand.u32 %v760, 2147483648
    %v776 = vor.u32 1.1754944e-38, %v775
    %v777 = vsel %vm774, %v776, %v772
    %v778 = vmul.f32 1.0, %v777
    %v779 = vrcp.pop %v761
    %v780 = vmul.f32 %v761, %v779
    %v781 = vsub.f32 1.0, %v780
    %v782 = vmul.f32 %v779, %v781
    %v783 = vadd.f32 %v779, %v782
    %vm784 = vweird.f32 %v761
    %vm785 = vweird.f32 %v779
    %vm786 = vmor %vm784, %vm785
    %v787 = vsel %vm786, %v779, %v783
    %v788 = vand.u32 2147483647, %v761
    %vm789 = vcmp.eq.f32.partialorder %v788, 8.507059e+37
    %v790 = vand.u32 %v761, 2147483648
    %v791 = vor.u32 1.1754944e-38, %v790
    %v792 = vsel %vm789, %v791, %v787
    %v793 = vmul.f32 1.0, %v792
    %v794 = vrcp.pop %v762
    %v795 = vmul.f32 %v762, %v794
    %v796 = vsub.f32 1.0, %v795
    %v797 = vmul.f32 %v794, %v796
    %v798 = vadd.f32 %v794, %v797
    %vm799 = vweird.f32 %v762
    %vm800 = vweird.f32 %v794
    %vm801 = vmor %vm799, %vm800
    %v802 = vsel %vm801, %v794, %v798
    %v803 = vand.u32 2147483647, %v762
    %vm804 = vcmp.eq.f32.partialorder %v803, 8.507059e+37
    %v805 = vand.u32 %v762, 2147483648
    %v806 = vor.u32 1.1754944e-38, %v805
    %v807 = vsel %vm804, %v806, %v802
    %v808 = vmul.f32 1.0, %v807
    %v809 = vrcp.pop %v763
    %v810 = vmul.f32 %v763, %v809
    %v811 = vsub.f32 1.0, %v810
    %v812 = vmul.f32 %v809, %v811
    %v813 = vadd.f32 %v809, %v812
    %vm814 = vweird.f32 %v763
    %vm815 = vweird.f32 %v809
    %vm816 = vmor %vm814, %vm815
    %v817 = vsel %vm816, %v809, %v813
    %v818 = vand.u32 2147483647, %v763
    %vm819 = vcmp.eq.f32.partialorder %v818, 8.507059e+37
    %v820 = vand.u32 %v763, 2147483648
    %v821 = vor.u32 1.1754944e-38, %v820
    %v822 = vsel %vm819, %v821, %v817
    %v823 = vmul.f32 1.0, %v822
    %s824 = sld [smem:[#allocation16]]
    %v825 = vstv %s824
    %v826 = vmul.f32 %v626, %v825
    %v827 = vmul.f32 %v641, %v825
    %v828 = vmul.f32 %v656, %v825
    %v829 = vmul.f32 %v671, %v825
    %s830 = sld [smem:[#allocation16 + $0x1]]
    %v831 = vstv %s830
    %v832 = vmul.f32 %v702, %v831
    %v833 = vmul.f32 %v717, %v831
    %v834 = vmul.f32 %v732, %v831
    %v835 = vmul.f32 %v747, %v831
    %v836 = vadd.f32 %v826, %v832
    %v837 = vadd.f32 %v827, %v833
    %v838 = vadd.f32 %v828, %v834
    %v839 = vadd.f32 %v829, %v835
    %s840 = sld [smem:[#allocation16 + $0x2]]
    %v841 = vstv %s840
    %v842 = vmul.f32 %v778, %v841
    %v843 = vmul.f32 %v793, %v841
    %v844 = vmul.f32 %v808, %v841
    %v845 = vmul.f32 %v823, %v841
    %v846 = vadd.f32 %v836, %v842
    %v847 = vadd.f32 %v837, %v843
    %v848 = vadd.f32 %v838, %v844
    %v849 = vadd.f32 %v839, %v845
    %s850 = sld [smem:[#allocation16 + $0x3]]
    %v851 = vstv %s850
    %v852 = vmul.f32 %v626, %v851
    %v853 = vmul.f32 %v641, %v851
    %v854 = vmul.f32 %v656, %v851
    %v855 = vmul.f32 %v671, %v851
    %s856 = sld [smem:[#allocation16 + $0x4]]
    %v857 = vstv %s856
    %v858 = vmul.f32 %v702, %v857
    %v859 = vmul.f32 %v717, %v857
    %v860 = vmul.f32 %v732, %v857
    %v861 = vmul.f32 %v747, %v857
    %v862 = vadd.f32 %v852, %v858
    %v863 = vadd.f32 %v853, %v859
    %v864 = vadd.f32 %v854, %v860
    %v865 = vadd.f32 %v855, %v861
    %s866 = sld [smem:[#allocation16 + $0x5]]
    %v867 = vstv %s866
    %v868 = vmul.f32 %v778, %v867
    %v869 = vmul.f32 %v793, %v867
    %v870 = vmul.f32 %v808, %v867
    %v871 = vmul.f32 %v823, %v867
    %v872 = vadd.f32 %v862, %v868
    %v873 = vadd.f32 %v863, %v869
    %v874 = vadd.f32 %v864, %v870
    %v875 = vadd.f32 %v865, %v871
    %s876 = sld [smem:[#allocation16 + $0x6]]
    %v877 = vstv %s876
    %v878 = vmul.f32 %v626, %v877
    %v879 = vmul.f32 %v641, %v877
    %v880 = vmul.f32 %v656, %v877
    %v881 = vmul.f32 %v671, %v877
    %s882 = sld [smem:[#allocation16 + $0x7]]
    %v883 = vstv %s882
    %v884 = vmul.f32 %v702, %v883
    %v885 = vmul.f32 %v717, %v883
    %v886 = vmul.f32 %v732, %v883
    %v887 = vmul.f32 %v747, %v883
    %v888 = vadd.f32 %v878, %v884
    %v889 = vadd.f32 %v879, %v885
    %v890 = vadd.f32 %v880, %v886
    %v891 = vadd.f32 %v881, %v887
    %s892 = sld [smem:[#allocation16 + $0x8]]
    %v893 = vstv %s892
    %v894 = vmul.f32 %v778, %v893
    %v895 = vmul.f32 %v793, %v893
    %v896 = vmul.f32 %v808, %v893
    %v897 = vmul.f32 %v823, %v893
    %v898 = vadd.f32 %v888, %v894
    %v899 = vadd.f32 %v889, %v895
    %v900 = vadd.f32 %v890, %v896
    %v901 = vadd.f32 %v891, %v897
    %v902 = vmax.f32 %v846, %v872
    %v903 = vmax.f32 %v847, %v873
    %v904 = vmax.f32 %v848, %v874
    %v905 = vmax.f32 %v849, %v875
    %v906 = vmax.f32 %v902, %v898
    %v907 = vmax.f32 %v903, %v899
    %v908 = vmax.f32 %v904, %v900
    %v909 = vmax.f32 %v905, %v901
    %v910 = vsub.f32 %v846, %v906
    %v911 = vsub.f32 %v847, %v907
    %v912 = vsub.f32 %v848, %v908
    %v913 = vsub.f32 %v849, %v909
    %v914 = vmul.f32 %v910, 1.442695
    %v915 = vpow.pop %v914
    %v916 = vmul.f32 %v911, 1.442695
    %v917 = vpow.pop %v916
    %v918 = vmul.f32 %v912, 1.442695
    %v919 = vpow.pop %v918
    %v920 = vmul.f32 %v913, 1.442695
    %v921 = vpow.pop %v920
    %v922 = vsub.f32 %v872, %v906
    %v923 = vsub.f32 %v873, %v907
    %v924 = vsub.f32 %v874, %v908
    %v925 = vsub.f32 %v875, %v909
    %v926 = vmul.f32 %v922, 1.442695
    %v927 = vpow.pop %v926
    %v928 = vmul.f32 %v923, 1.442695
    %v929 = vpow.pop %v928
    %v930 = vmul.f32 %v924, 1.442695
    %v931 = vpow.pop %v930
    %v932 = vmul.f32 %v925, 1.442695
    %v933 = vpow.pop %v932
    %v934 = vsub.f32 %v898, %v906
    %v935 = vsub.f32 %v899, %v907
    %v936 = vsub.f32 %v900, %v908
    %v937 = vsub.f32 %v901, %v909
    %v938 = vmul.f32 %v934, 1.442695
    %v939 = vpow.pop %v938
    %v940 = vmul.f32 %v935, 1.442695
    %v941 = vpow.pop %v940
    %v942 = vmul.f32 %v936, 1.442695
    %v943 = vpow.pop %v942
    %v944 = vmul.f32 %v937, 1.442695
    %v945 = vpow.pop %v944
    %v946 = vadd.f32 %v915, %v927
    %v947 = vadd.f32 %v917, %v929
    %v948 = vadd.f32 %v919, %v931
    %v949 = vadd.f32 %v921, %v933
    %v950 = vadd.f32 %v946, %v939
    %v951 = vadd.f32 %v947, %v941
    %v952 = vadd.f32 %v948, %v943
    %v953 = vadd.f32 %v949, %v945
    %v954 = vrcp.pop %v950
    %v955 = vrcp.pop %v951
    %v956 = vrcp.pop %v952
    %v957 = vrcp.pop %v953
    %v958 = vmul.f32 %v950, %v954
    %v959 = vmul.f32 %v951, %v955
    %v960 = vmul.f32 %v952, %v956
    %v961 = vmul.f32 %v953, %v957
    %v962 = vsub.f32 2.0, %v958
    %v963 = vsub.f32 2.0, %v959
    %v964 = vsub.f32 2.0, %v960
    %v965 = vsub.f32 2.0, %v961
    %v966 = vmul.f32 %v954, %v962
    %v967 = vmul.f32 %v955, %v963
    %v968 = vmul.f32 %v956, %v964
    %v969 = vmul.f32 %v957, %v965
    %v970 = vmul.f32 %v915, %v966
    %v971 = vmul.f32 %v917, %v967
    %v972 = vmul.f32 %v919, %v968
    %v973 = vmul.f32 %v921, %v969
    %975 = vset.pattern.permute.xlu0 32
    %976 = vperm.xlu0 %975, %v970
    %v977 = vpop.permute.xlu0 %976
    %980 = vset.pattern.permute.xlu0 32
    %981 = vperm.xlu0 %980, %v971
    %v982 = vpop.permute.xlu0 %981
    %985 = vset.pattern.permute.xlu0 32
    %986 = vperm.xlu0 %985, %v972
    %v987 = vpop.permute.xlu0 %986
    %990 = vset.pattern.permute.xlu0 32
    %991 = vperm.xlu0 %990, %v973
    %v992 = vpop.permute.xlu0 %991
    %v994 = vmul.f32 %v977, %v585
    %v995 = vmul.f32 %v982, %v588
    %v996 = vmul.f32 %v987, %v591
    %v997 = vmul.f32 %v992, %v594
    %v998 = vmul.f32 %v927, %v966
    %v999 = vmul.f32 %v929, %v967
    %v1000 = vmul.f32 %v931, %v968
    %v1001 = vmul.f32 %v933, %v969
    %1003 = vset.pattern.permute.xlu0 32
    %1004 = vperm.xlu0 %1003, %v998
    %v1005 = vpop.permute.xlu0 %1004
    %1008 = vset.pattern.permute.xlu0 32
    %1009 = vperm.xlu0 %1008, %v999
    %v1010 = vpop.permute.xlu0 %1009
    %1013 = vset.pattern.permute.xlu0 32
    %1014 = vperm.xlu0 %1013, %v1000
    %v1015 = vpop.permute.xlu0 %1014
    %1018 = vset.pattern.permute.xlu0 32
    %1019 = vperm.xlu0 %1018, %v1001
    %v1020 = vpop.permute.xlu0 %1019
    %v1022 = vmul.f32 %v1005, %v389
    %v1023 = vmul.f32 %v1010, %v392
    %v1024 = vmul.f32 %v1015, %v395
    %v1025 = vmul.f32 %v1020, %v398
    %v1026 = vadd.f32 %v994, %v1022
    %v1027 = vadd.f32 %v995, %v1023
    %v1028 = vadd.f32 %v996, %v1024
    %v1029 = vadd.f32 %v997, %v1025
    %v1030 = vmul.f32 %v939, %v966
    %v1031 = vmul.f32 %v941, %v967
    %v1032 = vmul.f32 %v943, %v968
    %v1033 = vmul.f32 %v945, %v969
    %1035 = vset.pattern.permute.xlu0 32
    %1036 = vperm.xlu0 %1035, %v1030
    %v1037 = vpop.permute.xlu0 %1036
    %1040 = vset.pattern.permute.xlu0 32
    %1041 = vperm.xlu0 %1040, %v1031
    %v1042 = vpop.permute.xlu0 %1041
    %1045 = vset.pattern.permute.xlu0 32
    %1046 = vperm.xlu0 %1045, %v1032
    %v1047 = vpop.permute.xlu0 %1046
    %1050 = vset.pattern.permute.xlu0 32
    %1051 = vperm.xlu0 %1050, %v1033
    %v1052 = vpop.permute.xlu0 %1051
    %v1054 = vmul.f32 %v1037, %v279
    %v1055 = vmul.f32 %v1042, %v282
    %v1056 = vmul.f32 %v1047, %v285
    %v1057 = vmul.f32 %v1052, %v288
    %v1058 = vadd.f32 %v1026, %v1054
    %v1059 = vadd.f32 %v1027, %v1055
    %v1060 = vadd.f32 %v1028, %v1056
    %v1061 = vadd.f32 %v1029, %v1057
    %v1062 = vmax.f32 %v1058, 0.0
    %v1063 = vmax.f32 %v1059, 0.0
    %v1064 = vmax.f32 %v1060, 0.0
    %v1065 = vmax.f32 %v1061, 0.0
    %s1066 = scalar_lea.vmem [#allocation10], 384
    %v1067 = vld [vmem:[%s1066] sm:$0xff]
    %v1068 = vld [vmem:[%s1066 + $0x8] sm:$0xff]
    %v1069 = vld [vmem:[%s1066 + $0x10] sm:$0xff]
    %v1070 = vld [vmem:[%s1066 + $0x18] sm:$0xff]
    %v1071 = vld [vmem:[%s1066 + $0x20] sm:$0xff]
    %v1072 = vld [vmem:[%s1066 + $0x28] sm:$0xff]
    %v1073 = vld [vmem:[%s1066 + $0x30] sm:$0xff]
    %v1074 = vld [vmem:[%s1066 + $0x38] sm:$0xff]
    %v1075 = vld [vmem:[%s1066 + $0x40] sm:$0xff]
    %v1076 = vld [vmem:[%s1066 + $0x48] sm:$0xff]
    %v1077 = vld [vmem:[%s1066 + $0x50] sm:$0xff]
    %v1078 = vld [vmem:[%s1066 + $0x58] sm:$0xff]
    %v1079 = vld [vmem:[%s1066 + $0x60] sm:$0xff]
    %v1080 = vld [vmem:[%s1066 + $0x68] sm:$0xff]
    %v1081 = vld [vmem:[%s1066 + $0x70] sm:$0xff]
    %v1082 = vld [vmem:[%s1066 + $0x78] sm:$0xff]
    %v1083 = vld [vmem:[%s1066 + $0x80] sm:$0xff]
    %v1084 = vld [vmem:[%s1066 + $0x88] sm:$0xff]
    %v1085 = vld [vmem:[%s1066 + $0x90] sm:$0xff]
    %v1086 = vld [vmem:[%s1066 + $0x98] sm:$0xff]
    %v1087 = vld [vmem:[%s1066 + $0xa0] sm:$0xff]
    %v1088 = vld [vmem:[%s1066 + $0xa8] sm:$0xff]
    %v1089 = vld [vmem:[%s1066 + $0xb0] sm:$0xff]
    %v1090 = vld [vmem:[%s1066 + $0xb8] sm:$0xff]
    %v1091 = vld [vmem:[%s1066 + $0xc0] sm:$0xff]
    %v1092 = vld [vmem:[%s1066 + $0xc8] sm:$0xff]
    %v1093 = vld [vmem:[%s1066 + $0xd0] sm:$0xff]
    %v1094 = vld [vmem:[%s1066 + $0xd8] sm:$0xff]
    %v1095 = vld [vmem:[%s1066 + $0xe0] sm:$0xff]
    %v1096 = vld [vmem:[%s1066 + $0xe8] sm:$0xff]
    %v1097 = vld [vmem:[%s1066 + $0xf0] sm:$0xff]
    %v1098 = vld [vmem:[%s1066 + $0xf8] sm:$0xff]
    %v1099 = vld [vmem:[%s1066 + $0x100] sm:$0xff]
    %v1100 = vld [vmem:[%s1066 + $0x108] sm:$0xff]
    %v1101 = vld [vmem:[%s1066 + $0x110] sm:$0xff]
    %v1102 = vld [vmem:[%s1066 + $0x118] sm:$0xff]
    %v1103 = vld [vmem:[%s1066 + $0x120] sm:$0xff]
    %v1104 = vld [vmem:[%s1066 + $0x128] sm:$0xff]
    %v1105 = vld [vmem:[%s1066 + $0x130] sm:$0xff]
    %v1106 = vld [vmem:[%s1066 + $0x138] sm:$0xff]
    %v1107 = vld [vmem:[%s1066 + $0x140] sm:$0xff]
    %v1108 = vld [vmem:[%s1066 + $0x148] sm:$0xff]
    %v1109 = vld [vmem:[%s1066 + $0x150] sm:$0xff]
    %v1110 = vld [vmem:[%s1066 + $0x158] sm:$0xff]
    %v1111 = vld [vmem:[%s1066 + $0x160] sm:$0xff]
    %v1112 = vld [vmem:[%s1066 + $0x168] sm:$0xff]
    %v1113 = vld [vmem:[%s1066 + $0x170] sm:$0xff]
    %v1114 = vld [vmem:[%s1066 + $0x178] sm:$0xff]
    %s1115 = scalar_lea.vmem [#allocation11], 3
    %v1116 = vld [vmem:[%s1115] sm:$0x7]
    %v1118 = vperm.slane %v1116, 0
    %v1119 = vperm.slane %v1116, 1
    %v1120 = vperm.slane %v1116, 2
    %1124 = vmatpush.msra.mxu0 %v1112
    %1125 = vmatpush.msra.mxu0 %v1109
    %1126 = vmatpush.msra.mxu0 %v1106
    %1127 = vmatpush.msra.mxu0 %v1103
    %1128 = vmatpush.msra.mxu0 %v1100
    %1129 = vmatpush.msra.mxu0 %v1097
    %1130 = vmatpush.msra.mxu0 %v1094
    %1131 = vmatpush.msra.mxu0 %v1091
    %1132 = vmatpush.msra.mxu0 %v1088
    %1133 = vmatpush.msra.mxu0 %v1085
    %1134 = vmatpush.msra.mxu0 %v1082
    %1135 = vmatpush.msra.mxu0 %v1079
    %1136 = vmatpush.msra.mxu0 %v1076
    %1137 = vmatpush.msra.mxu0 %v1073
    %1138 = vmatpush.msra.mxu0 %v1070
    %1139 = vmatpush.msra.mxu0 %v1067
    %1140 = vmatmul.f32.gmra.mxu0 %v1062
    %v1141 = vpop.f32.mrf.mxu0
    %v1142 = vadd.f32 %v1118, %v1141
    %1143 = vmatmul.f32.gmra.mxu0 %v1063
    %v1144 = vpop.f32.mrf.mxu0
    %v1145 = vadd.f32 %v1118, %v1144
    %1146 = vmatmul.f32.gmra.mxu0 %v1064
    %v1147 = vpop.f32.mrf.mxu0
    %v1148 = vadd.f32 %v1118, %v1147
    %1149 = vmatmul.f32.gmra.mxu0 %v1065
    %v1150 = vpop.f32.mrf.mxu0
    %v1151 = vadd.f32 %v1118, %v1150
    %1152 = vdwg.mxu0
    %1153 = vmatpush.msra.mxu0 %v1113
    %1154 = vmatpush.msra.mxu0 %v1110
    %1155 = vmatpush.msra.mxu0 %v1107
    %1156 = vmatpush.msra.mxu0 %v1104
    %1157 = vmatpush.msra.mxu0 %v1101
    %1158 = vmatpush.msra.mxu0 %v1098
    %1159 = vmatpush.msra.mxu0 %v1095
    %1160 = vmatpush.msra.mxu0 %v1092
    %1161 = vmatpush.msra.mxu0 %v1089
    %1162 = vmatpush.msra.mxu0 %v1086
    %1163 = vmatpush.msra.mxu0 %v1083
    %1164 = vmatpush.msra.mxu0 %v1080
    %1165 = vmatpush.msra.mxu0 %v1077
    %1166 = vmatpush.msra.mxu0 %v1074
    %1167 = vmatpush.msra.mxu0 %v1071
    %1168 = vmatpush.msra.mxu0 %v1068
    %1169 = vmatmul.f32.gmra.mxu0 %v1062
    %v1170 = vpop.f32.mrf.mxu0
    %v1171 = vadd.f32 %v1119, %v1170
    %1172 = vmatmul.f32.gmra.mxu0 %v1063
    %v1173 = vpop.f32.mrf.mxu0
    %v1174 = vadd.f32 %v1119, %v1173
    %1175 = vmatmul.f32.gmra.mxu0 %v1064
    %v1176 = vpop.f32.mrf.mxu0
    %v1177 = vadd.f32 %v1119, %v1176
    %1178 = vmatmul.f32.gmra.mxu0 %v1065
    %v1179 = vpop.f32.mrf.mxu0
    %v1180 = vadd.f32 %v1119, %v1179
    %1181 = vdwg.mxu0
    %1182 = vmatpush.msra.mxu0 %v1114
    %1183 = vmatpush.msra.mxu0 %v1111
    %1184 = vmatpush.msra.mxu0 %v1108
    %1185 = vmatpush.msra.mxu0 %v1105
    %1186 = vmatpush.msra.mxu0 %v1102
    %1187 = vmatpush.msra.mxu0 %v1099
    %1188 = vmatpush.msra.mxu0 %v1096
    %1189 = vmatpush.msra.mxu0 %v1093
    %1190 = vmatpush.msra.mxu0 %v1090
    %1191 = vmatpush.msra.mxu0 %v1087
    %1192 = vmatpush.msra.mxu0 %v1084
    %1193 = vmatpush.msra.mxu0 %v1081
    %1194 = vmatpush.msra.mxu0 %v1078
    %1195 = vmatpush.msra.mxu0 %v1075
    %1196 = vmatpush.msra.mxu0 %v1072
    %1197 = vmatpush.msra.mxu0 %v1069
    %1198 = vmatmul.f32.gmra.mxu0 %v1062
    %v1199 = vpop.f32.mrf.mxu0
    %v1200 = vadd.f32 %v1120, %v1199
    %1201 = vmatmul.f32.gmra.mxu0 %v1063
    %v1202 = vpop.f32.mrf.mxu0
    %v1203 = vadd.f32 %v1120, %v1202
    %1204 = vmatmul.f32.gmra.mxu0 %v1064
    %v1205 = vpop.f32.mrf.mxu0
    %v1206 = vadd.f32 %v1120, %v1205
    %1207 = vmatmul.f32.gmra.mxu0 %v1065
    %v1208 = vpop.f32.mrf.mxu0
    %v1209 = vadd.f32 %v1120, %v1208
    %1210 = vdwg.mxu0
    %v1211 = vtanh.pop %v1171
    %v1212 = vtanh.pop %v1174
    %v1213 = vtanh.pop %v1177
    %v1214 = vtanh.pop %v1180
    %vm1215 = vcmp.eq.f32.partialorder %v1211, 0.0
    %vm1216 = vcmp.eq.f32.partialorder %v1212, 0.0
    %vm1217 = vcmp.eq.f32.partialorder %v1213, 0.0
    %vm1218 = vcmp.eq.f32.partialorder %v1214, 0.0
    %v1219 = vand.u32 2147483647, %v1211
    %v1220 = vand.u32 2147483647, %v1212
    %v1221 = vand.u32 2147483647, %v1213
    %v1222 = vand.u32 2147483647, %v1214
    %v1223 = vsel %vm1215, 1.0, %v1219
    %v1224 = vsel %vm1216, 1.0, %v1220
    %v1225 = vsel %vm1217, 1.0, %v1221
    %v1226 = vsel %vm1218, 1.0, %v1222
    %v1227 = vlog2.pop %v1223
    %v1228 = vmul.f32 %v1227, 0.6931472
    %v1229 = vlog2.pop %v1224
    %v1230 = vmul.f32 %v1229, 0.6931472
    %v1231 = vlog2.pop %v1225
    %v1232 = vmul.f32 %v1231, 0.6931472
    %v1233 = vlog2.pop %v1226
    %v1234 = vmul.f32 %v1233, 0.6931472
    %1235 = vst [vmem:[#allocation2] sm:$0xff] %v1142
    %1236 = vst [vmem:[#allocation2 + $0x10] sm:$0xff] %v1145
    %1237 = vst [vmem:[#allocation2 + $0x20] sm:$0xff] %v1148
    %1238 = vst [vmem:[#allocation2 + $0x30] sm:$0xff] %v1151
    %1239 = vst [vmem:[#allocation2 + $0x8] sm:$0xff] %v1228
    %1240 = vst [vmem:[#allocation2 + $0x18] sm:$0xff] %v1230
    %1241 = vst [vmem:[#allocation2 + $0x28] sm:$0xff] %v1232
    %1242 = vst [vmem:[#allocation2 + $0x38] sm:$0xff] %v1234
    %vm1243 = vcmp.lt.f32.partialorder %v1211, 0.0
    %vm1244 = vcmp.lt.f32.partialorder %v1212, 0.0
    %vm1245 = vcmp.lt.f32.partialorder %v1213, 0.0
    %vm1246 = vcmp.lt.f32.partialorder %v1214, 0.0
    %v1247 = vsel %vm1243, 1.0, 0.0
    %v1248 = vsel %vm1244, 1.0, 0.0
    %v1249 = vsel %vm1245, 1.0, 0.0
    %v1250 = vsel %vm1246, 1.0, 0.0
    %v1251 = vpack.c.bf16 %v1247, %v1247
    %v1252 = vpack.c.bf16 %v1248, %v1248
    %v1253 = vpack.c.bf16 %v1249, %v1249
    %v1254 = vpack.c.bf16 %v1250, %v1250
    %1255 = vst [vmem:[#allocation3] sm:$0xf] %v1251
    %1256 = vst [vmem:[#allocation3 + $0x8] sm:$0xf] %v1252
    %1257 = vst [vmem:[#allocation3 + $0x10] sm:$0xf] %v1253
    %1258 = vst [vmem:[#allocation3 + $0x18] sm:$0xf] %v1254
    %v1259 = vsel %vm1215, 1.0, 0.0
    %v1260 = vsel %vm1216, 1.0, 0.0
    %v1261 = vsel %vm1217, 1.0, 0.0
    %v1262 = vsel %vm1218, 1.0, 0.0
    %v1263 = vpack.c.bf16 %v1259, %v1259
    %v1264 = vpack.c.bf16 %v1260, %v1260
    %v1265 = vpack.c.bf16 %v1261, %v1261
    %v1266 = vpack.c.bf16 %v1262, %v1262
    %1267 = vst [vmem:[#allocation3 + $0x4] sm:$0xf] %v1263
    %1268 = vst [vmem:[#allocation3 + $0xc] sm:$0xf] %v1264
    %1269 = vst [vmem:[#allocation3 + $0x14] sm:$0xf] %v1265
    %1270 = vst [vmem:[#allocation3 + $0x1c] sm:$0xf] %v1266
    %v1271 = vld [vmem:[#allocation2] sm:$0xff]
    %v1272 = vld [vmem:[#allocation2 + $0x8] sm:$0xff]
    %v1273 = vld [vmem:[#allocation2 + $0x10] sm:$0xff]
    %v1274 = vld [vmem:[#allocation2 + $0x18] sm:$0xff]
    %v1275 = vld [vmem:[#allocation2 + $0x20] sm:$0xff]
    %v1276 = vld [vmem:[#allocation2 + $0x28] sm:$0xff]
    %v1277 = vld [vmem:[#allocation2 + $0x30] sm:$0xff]
    %v1278 = vld [vmem:[#allocation2 + $0x38] sm:$0xff]
    %1279 = vmatpush.msra.mxu0 0.0
    %1280 = vmatpush.msra.mxu0 0.0
    %1281 = vmatpush.msra.mxu0 0.0
    %1282 = vmatpush.msra.mxu0 0.0
    %1283 = vmatpush.msra.mxu0 0.0
    %1284 = vmatpush.msra.mxu0 0.0
    %1285 = vmatpush.msra.mxu0 0.0
    %1286 = vmatpush.msra.mxu0 0.0
    %1287 = vmatpush.msra.mxu0 0.0
    %1288 = vmatpush.msra.mxu0 0.0
    %1289 = vmatpush.msra.mxu0 0.0
    %1290 = vmatpush.msra.mxu0 0.0
    %1291 = vmatpush.msra.mxu0 %v1277
    %1292 = vmatpush.msra.mxu0 %v1275
    %1293 = vmatpush.msra.mxu0 %v1273
    %1294 = vmatpush.msra.mxu0 %v1271
    %1295 = vmatmul.f32.gmra.mxu0 %v360
    %v1296 = vpop.f32.mrf.mxu0
    %v1297 = vadd.f32 0.0, %v1296
    %1298 = vmatmul.f32.gmra.mxu0 %v363
    %v1299 = vpop.f32.mrf.mxu0
    %v1300 = vadd.f32 0.0, %v1299
    %1301 = vmatmul.f32.gmra.mxu0 %v366
    %v1302 = vpop.f32.mrf.mxu0
    %v1303 = vadd.f32 0.0, %v1302
    %1304 = vmatmul.f32.gmra.mxu0 %v369
    %v1305 = vpop.f32.mrf.mxu0
    %v1306 = vadd.f32 0.0, %v1305
    %1307 = vdwg.mxu0
    %1308 = vmatpush.msra.mxu0 0.0
    %1309 = vmatpush.msra.mxu0 0.0
    %1310 = vmatpush.msra.mxu0 0.0
    %1311 = vmatpush.msra.mxu0 0.0
    %1312 = vmatpush.msra.mxu0 0.0
    %1313 = vmatpush.msra.mxu0 0.0
    %1314 = vmatpush.msra.mxu0 0.0
    %1315 = vmatpush.msra.mxu0 0.0
    %1316 = vmatpush.msra.mxu0 0.0
    %1317 = vmatpush.msra.mxu0 0.0
    %1318 = vmatpush.msra.mxu0 0.0
    %1319 = vmatpush.msra.mxu0 0.0
    %1320 = vmatpush.msra.mxu0 %v1278
    %1321 = vmatpush.msra.mxu0 %v1276
    %1322 = vmatpush.msra.mxu0 %v1274
    %1323 = vmatpush.msra.mxu0 %v1272
    %1324 = vmatmul.f32.gmra.mxu0 %v360
    %v1325 = vpop.f32.mrf.mxu0
    %v1326 = vadd.f32 0.0, %v1325
    %1327 = vmatmul.f32.gmra.mxu0 %v363
    %v1328 = vpop.f32.mrf.mxu0
    %v1329 = vadd.f32 0.0, %v1328
    %1330 = vmatmul.f32.gmra.mxu0 %v366
    %v1331 = vpop.f32.mrf.mxu0
    %v1332 = vadd.f32 0.0, %v1331
    %1333 = vmatmul.f32.gmra.mxu0 %v369
    %v1334 = vpop.f32.mrf.mxu0
    %v1335 = vadd.f32 0.0, %v1334
    %1336 = vdwg.mxu0
    %v1337 = vld [vmem:[#allocation3] sm:$0xff]
    %v1338 = vld [vmem:[#allocation3 + $0x8] sm:$0xff]
    %v1339 = vld [vmem:[#allocation3 + $0x10] sm:$0xff]
    %v1340 = vld [vmem:[#allocation3 + $0x18] sm:$0xff]
    %v1345 = vunpack.c.l.b16 %v1337
    %v1346 = vunpack.c.h.b16 %v1337
    %v1347 = vunpack.c.l.b16 %v1338
    %v1348 = vunpack.c.h.b16 %v1338
    %v1349 = vunpack.c.l.b16 %v1339
    %v1350 = vunpack.c.h.b16 %v1339
    %v1351 = vunpack.c.l.b16 %v1340
    %v1352 = vunpack.c.h.b16 %v1340
    %v1353 = vpack.c.b16 %v1347, %v1345
    %v1354 = vpack.c.b16 %v1348, %v1346
    %v1355 = vpack.c.b16 %v1351, %v1349
    %v1356 = vpack.c.b16 %v1352, %v1350
    %1361 = vmatpush.bf16.msra.mxu0 0
    %1362 = vmatpush.bf16.msra.mxu0 0
    %1363 = vmatpush.bf16.msra.mxu0 0
    %1364 = vmatpush.bf16.msra.mxu0 0
    %1365 = vmatpush.bf16.msra.mxu0 0
    %1366 = vmatpush.bf16.msra.mxu0 0
    %1367 = vmatpush.bf16.msra.mxu0 %v1355
    %1368 = vmatpush.bf16.msra.mxu0 %v1353
    %1369 = vmatmul.bf16.gmra.mxu0 %v464
    %v1370 = vpop.f32.mrf.mxu0
    %v1371 = vadd.f32 0.0, %v1370
    %v1372 = vpop.f32.mrf.mxu0
    %v1373 = vadd.f32 0.0, %v1372
    %1374 = vmatmul.bf16.gmra.mxu0 %v467
    %v1375 = vpop.f32.mrf.mxu0
    %v1376 = vadd.f32 0.0, %v1375
    %v1377 = vpop.f32.mrf.mxu0
    %v1378 = vadd.f32 0.0, %v1377
    %1379 = vdwg.mxu0
    %1380 = vmatpush.bf16.msra.mxu0 0
    %1381 = vmatpush.bf16.msra.mxu0 0
    %1382 = vmatpush.bf16.msra.mxu0 0
    %1383 = vmatpush.bf16.msra.mxu0 0
    %1384 = vmatpush.bf16.msra.mxu0 0
    %1385 = vmatpush.bf16.msra.mxu0 0
    %1386 = vmatpush.bf16.msra.mxu0 %v1356
    %1387 = vmatpush.bf16.msra.mxu0 %v1354
    %1388 = vmatmul.bf16.gmra.mxu0 %v464
    %v1389 = vpop.f32.mrf.mxu0
    %v1390 = vadd.f32 0.0, %v1389
    %v1391 = vpop.f32.mrf.mxu0
    %v1392 = vadd.f32 0.0, %v1391
    %1393 = vmatmul.bf16.gmra.mxu0 %v467
    %v1394 = vpop.f32.mrf.mxu0
    %v1395 = vadd.f32 0.0, %v1394
    %v1396 = vpop.f32.mrf.mxu0
    %v1397 = vadd.f32 0.0, %v1396
    %1398 = vdwg.mxu0
    %v1399 = vcvt.f32.s32.to.zero.pseudo %v1371
    %v1400 = vcvt.f32.s32.to.zero.pseudo %v1373
    %v1401 = vcvt.f32.s32.to.zero.pseudo %v1376
    %v1402 = vcvt.f32.s32.to.zero.pseudo %v1378
    %v1403 = vand.u32 %v1399, 1
    %v1404 = vand.u32 %v1400, 1
    %v1405 = vand.u32 %v1401, 1
    %v1406 = vand.u32 %v1402, 1
    %v1407 = vcvt.s32.f32 %v1403
    %v1408 = vcvt.s32.f32 %v1404
    %v1409 = vcvt.s32.f32 %v1405
    %v1410 = vcvt.s32.f32 %v1406
    %v1411 = vmul.f32 %v1407, 2.0
    %v1412 = vmul.f32 %v1408, 2.0
    %v1413 = vmul.f32 %v1409, 2.0
    %v1414 = vmul.f32 %v1410, 2.0
    %v1415 = vsub.f32 1.0, %v1411
    %v1416 = vsub.f32 1.0, %v1412
    %v1417 = vsub.f32 1.0, %v1413
    %v1418 = vsub.f32 1.0, %v1414
    %vm1419 = vcmp.gt.f32.partialorder %v1390, 0.5
    %vm1420 = vcmp.gt.f32.partialorder %v1392, 0.5
    %vm1421 = vcmp.gt.f32.partialorder %v1395, 0.5
    %vm1422 = vcmp.gt.f32.partialorder %v1397, 0.5
    %v1423 = vmul.f32 %v1326, 1.442695
    %v1424 = vpow.pop %v1423
    %v1425 = vmul.f32 %v1329, 1.442695
    %v1426 = vpow.pop %v1425
    %v1427 = vmul.f32 %v1332, 1.442695
    %v1428 = vpow.pop %v1427
    %v1429 = vmul.f32 %v1335, 1.442695
    %v1430 = vpow.pop %v1429
    %v1431 = vmul.f32 %v1415, %v1424
    %v1432 = vmul.f32 %v1416, %v1426
    %v1433 = vmul.f32 %v1417, %v1428
    %v1434 = vmul.f32 %v1418, %v1430
    %v1435 = vsel %vm1419, 0.0, %v1431
    %v1436 = vsel %vm1420, 0.0, %v1432
    %v1437 = vsel %vm1421, 0.0, %v1433
    %v1438 = vsel %vm1422, 0.0, %v1434
    %s1439 = scalar_lea.vmem [#allocation13], 128
    %v1440 = vld [vmem:[%s1439] sm:$0xff]
    %v1441 = vld [vmem:[%s1439 + $0x8] sm:$0xff]
    %v1442 = vld [vmem:[%s1439 + $0x10] sm:$0xff]
    %v1443 = vld [vmem:[%s1439 + $0x18] sm:$0xff]
    %v1444 = vld [vmem:[%s1439 + $0x20] sm:$0xff]
    %v1445 = vld [vmem:[%s1439 + $0x28] sm:$0xff]
    %v1446 = vld [vmem:[%s1439 + $0x30] sm:$0xff]
    %v1447 = vld [vmem:[%s1439 + $0x38] sm:$0xff]
    %v1448 = vld [vmem:[%s1439 + $0x40] sm:$0xff]
    %v1449 = vld [vmem:[%s1439 + $0x48] sm:$0xff]
    %v1450 = vld [vmem:[%s1439 + $0x50] sm:$0xff]
    %v1451 = vld [vmem:[%s1439 + $0x58] sm:$0xff]
    %v1452 = vld [vmem:[%s1439 + $0x60] sm:$0xff]
    %v1453 = vld [vmem:[%s1439 + $0x68] sm:$0xff]
    %v1454 = vld [vmem:[%s1439 + $0x70] sm:$0xff]
    %v1455 = vld [vmem:[%s1439 + $0x78] sm:$0xff]
    %s1456 = scalar_lea.vmem [#allocation14], 1
    %v1457 = vld [vmem:[%s1456] sm:$0x1]
    %v1459 = vperm.slane %v1457, 0
    %1461 = vmatpush.msra.mxu0 %v1455
    %1462 = vmatpush.msra.mxu0 %v1454
    %1463 = vmatpush.msra.mxu0 %v1453
    %1464 = vmatpush.msra.mxu0 %v1452
    %1465 = vmatpush.msra.mxu0 %v1451
    %1466 = vmatpush.msra.mxu0 %v1450
    %1467 = vmatpush.msra.mxu0 %v1449
    %1468 = vmatpush.msra.mxu0 %v1448
    %1469 = vmatpush.msra.mxu0 %v1447
    %1470 = vmatpush.msra.mxu0 %v1446
    %1471 = vmatpush.msra.mxu0 %v1445
    %1472 = vmatpush.msra.mxu0 %v1444
    %1473 = vmatpush.msra.mxu0 %v1443
    %1474 = vmatpush.msra.mxu0 %v1442
    %1475 = vmatpush.msra.mxu0 %v1441
    %1476 = vmatpush.msra.mxu0 %v1440
    %1477 = vmatmul.f32.gmra.mxu0 %v1435
    %v1478 = vpop.f32.mrf.mxu0
    %v1479 = vadd.f32 %v1459, %v1478
    %1480 = vmatmul.f32.gmra.mxu0 %v1436
    %v1481 = vpop.f32.mrf.mxu0
    %v1482 = vadd.f32 %v1459, %v1481
    %1483 = vmatmul.f32.gmra.mxu0 %v1437
    %v1484 = vpop.f32.mrf.mxu0
    %v1485 = vadd.f32 %v1459, %v1484
    %1486 = vmatmul.f32.gmra.mxu0 %v1438
    %v1487 = vpop.f32.mrf.mxu0
    %v1488 = vadd.f32 %v1459, %v1487
    %1489 = vdwg.mxu0
    %v1490 = vxor.u32 %v1479, 2147483648
    %v1491 = vxor.u32 %v1482, 2147483648
    %v1492 = vxor.u32 %v1485, 2147483648
    %v1493 = vxor.u32 %v1488, 2147483648
    %v1494 = vmul.f32 %v1490, 1.442695
    %v1495 = vpow.pop %v1494
    %v1496 = vmul.f32 %v1491, 1.442695
    %v1497 = vpow.pop %v1496
    %v1498 = vmul.f32 %v1492, 1.442695
    %v1499 = vpow.pop %v1498
    %v1500 = vmul.f32 %v1493, 1.442695
    %v1501 = vpow.pop %v1500
    %v1502 = vadd.f32 %v1495, 1.0
    %v1503 = vadd.f32 %v1497, 1.0
    %v1504 = vadd.f32 %v1499, 1.0
    %v1505 = vadd.f32 %v1501, 1.0
    %v1506 = vrcp.pop %v1502
    %v1507 = vmul.f32 %v1502, %v1506
    %v1508 = vsub.f32 1.0, %v1507
    %v1509 = vmul.f32 %v1506, %v1508
    %v1510 = vadd.f32 %v1506, %v1509
    %vm1511 = vweird.f32 %v1502
    %vm1512 = vweird.f32 %v1506
    %vm1513 = vmor %vm1511, %vm1512
    %v1514 = vsel %vm1513, %v1506, %v1510
    %v1515 = vand.u32 2147483647, %v1502
    %vm1516 = vcmp.eq.f32.partialorder %v1515, 8.507059e+37
    %v1517 = vand.u32 %v1502, 2147483648
    %v1518 = vor.u32 1.1754944e-38, %v1517
    %v1519 = vsel %vm1516, %v1518, %v1514
    %v1520 = vmul.f32 1.0, %v1519
    %v1521 = vrcp.pop %v1503
    %v1522 = vmul.f32 %v1503, %v1521
    %v1523 = vsub.f32 1.0, %v1522
    %v1524 = vmul.f32 %v1521, %v1523
    %v1525 = vadd.f32 %v1521, %v1524
    %vm1526 = vweird.f32 %v1503
    %vm1527 = vweird.f32 %v1521
    %vm1528 = vmor %vm1526, %vm1527
    %v1529 = vsel %vm1528, %v1521, %v1525
    %v1530 = vand.u32 2147483647, %v1503
    %vm1531 = vcmp.eq.f32.partialorder %v1530, 8.507059e+37
    %v1532 = vand.u32 %v1503, 2147483648
    %v1533 = vor.u32 1.1754944e-38, %v1532
    %v1534 = vsel %vm1531, %v1533, %v1529
    %v1535 = vmul.f32 1.0, %v1534
    %v1536 = vrcp.pop %v1504
    %v1537 = vmul.f32 %v1504, %v1536
    %v1538 = vsub.f32 1.0, %v1537
    %v1539 = vmul.f32 %v1536, %v1538
    %v1540 = vadd.f32 %v1536, %v1539
    %vm1541 = vweird.f32 %v1504
    %vm1542 = vweird.f32 %v1536
    %vm1543 = vmor %vm1541, %vm1542
    %v1544 = vsel %vm1543, %v1536, %v1540
    %v1545 = vand.u32 2147483647, %v1504
    %vm1546 = vcmp.eq.f32.partialorder %v1545, 8.507059e+37
    %v1547 = vand.u32 %v1504, 2147483648
    %v1548 = vor.u32 1.1754944e-38, %v1547
    %v1549 = vsel %vm1546, %v1548, %v1544
    %v1550 = vmul.f32 1.0, %v1549
    %v1551 = vrcp.pop %v1505
    %v1552 = vmul.f32 %v1505, %v1551
    %v1553 = vsub.f32 1.0, %v1552
    %v1554 = vmul.f32 %v1551, %v1553
    %v1555 = vadd.f32 %v1551, %v1554
    %vm1556 = vweird.f32 %v1505
    %vm1557 = vweird.f32 %v1551
    %vm1558 = vmor %vm1556, %vm1557
    %v1559 = vsel %vm1558, %v1551, %v1555
    %v1560 = vand.u32 2147483647, %v1505
    %vm1561 = vcmp.eq.f32.partialorder %v1560, 8.507059e+37
    %v1562 = vand.u32 %v1505, 2147483648
    %v1563 = vor.u32 1.1754944e-38, %v1562
    %v1564 = vsel %vm1561, %v1563, %v1559
    %v1565 = vmul.f32 1.0, %v1564
    %v1566 = vxor.u32 %v1297, 2147483648
    %v1567 = vxor.u32 %v1300, 2147483648
    %v1568 = vxor.u32 %v1303, 2147483648
    %v1569 = vxor.u32 %v1306, 2147483648
    %v1570 = vmul.f32 %v1566, 1.442695
    %v1571 = vpow.pop %v1570
    %v1572 = vmul.f32 %v1567, 1.442695
    %v1573 = vpow.pop %v1572
    %v1574 = vmul.f32 %v1568, 1.442695
    %v1575 = vpow.pop %v1574
    %v1576 = vmul.f32 %v1569, 1.442695
    %v1577 = vpow.pop %v1576
    %v1578 = vadd.f32 %v1571, 1.0
    %v1579 = vadd.f32 %v1573, 1.0
    %v1580 = vadd.f32 %v1575, 1.0
    %v1581 = vadd.f32 %v1577, 1.0
    %v1582 = vrcp.pop %v1578
    %v1583 = vmul.f32 %v1578, %v1582
    %v1584 = vsub.f32 1.0, %v1583
    %v1585 = vmul.f32 %v1582, %v1584
    %v1586 = vadd.f32 %v1582, %v1585
    %vm1587 = vweird.f32 %v1578
    %vm1588 = vweird.f32 %v1582
    %vm1589 = vmor %vm1587, %vm1588
    %v1590 = vsel %vm1589, %v1582, %v1586
    %v1591 = vand.u32 2147483647, %v1578
    %vm1592 = vcmp.eq.f32.partialorder %v1591, 8.507059e+37
    %v1593 = vand.u32 %v1578, 2147483648
    %v1594 = vor.u32 1.1754944e-38, %v1593
    %v1595 = vsel %vm1592, %v1594, %v1590
    %v1596 = vmul.f32 1.0, %v1595
    %v1597 = vrcp.pop %v1579
    %v1598 = vmul.f32 %v1579, %v1597
    %v1599 = vsub.f32 1.0, %v1598
    %v1600 = vmul.f32 %v1597, %v1599
    %v1601 = vadd.f32 %v1597, %v1600
    %vm1602 = vweird.f32 %v1579
    %vm1603 = vweird.f32 %v1597
    %vm1604 = vmor %vm1602, %vm1603
    %v1605 = vsel %vm1604, %v1597, %v1601
    %v1606 = vand.u32 2147483647, %v1579
    %vm1607 = vcmp.eq.f32.partialorder %v1606, 8.507059e+37
    %v1608 = vand.u32 %v1579, 2147483648
    %v1609 = vor.u32 1.1754944e-38, %v1608
    %v1610 = vsel %vm1607, %v1609, %v1605
    %v1611 = vmul.f32 1.0, %v1610
    %v1612 = vrcp.pop %v1580
    %v1613 = vmul.f32 %v1580, %v1612
    %v1614 = vsub.f32 1.0, %v1613
    %v1615 = vmul.f32 %v1612, %v1614
    %v1616 = vadd.f32 %v1612, %v1615
    %vm1617 = vweird.f32 %v1580
    %vm1618 = vweird.f32 %v1612
    %vm1619 = vmor %vm1617, %vm1618
    %v1620 = vsel %vm1619, %v1612, %v1616
    %v1621 = vand.u32 2147483647, %v1580
    %vm1622 = vcmp.eq.f32.partialorder %v1621, 8.507059e+37
    %v1623 = vand.u32 %v1580, 2147483648
    %v1624 = vor.u32 1.1754944e-38, %v1623
    %v1625 = vsel %vm1622, %v1624, %v1620
    %v1626 = vmul.f32 1.0, %v1625
    %v1627 = vrcp.pop %v1581
    %v1628 = vmul.f32 %v1581, %v1627
    %v1629 = vsub.f32 1.0, %v1628
    %v1630 = vmul.f32 %v1627, %v1629
    %v1631 = vadd.f32 %v1627, %v1630
    %vm1632 = vweird.f32 %v1581
    %vm1633 = vweird.f32 %v1627
    %vm1634 = vmor %vm1632, %vm1633
    %v1635 = vsel %vm1634, %v1627, %v1631
    %v1636 = vand.u32 2147483647, %v1581
    %vm1637 = vcmp.eq.f32.partialorder %v1636, 8.507059e+37
    %v1638 = vand.u32 %v1581, 2147483648
    %v1639 = vor.u32 1.1754944e-38, %v1638
    %v1640 = vsel %vm1637, %v1639, %v1635
    %v1641 = vmul.f32 1.0, %v1640
    %v1642 = vxor.u32 %v1200, 2147483648
    %v1643 = vxor.u32 %v1203, 2147483648
    %v1644 = vxor.u32 %v1206, 2147483648
    %v1645 = vxor.u32 %v1209, 2147483648
    %v1646 = vmul.f32 %v1642, 1.442695
    %v1647 = vpow.pop %v1646
    %v1648 = vmul.f32 %v1643, 1.442695
    %v1649 = vpow.pop %v1648
    %v1650 = vmul.f32 %v1644, 1.442695
    %v1651 = vpow.pop %v1650
    %v1652 = vmul.f32 %v1645, 1.442695
    %v1653 = vpow.pop %v1652
    %v1654 = vadd.f32 %v1647, 1.0
    %v1655 = vadd.f32 %v1649, 1.0
    %v1656 = vadd.f32 %v1651, 1.0
    %v1657 = vadd.f32 %v1653, 1.0
    %v1658 = vrcp.pop %v1654
    %v1659 = vmul.f32 %v1654, %v1658
    %v1660 = vsub.f32 1.0, %v1659
    %v1661 = vmul.f32 %v1658, %v1660
    %v1662 = vadd.f32 %v1658, %v1661
    %vm1663 = vweird.f32 %v1654
    %vm1664 = vweird.f32 %v1658
    %vm1665 = vmor %vm1663, %vm1664
    %v1666 = vsel %vm1665, %v1658, %v1662
    %v1667 = vand.u32 2147483647, %v1654
    %vm1668 = vcmp.eq.f32.partialorder %v1667, 8.507059e+37
    %v1669 = vand.u32 %v1654, 2147483648
    %v1670 = vor.u32 1.1754944e-38, %v1669
    %v1671 = vsel %vm1668, %v1670, %v1666
    %v1672 = vmul.f32 1.0, %v1671
    %v1673 = vrcp.pop %v1655
    %v1674 = vmul.f32 %v1655, %v1673
    %v1675 = vsub.f32 1.0, %v1674
    %v1676 = vmul.f32 %v1673, %v1675
    %v1677 = vadd.f32 %v1673, %v1676
    %vm1678 = vweird.f32 %v1655
    %vm1679 = vweird.f32 %v1673
    %vm1680 = vmor %vm1678, %vm1679
    %v1681 = vsel %vm1680, %v1673, %v1677
    %v1682 = vand.u32 2147483647, %v1655
    %vm1683 = vcmp.eq.f32.partialorder %v1682, 8.507059e+37
    %v1684 = vand.u32 %v1655, 2147483648
    %v1685 = vor.u32 1.1754944e-38, %v1684
    %v1686 = vsel %vm1683, %v1685, %v1681
    %v1687 = vmul.f32 1.0, %v1686
    %v1688 = vrcp.pop %v1656
    %v1689 = vmul.f32 %v1656, %v1688
    %v1690 = vsub.f32 1.0, %v1689
    %v1691 = vmul.f32 %v1688, %v1690
    %v1692 = vadd.f32 %v1688, %v1691
    %vm1693 = vweird.f32 %v1656
    %vm1694 = vweird.f32 %v1688
    %vm1695 = vmor %vm1693, %vm1694
    %v1696 = vsel %vm1695, %v1688, %v1692
    %v1697 = vand.u32 2147483647, %v1656
    %vm1698 = vcmp.eq.f32.partialorder %v1697, 8.507059e+37
    %v1699 = vand.u32 %v1656, 2147483648
    %v1700 = vor.u32 1.1754944e-38, %v1699
    %v1701 = vsel %vm1698, %v1700, %v1696
    %v1702 = vmul.f32 1.0, %v1701
    %v1703 = vrcp.pop %v1657
    %v1704 = vmul.f32 %v1657, %v1703
    %v1705 = vsub.f32 1.0, %v1704
    %v1706 = vmul.f32 %v1703, %v1705
    %v1707 = vadd.f32 %v1703, %v1706
    %vm1708 = vweird.f32 %v1657
    %vm1709 = vweird.f32 %v1703
    %vm1710 = vmor %vm1708, %vm1709
    %v1711 = vsel %vm1710, %v1703, %v1707
    %v1712 = vand.u32 2147483647, %v1657
    %vm1713 = vcmp.eq.f32.partialorder %v1712, 8.507059e+37
    %v1714 = vand.u32 %v1657, 2147483648
    %v1715 = vor.u32 1.1754944e-38, %v1714
    %v1716 = vsel %vm1713, %v1715, %v1711
    %v1717 = vmul.f32 1.0, %v1716
    %s1718 = sld [smem:[#allocation16 + $0x80]]
    %v1719 = vstv %s1718
    %v1720 = vmul.f32 %v1520, %v1719
    %v1721 = vmul.f32 %v1535, %v1719
    %v1722 = vmul.f32 %v1550, %v1719
    %v1723 = vmul.f32 %v1565, %v1719
    %s1724 = sld [smem:[#allocation16 + $0x81]]
    %v1725 = vstv %s1724
    %v1726 = vmul.f32 %v1596, %v1725
    %v1727 = vmul.f32 %v1611, %v1725
    %v1728 = vmul.f32 %v1626, %v1725
    %v1729 = vmul.f32 %v1641, %v1725
    %v1730 = vadd.f32 %v1720, %v1726
    %v1731 = vadd.f32 %v1721, %v1727
    %v1732 = vadd.f32 %v1722, %v1728
    %v1733 = vadd.f32 %v1723, %v1729
    %s1734 = sld [smem:[#allocation16 + $0x82]]
    %v1735 = vstv %s1734
    %v1736 = vmul.f32 %v1672, %v1735
    %v1737 = vmul.f32 %v1687, %v1735
    %v1738 = vmul.f32 %v1702, %v1735
    %v1739 = vmul.f32 %v1717, %v1735
    %v1740 = vadd.f32 %v1730, %v1736
    %v1741 = vadd.f32 %v1731, %v1737
    %v1742 = vadd.f32 %v1732, %v1738
    %v1743 = vadd.f32 %v1733, %v1739
    %s1744 = sld [smem:[#allocation16 + $0x83]]
    %v1745 = vstv %s1744
    %v1746 = vmul.f32 %v1520, %v1745
    %v1747 = vmul.f32 %v1535, %v1745
    %v1748 = vmul.f32 %v1550, %v1745
    %v1749 = vmul.f32 %v1565, %v1745
    %s1750 = sld [smem:[#allocation16 + $0x84]]
    %v1751 = vstv %s1750
    %v1752 = vmul.f32 %v1596, %v1751
    %v1753 = vmul.f32 %v1611, %v1751
    %v1754 = vmul.f32 %v1626, %v1751
    %v1755 = vmul.f32 %v1641, %v1751
    %v1756 = vadd.f32 %v1746, %v1752
    %v1757 = vadd.f32 %v1747, %v1753
    %v1758 = vadd.f32 %v1748, %v1754
    %v1759 = vadd.f32 %v1749, %v1755
    %s1760 = sld [smem:[#allocation16 + $0x85]]
    %v1761 = vstv %s1760
    %v1762 = vmul.f32 %v1672, %v1761
    %v1763 = vmul.f32 %v1687, %v1761
    %v1764 = vmul.f32 %v1702, %v1761
    %v1765 = vmul.f32 %v1717, %v1761
    %v1766 = vadd.f32 %v1756, %v1762
    %v1767 = vadd.f32 %v1757, %v1763
    %v1768 = vadd.f32 %v1758, %v1764
    %v1769 = vadd.f32 %v1759, %v1765
    %s1770 = sld [smem:[#allocation16 + $0x86]]
    %v1771 = vstv %s1770
    %v1772 = vmul.f32 %v1520, %v1771
    %v1773 = vmul.f32 %v1535, %v1771
    %v1774 = vmul.f32 %v1550, %v1771
    %v1775 = vmul.f32 %v1565, %v1771
    %s1776 = sld [smem:[#allocation16 + $0x87]]
    %v1777 = vstv %s1776
    %v1778 = vmul.f32 %v1596, %v1777
    %v1779 = vmul.f32 %v1611, %v1777
    %v1780 = vmul.f32 %v1626, %v1777
    %v1781 = vmul.f32 %v1641, %v1777
    %v1782 = vadd.f32 %v1772, %v1778
    %v1783 = vadd.f32 %v1773, %v1779
    %v1784 = vadd.f32 %v1774, %v1780
    %v1785 = vadd.f32 %v1775, %v1781
    %s1786 = sld [smem:[#allocation16 + $0x88]]
    %v1787 = vstv %s1786
    %v1788 = vmul.f32 %v1672, %v1787
    %v1789 = vmul.f32 %v1687, %v1787
    %v1790 = vmul.f32 %v1702, %v1787
    %v1791 = vmul.f32 %v1717, %v1787
    %v1792 = vadd.f32 %v1782, %v1788
    %v1793 = vadd.f32 %v1783, %v1789
    %v1794 = vadd.f32 %v1784, %v1790
    %v1795 = vadd.f32 %v1785, %v1791
    %v1796 = vmax.f32 %v1740, %v1766
    %v1797 = vmax.f32 %v1741, %v1767
    %v1798 = vmax.f32 %v1742, %v1768
    %v1799 = vmax.f32 %v1743, %v1769
    %v1800 = vmax.f32 %v1796, %v1792
    %v1801 = vmax.f32 %v1797, %v1793
    %v1802 = vmax.f32 %v1798, %v1794
    %v1803 = vmax.f32 %v1799, %v1795
    %v1804 = vsub.f32 %v1740, %v1800
    %v1805 = vsub.f32 %v1741, %v1801
    %v1806 = vsub.f32 %v1742, %v1802
    %v1807 = vsub.f32 %v1743, %v1803
    %v1808 = vmul.f32 %v1804, 1.442695
    %v1809 = vpow.pop %v1808
    %v1810 = vmul.f32 %v1805, 1.442695
    %v1811 = vpow.pop %v1810
    %v1812 = vmul.f32 %v1806, 1.442695
    %v1813 = vpow.pop %v1812
    %v1814 = vmul.f32 %v1807, 1.442695
    %v1815 = vpow.pop %v1814
    %v1816 = vsub.f32 %v1766, %v1800
    %v1817 = vsub.f32 %v1767, %v1801
    %v1818 = vsub.f32 %v1768, %v1802
    %v1819 = vsub.f32 %v1769, %v1803
    %v1820 = vmul.f32 %v1816, 1.442695
    %v1821 = vpow.pop %v1820
    %v1822 = vmul.f32 %v1817, 1.442695
    %v1823 = vpow.pop %v1822
    %v1824 = vmul.f32 %v1818, 1.442695
    %v1825 = vpow.pop %v1824
    %v1826 = vmul.f32 %v1819, 1.442695
    %v1827 = vpow.pop %v1826
    %v1828 = vsub.f32 %v1792, %v1800
    %v1829 = vsub.f32 %v1793, %v1801
    %v1830 = vsub.f32 %v1794, %v1802
    %v1831 = vsub.f32 %v1795, %v1803
    %v1832 = vmul.f32 %v1828, 1.442695
    %v1833 = vpow.pop %v1832
    %v1834 = vmul.f32 %v1829, 1.442695
    %v1835 = vpow.pop %v1834
    %v1836 = vmul.f32 %v1830, 1.442695
    %v1837 = vpow.pop %v1836
    %v1838 = vmul.f32 %v1831, 1.442695
    %v1839 = vpow.pop %v1838
    %v1840 = vadd.f32 %v1809, %v1821
    %v1841 = vadd.f32 %v1811, %v1823
    %v1842 = vadd.f32 %v1813, %v1825
    %v1843 = vadd.f32 %v1815, %v1827
    %v1844 = vadd.f32 %v1840, %v1833
    %v1845 = vadd.f32 %v1841, %v1835
    %v1846 = vadd.f32 %v1842, %v1837
    %v1847 = vadd.f32 %v1843, %v1839
    %v1848 = vrcp.pop %v1844
    %v1849 = vrcp.pop %v1845
    %v1850 = vrcp.pop %v1846
    %v1851 = vrcp.pop %v1847
    %v1852 = vmul.f32 %v1844, %v1848
    %v1853 = vmul.f32 %v1845, %v1849
    %v1854 = vmul.f32 %v1846, %v1850
    %v1855 = vmul.f32 %v1847, %v1851
    %v1856 = vsub.f32 2.0, %v1852
    %v1857 = vsub.f32 2.0, %v1853
    %v1858 = vsub.f32 2.0, %v1854
    %v1859 = vsub.f32 2.0, %v1855
    %v1860 = vmul.f32 %v1848, %v1856
    %v1861 = vmul.f32 %v1849, %v1857
    %v1862 = vmul.f32 %v1850, %v1858
    %v1863 = vmul.f32 %v1851, %v1859
    %v1864 = vmul.f32 %v1809, %v1860
    %v1865 = vmul.f32 %v1811, %v1861
    %v1866 = vmul.f32 %v1813, %v1862
    %v1867 = vmul.f32 %v1815, %v1863
    %1869 = vset.pattern.permute.xlu0 32
    %1870 = vperm.xlu0 %1869, %v1864
    %v1871 = vpop.permute.xlu0 %1870
    %1874 = vset.pattern.permute.xlu0 32
    %1875 = vperm.xlu0 %1874, %v1865
    %v1876 = vpop.permute.xlu0 %1875
    %1879 = vset.pattern.permute.xlu0 32
    %1880 = vperm.xlu0 %1879, %v1866
    %v1881 = vpop.permute.xlu0 %1880
    %1884 = vset.pattern.permute.xlu0 32
    %1885 = vperm.xlu0 %1884, %v1867
    %v1886 = vpop.permute.xlu0 %1885
    %v1888 = vmul.f32 %v1871, %v1479
    %v1889 = vmul.f32 %v1876, %v1482
    %v1890 = vmul.f32 %v1881, %v1485
    %v1891 = vmul.f32 %v1886, %v1488
    %v1892 = vmul.f32 %v1821, %v1860
    %v1893 = vmul.f32 %v1823, %v1861
    %v1894 = vmul.f32 %v1825, %v1862
    %v1895 = vmul.f32 %v1827, %v1863
    %1897 = vset.pattern.permute.xlu0 32
    %1898 = vperm.xlu0 %1897, %v1892
    %v1899 = vpop.permute.xlu0 %1898
    %1902 = vset.pattern.permute.xlu0 32
    %1903 = vperm.xlu0 %1902, %v1893
    %v1904 = vpop.permute.xlu0 %1903
    %1907 = vset.pattern.permute.xlu0 32
    %1908 = vperm.xlu0 %1907, %v1894
    %v1909 = vpop.permute.xlu0 %1908
    %1912 = vset.pattern.permute.xlu0 32
    %1913 = vperm.xlu0 %1912, %v1895
    %v1914 = vpop.permute.xlu0 %1913
    %v1916 = vmul.f32 %v1899, %v1297
    %v1917 = vmul.f32 %v1904, %v1300
    %v1918 = vmul.f32 %v1909, %v1303
    %v1919 = vmul.f32 %v1914, %v1306
    %v1920 = vadd.f32 %v1888, %v1916
    %v1921 = vadd.f32 %v1889, %v1917
    %v1922 = vadd.f32 %v1890, %v1918
    %v1923 = vadd.f32 %v1891, %v1919
    %v1924 = vmul.f32 %v1833, %v1860
    %v1925 = vmul.f32 %v1835, %v1861
    %v1926 = vmul.f32 %v1837, %v1862
    %v1927 = vmul.f32 %v1839, %v1863
    %1929 = vset.pattern.permute.xlu0 32
    %1930 = vperm.xlu0 %1929, %v1924
    %v1931 = vpop.permute.xlu0 %1930
    %1934 = vset.pattern.permute.xlu0 32
    %1935 = vperm.xlu0 %1934, %v1925
    %v1936 = vpop.permute.xlu0 %1935
    %1939 = vset.pattern.permute.xlu0 32
    %1940 = vperm.xlu0 %1939, %v1926
    %v1941 = vpop.permute.xlu0 %1940
    %1944 = vset.pattern.permute.xlu0 32
    %1945 = vperm.xlu0 %1944, %v1927
    %v1946 = vpop.permute.xlu0 %1945
    %v1948 = vmul.f32 %v1931, %v1200
    %v1949 = vmul.f32 %v1936, %v1203
    %v1950 = vmul.f32 %v1941, %v1206
    %v1951 = vmul.f32 %v1946, %v1209
    %v1952 = vadd.f32 %v1920, %v1948
    %v1953 = vadd.f32 %v1921, %v1949
    %v1954 = vadd.f32 %v1922, %v1950
    %v1955 = vadd.f32 %v1923, %v1951
    %v1956 = vmax.f32 %v1952, 0.0
    %v1957 = vmax.f32 %v1953, 0.0
    %v1958 = vmax.f32 %v1954, 0.0
    %v1959 = vmax.f32 %v1955, 0.0
    %s1960 = scalar_lea.vmem [#allocation10], 768
    %v1961 = vld [vmem:[%s1960] sm:$0xff]
    %v1962 = vld [vmem:[%s1960 + $0x8] sm:$0xff]
    %v1963 = vld [vmem:[%s1960 + $0x10] sm:$0xff]
    %v1964 = vld [vmem:[%s1960 + $0x18] sm:$0xff]
    %v1965 = vld [vmem:[%s1960 + $0x20] sm:$0xff]
    %v1966 = vld [vmem:[%s1960 + $0x28] sm:$0xff]
    %v1967 = vld [vmem:[%s1960 + $0x30] sm:$0xff]
    %v1968 = vld [vmem:[%s1960 + $0x38] sm:$0xff]
    %v1969 = vld [vmem:[%s1960 + $0x40] sm:$0xff]
    %v1970 = vld [vmem:[%s1960 + $0x48] sm:$0xff]
    %v1971 = vld [vmem:[%s1960 + $0x50] sm:$0xff]
    %v1972 = vld [vmem:[%s1960 + $0x58] sm:$0xff]
    %v1973 = vld [vmem:[%s1960 + $0x60] sm:$0xff]
    %v1974 = vld [vmem:[%s1960 + $0x68] sm:$0xff]
    %v1975 = vld [vmem:[%s1960 + $0x70] sm:$0xff]
    %v1976 = vld [vmem:[%s1960 + $0x78] sm:$0xff]
    %v1977 = vld [vmem:[%s1960 + $0x80] sm:$0xff]
    %v1978 = vld [vmem:[%s1960 + $0x88] sm:$0xff]
    %v1979 = vld [vmem:[%s1960 + $0x90] sm:$0xff]
    %v1980 = vld [vmem:[%s1960 + $0x98] sm:$0xff]
    %v1981 = vld [vmem:[%s1960 + $0xa0] sm:$0xff]
    %v1982 = vld [vmem:[%s1960 + $0xa8] sm:$0xff]
    %v1983 = vld [vmem:[%s1960 + $0xb0] sm:$0xff]
    %v1984 = vld [vmem:[%s1960 + $0xb8] sm:$0xff]
    %v1985 = vld [vmem:[%s1960 + $0xc0] sm:$0xff]
    %v1986 = vld [vmem:[%s1960 + $0xc8] sm:$0xff]
    %v1987 = vld [vmem:[%s1960 + $0xd0] sm:$0xff]
    %v1988 = vld [vmem:[%s1960 + $0xd8] sm:$0xff]
    %v1989 = vld [vmem:[%s1960 + $0xe0] sm:$0xff]
    %v1990 = vld [vmem:[%s1960 + $0xe8] sm:$0xff]
    %v1991 = vld [vmem:[%s1960 + $0xf0] sm:$0xff]
    %v1992 = vld [vmem:[%s1960 + $0xf8] sm:$0xff]
    %v1993 = vld [vmem:[%s1960 + $0x100] sm:$0xff]
    %v1994 = vld [vmem:[%s1960 + $0x108] sm:$0xff]
    %v1995 = vld [vmem:[%s1960 + $0x110] sm:$0xff]
    %v1996 = vld [vmem:[%s1960 + $0x118] sm:$0xff]
    %v1997 = vld [vmem:[%s1960 + $0x120] sm:$0xff]
    %v1998 = vld [vmem:[%s1960 + $0x128] sm:$0xff]
    %v1999 = vld [vmem:[%s1960 + $0x130] sm:$0xff]
    %v2000 = vld [vmem:[%s1960 + $0x138] sm:$0xff]
    %v2001 = vld [vmem:[%s1960 + $0x140] sm:$0xff]
    %v2002 = vld [vmem:[%s1960 + $0x148] sm:$0xff]
    %v2003 = vld [vmem:[%s1960 + $0x150] sm:$0xff]
    %v2004 = vld [vmem:[%s1960 + $0x158] sm:$0xff]
    %v2005 = vld [vmem:[%s1960 + $0x160] sm:$0xff]
    %v2006 = vld [vmem:[%s1960 + $0x168] sm:$0xff]
    %v2007 = vld [vmem:[%s1960 + $0x170] sm:$0xff]
    %v2008 = vld [vmem:[%s1960 + $0x178] sm:$0xff]
    %s2009 = scalar_lea.vmem [#allocation11], 6
    %v2010 = vld [vmem:[%s2009] sm:$0x7]
    %v2012 = vperm.slane %v2010, 0
    %v2013 = vperm.slane %v2010, 1
    %v2014 = vperm.slane %v2010, 2
    %2018 = vmatpush.msra.mxu0 %v2006
    %2019 = vmatpush.msra.mxu0 %v2003
    %2020 = vmatpush.msra.mxu0 %v2000
    %2021 = vmatpush.msra.mxu0 %v1997
    %2022 = vmatpush.msra.mxu0 %v1994
    %2023 = vmatpush.msra.mxu0 %v1991
    %2024 = vmatpush.msra.mxu0 %v1988
    %2025 = vmatpush.msra.mxu0 %v1985
    %2026 = vmatpush.msra.mxu0 %v1982
    %2027 = vmatpush.msra.mxu0 %v1979
    %2028 = vmatpush.msra.mxu0 %v1976
    %2029 = vmatpush.msra.mxu0 %v1973
    %2030 = vmatpush.msra.mxu0 %v1970
    %2031 = vmatpush.msra.mxu0 %v1967
    %2032 = vmatpush.msra.mxu0 %v1964
    %2033 = vmatpush.msra.mxu0 %v1961
    %2034 = vmatmul.f32.gmra.mxu0 %v1956
    %v2035 = vpop.f32.mrf.mxu0
    %v2036 = vadd.f32 %v2012, %v2035
    %2037 = vmatmul.f32.gmra.mxu0 %v1957
    %v2038 = vpop.f32.mrf.mxu0
    %v2039 = vadd.f32 %v2012, %v2038
    %2040 = vmatmul.f32.gmra.mxu0 %v1958
    %v2041 = vpop.f32.mrf.mxu0
    %v2042 = vadd.f32 %v2012, %v2041
    %2043 = vmatmul.f32.gmra.mxu0 %v1959
    %v2044 = vpop.f32.mrf.mxu0
    %v2045 = vadd.f32 %v2012, %v2044
    %2046 = vdwg.mxu0
    %2047 = vmatpush.msra.mxu0 %v2007
    %2048 = vmatpush.msra.mxu0 %v2004
    %2049 = vmatpush.msra.mxu0 %v2001
    %2050 = vmatpush.msra.mxu0 %v1998
    %2051 = vmatpush.msra.mxu0 %v1995
    %2052 = vmatpush.msra.mxu0 %v1992
    %2053 = vmatpush.msra.mxu0 %v1989
    %2054 = vmatpush.msra.mxu0 %v1986
    %2055 = vmatpush.msra.mxu0 %v1983
    %2056 = vmatpush.msra.mxu0 %v1980
    %2057 = vmatpush.msra.mxu0 %v1977
    %2058 = vmatpush.msra.mxu0 %v1974
    %2059 = vmatpush.msra.mxu0 %v1971
    %2060 = vmatpush.msra.mxu0 %v1968
    %2061 = vmatpush.msra.mxu0 %v1965
    %2062 = vmatpush.msra.mxu0 %v1962
    %2063 = vmatmul.f32.gmra.mxu0 %v1956
    %v2064 = vpop.f32.mrf.mxu0
    %v2065 = vadd.f32 %v2013, %v2064
    %2066 = vmatmul.f32.gmra.mxu0 %v1957
    %v2067 = vpop.f32.mrf.mxu0
    %v2068 = vadd.f32 %v2013, %v2067
    %2069 = vmatmul.f32.gmra.mxu0 %v1958
    %v2070 = vpop.f32.mrf.mxu0
    %v2071 = vadd.f32 %v2013, %v2070
    %2072 = vmatmul.f32.gmra.mxu0 %v1959
    %v2073 = vpop.f32.mrf.mxu0
    %v2074 = vadd.f32 %v2013, %v2073
    %2075 = vdwg.mxu0
    %2076 = vmatpush.msra.mxu0 %v2008
    %2077 = vmatpush.msra.mxu0 %v2005
    %2078 = vmatpush.msra.mxu0 %v2002
    %2079 = vmatpush.msra.mxu0 %v1999
    %2080 = vmatpush.msra.mxu0 %v1996
    %2081 = vmatpush.msra.mxu0 %v1993
    %2082 = vmatpush.msra.mxu0 %v1990
    %2083 = vmatpush.msra.mxu0 %v1987
    %2084 = vmatpush.msra.mxu0 %v1984
    %2085 = vmatpush.msra.mxu0 %v1981
    %2086 = vmatpush.msra.mxu0 %v1978
    %2087 = vmatpush.msra.mxu0 %v1975
    %2088 = vmatpush.msra.mxu0 %v1972
    %2089 = vmatpush.msra.mxu0 %v1969
    %2090 = vmatpush.msra.mxu0 %v1966
    %2091 = vmatpush.msra.mxu0 %v1963
    %2092 = vmatmul.f32.gmra.mxu0 %v1956
    %v2093 = vpop.f32.mrf.mxu0
    %v2094 = vadd.f32 %v2014, %v2093
    %2095 = vmatmul.f32.gmra.mxu0 %v1957
    %v2096 = vpop.f32.mrf.mxu0
    %v2097 = vadd.f32 %v2014, %v2096
    %2098 = vmatmul.f32.gmra.mxu0 %v1958
    %v2099 = vpop.f32.mrf.mxu0
    %v2100 = vadd.f32 %v2014, %v2099
    %2101 = vmatmul.f32.gmra.mxu0 %v1959
    %v2102 = vpop.f32.mrf.mxu0
    %v2103 = vadd.f32 %v2014, %v2102
    %2104 = vdwg.mxu0
    %v2105 = vtanh.pop %v2065
    %v2106 = vtanh.pop %v2068
    %v2107 = vtanh.pop %v2071
    %v2108 = vtanh.pop %v2074
    %vm2109 = vcmp.eq.f32.partialorder %v2105, 0.0
    %vm2110 = vcmp.eq.f32.partialorder %v2106, 0.0
    %vm2111 = vcmp.eq.f32.partialorder %v2107, 0.0
    %vm2112 = vcmp.eq.f32.partialorder %v2108, 0.0
    %v2113 = vand.u32 2147483647, %v2105
    %v2114 = vand.u32 2147483647, %v2106
    %v2115 = vand.u32 2147483647, %v2107
    %v2116 = vand.u32 2147483647, %v2108
    %v2117 = vsel %vm2109, 1.0, %v2113
    %v2118 = vsel %vm2110, 1.0, %v2114
    %v2119 = vsel %vm2111, 1.0, %v2115
    %v2120 = vsel %vm2112, 1.0, %v2116
    %v2121 = vlog2.pop %v2117
    %v2122 = vmul.f32 %v2121, 0.6931472
    %v2123 = vlog2.pop %v2118
    %v2124 = vmul.f32 %v2123, 0.6931472
    %v2125 = vlog2.pop %v2119
    %v2126 = vmul.f32 %v2125, 0.6931472
    %v2127 = vlog2.pop %v2120
    %v2128 = vmul.f32 %v2127, 0.6931472
    %2129 = vst [vmem:[#allocation2] sm:$0xff] %v2036
    %2130 = vst [vmem:[#allocation2 + $0x10] sm:$0xff] %v2039
    %2131 = vst [vmem:[#allocation2 + $0x20] sm:$0xff] %v2042
    %2132 = vst [vmem:[#allocation2 + $0x30] sm:$0xff] %v2045
    %2133 = vst [vmem:[#allocation2 + $0x8] sm:$0xff] %v2122
    %2134 = vst [vmem:[#allocation2 + $0x18] sm:$0xff] %v2124
    %2135 = vst [vmem:[#allocation2 + $0x28] sm:$0xff] %v2126
    %2136 = vst [vmem:[#allocation2 + $0x38] sm:$0xff] %v2128
    %vm2137 = vcmp.lt.f32.partialorder %v2105, 0.0
    %vm2138 = vcmp.lt.f32.partialorder %v2106, 0.0
    %vm2139 = vcmp.lt.f32.partialorder %v2107, 0.0
    %vm2140 = vcmp.lt.f32.partialorder %v2108, 0.0
    %v2141 = vsel %vm2137, 1.0, 0.0
    %v2142 = vsel %vm2138, 1.0, 0.0
    %v2143 = vsel %vm2139, 1.0, 0.0
    %v2144 = vsel %vm2140, 1.0, 0.0
    %v2145 = vpack.c.bf16 %v2141, %v2141
    %v2146 = vpack.c.bf16 %v2142, %v2142
    %v2147 = vpack.c.bf16 %v2143, %v2143
    %v2148 = vpack.c.bf16 %v2144, %v2144
    %2149 = vst [vmem:[#allocation3] sm:$0xf] %v2145
    %2150 = vst [vmem:[#allocation3 + $0x8] sm:$0xf] %v2146
    %2151 = vst [vmem:[#allocation3 + $0x10] sm:$0xf] %v2147
    %2152 = vst [vmem:[#allocation3 + $0x18] sm:$0xf] %v2148
    %v2153 = vsel %vm2109, 1.0, 0.0
    %v2154 = vsel %vm2110, 1.0, 0.0
    %v2155 = vsel %vm2111, 1.0, 0.0
    %v2156 = vsel %vm2112, 1.0, 0.0
    %v2157 = vpack.c.bf16 %v2153, %v2153
    %v2158 = vpack.c.bf16 %v2154, %v2154
    %v2159 = vpack.c.bf16 %v2155, %v2155
    %v2160 = vpack.c.bf16 %v2156, %v2156
    %2161 = vst [vmem:[#allocation3 + $0x4] sm:$0xf] %v2157
    %2162 = vst [vmem:[#allocation3 + $0xc] sm:$0xf] %v2158
    %2163 = vst [vmem:[#allocation3 + $0x14] sm:$0xf] %v2159
    %2164 = vst [vmem:[#allocation3 + $0x1c] sm:$0xf] %v2160
    %v2165 = vld [vmem:[#allocation2] sm:$0xff]
    %v2166 = vld [vmem:[#allocation2 + $0x8] sm:$0xff]
    %v2167 = vld [vmem:[#allocation2 + $0x10] sm:$0xff]
    %v2168 = vld [vmem:[#allocation2 + $0x18] sm:$0xff]
    %v2169 = vld [vmem:[#allocation2 + $0x20] sm:$0xff]
    %v2170 = vld [vmem:[#allocation2 + $0x28] sm:$0xff]
    %v2171 = vld [vmem:[#allocation2 + $0x30] sm:$0xff]
    %v2172 = vld [vmem:[#allocation2 + $0x38] sm:$0xff]
    %2173 = vmatpush.msra.mxu0 0.0
    %2174 = vmatpush.msra.mxu0 0.0
    %2175 = vmatpush.msra.mxu0 0.0
    %2176 = vmatpush.msra.mxu0 0.0
    %2177 = vmatpush.msra.mxu0 0.0
    %2178 = vmatpush.msra.mxu0 0.0
    %2179 = vmatpush.msra.mxu0 0.0
    %2180 = vmatpush.msra.mxu0 0.0
    %2181 = vmatpush.msra.mxu0 0.0
    %2182 = vmatpush.msra.mxu0 0.0
    %2183 = vmatpush.msra.mxu0 0.0
    %2184 = vmatpush.msra.mxu0 0.0
    %2185 = vmatpush.msra.mxu0 %v2171
    %2186 = vmatpush.msra.mxu0 %v2169
    %2187 = vmatpush.msra.mxu0 %v2167
    %2188 = vmatpush.msra.mxu0 %v2165
    %2189 = vmatmul.f32.gmra.mxu0 %v360
    %v2190 = vpop.f32.mrf.mxu0
    %v2191 = vadd.f32 0.0, %v2190
    %2192 = vmatmul.f32.gmra.mxu0 %v363
    %v2193 = vpop.f32.mrf.mxu0
    %v2194 = vadd.f32 0.0, %v2193
    %2195 = vmatmul.f32.gmra.mxu0 %v366
    %v2196 = vpop.f32.mrf.mxu0
    %v2197 = vadd.f32 0.0, %v2196
    %2198 = vmatmul.f32.gmra.mxu0 %v369
    %v2199 = vpop.f32.mrf.mxu0
    %v2200 = vadd.f32 0.0, %v2199
    %2201 = vdwg.mxu0
    %2202 = vmatpush.msra.mxu0 0.0
    %2203 = vmatpush.msra.mxu0 0.0
    %2204 = vmatpush.msra.mxu0 0.0
    %2205 = vmatpush.msra.mxu0 0.0
    %2206 = vmatpush.msra.mxu0 0.0
    %2207 = vmatpush.msra.mxu0 0.0
    %2208 = vmatpush.msra.mxu0 0.0
    %2209 = vmatpush.msra.mxu0 0.0
    %2210 = vmatpush.msra.mxu0 0.0
    %2211 = vmatpush.msra.mxu0 0.0
    %2212 = vmatpush.msra.mxu0 0.0
    %2213 = vmatpush.msra.mxu0 0.0
    %2214 = vmatpush.msra.mxu0 %v2172
    %2215 = vmatpush.msra.mxu0 %v2170
    %2216 = vmatpush.msra.mxu0 %v2168
    %2217 = vmatpush.msra.mxu0 %v2166
    %2218 = vmatmul.f32.gmra.mxu0 %v360
    %v2219 = vpop.f32.mrf.mxu0
    %v2220 = vadd.f32 0.0, %v2219
    %2221 = vmatmul.f32.gmra.mxu0 %v363
    %v2222 = vpop.f32.mrf.mxu0
    %v2223 = vadd.f32 0.0, %v2222
    %2224 = vmatmul.f32.gmra.mxu0 %v366
    %v2225 = vpop.f32.mrf.mxu0
    %v2226 = vadd.f32 0.0, %v2225
    %2227 = vmatmul.f32.gmra.mxu0 %v369
    %v2228 = vpop.f32.mrf.mxu0
    %v2229 = vadd.f32 0.0, %v2228
    %2230 = vdwg.mxu0
    %v2231 = vld [vmem:[#allocation3] sm:$0xff]
    %v2232 = vld [vmem:[#allocation3 + $0x8] sm:$0xff]
    %v2233 = vld [vmem:[#allocation3 + $0x10] sm:$0xff]
    %v2234 = vld [vmem:[#allocation3 + $0x18] sm:$0xff]
    %v2239 = vunpack.c.l.b16 %v2231
    %v2240 = vunpack.c.h.b16 %v2231
    %v2241 = vunpack.c.l.b16 %v2232
    %v2242 = vunpack.c.h.b16 %v2232
    %v2243 = vunpack.c.l.b16 %v2233
    %v2244 = vunpack.c.h.b16 %v2233
    %v2245 = vunpack.c.l.b16 %v2234
    %v2246 = vunpack.c.h.b16 %v2234
    %v2247 = vpack.c.b16 %v2241, %v2239
    %v2248 = vpack.c.b16 %v2242, %v2240
    %v2249 = vpack.c.b16 %v2245, %v2243
    %v2250 = vpack.c.b16 %v2246, %v2244
    %2255 = vmatpush.bf16.msra.mxu0 0
    %2256 = vmatpush.bf16.msra.mxu0 0
    %2257 = vmatpush.bf16.msra.mxu0 0
    %2258 = vmatpush.bf16.msra.mxu0 0
    %2259 = vmatpush.bf16.msra.mxu0 0
    %2260 = vmatpush.bf16.msra.mxu0 0
    %2261 = vmatpush.bf16.msra.mxu0 %v2249
    %2262 = vmatpush.bf16.msra.mxu0 %v2247
    %2263 = vmatmul.bf16.gmra.mxu0 %v464
    %v2264 = vpop.f32.mrf.mxu0
    %v2265 = vadd.f32 0.0, %v2264
    %v2266 = vpop.f32.mrf.mxu0
    %v2267 = vadd.f32 0.0, %v2266
    %2268 = vmatmul.bf16.gmra.mxu0 %v467
    %v2269 = vpop.f32.mrf.mxu0
    %v2270 = vadd.f32 0.0, %v2269
    %v2271 = vpop.f32.mrf.mxu0
    %v2272 = vadd.f32 0.0, %v2271
    %2273 = vdwg.mxu0
    %2274 = vmatpush.bf16.msra.mxu0 0
    %2275 = vmatpush.bf16.msra.mxu0 0
    %2276 = vmatpush.bf16.msra.mxu0 0
    %2277 = vmatpush.bf16.msra.mxu0 0
    %2278 = vmatpush.bf16.msra.mxu0 0
    %2279 = vmatpush.bf16.msra.mxu0 0
    %2280 = vmatpush.bf16.msra.mxu0 %v2250
    %2281 = vmatpush.bf16.msra.mxu0 %v2248
    %2282 = vmatmul.bf16.gmra.mxu0 %v464
    %v2283 = vpop.f32.mrf.mxu0
    %v2284 = vadd.f32 0.0, %v2283
    %v2285 = vpop.f32.mrf.mxu0
    %v2286 = vadd.f32 0.0, %v2285
    %2287 = vmatmul.bf16.gmra.mxu0 %v467
    %v2288 = vpop.f32.mrf.mxu0
    %v2289 = vadd.f32 0.0, %v2288
    %v2290 = vpop.f32.mrf.mxu0
    %v2291 = vadd.f32 0.0, %v2290
    %2292 = vdwg.mxu0
    %v2293 = vcvt.f32.s32.to.zero.pseudo %v2265
    %v2294 = vcvt.f32.s32.to.zero.pseudo %v2267
    %v2295 = vcvt.f32.s32.to.zero.pseudo %v2270
    %v2296 = vcvt.f32.s32.to.zero.pseudo %v2272
    %v2297 = vand.u32 %v2293, 1
    %v2298 = vand.u32 %v2294, 1
    %v2299 = vand.u32 %v2295, 1
    %v2300 = vand.u32 %v2296, 1
    %v2301 = vcvt.s32.f32 %v2297
    %v2302 = vcvt.s32.f32 %v2298
    %v2303 = vcvt.s32.f32 %v2299
    %v2304 = vcvt.s32.f32 %v2300
    %v2305 = vmul.f32 %v2301, 2.0
    %v2306 = vmul.f32 %v2302, 2.0
    %v2307 = vmul.f32 %v2303, 2.0
    %v2308 = vmul.f32 %v2304, 2.0
    %v2309 = vsub.f32 1.0, %v2305
    %v2310 = vsub.f32 1.0, %v2306
    %v2311 = vsub.f32 1.0, %v2307
    %v2312 = vsub.f32 1.0, %v2308
    %vm2313 = vcmp.gt.f32.partialorder %v2284, 0.5
    %vm2314 = vcmp.gt.f32.partialorder %v2286, 0.5
    %vm2315 = vcmp.gt.f32.partialorder %v2289, 0.5
    %vm2316 = vcmp.gt.f32.partialorder %v2291, 0.5
    %v2317 = vmul.f32 %v2220, 1.442695
    %v2318 = vpow.pop %v2317
    %v2319 = vmul.f32 %v2223, 1.442695
    %v2320 = vpow.pop %v2319
    %v2321 = vmul.f32 %v2226, 1.442695
    %v2322 = vpow.pop %v2321
    %v2323 = vmul.f32 %v2229, 1.442695
    %v2324 = vpow.pop %v2323
    %v2325 = vmul.f32 %v2309, %v2318
    %v2326 = vmul.f32 %v2310, %v2320
    %v2327 = vmul.f32 %v2311, %v2322
    %v2328 = vmul.f32 %v2312, %v2324
    %v2329 = vsel %vm2313, 0.0, %v2325
    %v2330 = vsel %vm2314, 0.0, %v2326
    %v2331 = vsel %vm2315, 0.0, %v2327
    %v2332 = vsel %vm2316, 0.0, %v2328
    %s2333 = scalar_lea.vmem [#allocation13], 256
    %v2334 = vld [vmem:[%s2333] sm:$0xff]
    %v2335 = vld [vmem:[%s2333 + $0x8] sm:$0xff]
    %v2336 = vld [vmem:[%s2333 + $0x10] sm:$0xff]
    %v2337 = vld [vmem:[%s2333 + $0x18] sm:$0xff]
    %v2338 = vld [vmem:[%s2333 + $0x20] sm:$0xff]
    %v2339 = vld [vmem:[%s2333 + $0x28] sm:$0xff]
    %v2340 = vld [vmem:[%s2333 + $0x30] sm:$0xff]
    %v2341 = vld [vmem:[%s2333 + $0x38] sm:$0xff]
    %v2342 = vld [vmem:[%s2333 + $0x40] sm:$0xff]
    %v2343 = vld [vmem:[%s2333 + $0x48] sm:$0xff]
    %v2344 = vld [vmem:[%s2333 + $0x50] sm:$0xff]
    %v2345 = vld [vmem:[%s2333 + $0x58] sm:$0xff]
    %v2346 = vld [vmem:[%s2333 + $0x60] sm:$0xff]
    %v2347 = vld [vmem:[%s2333 + $0x68] sm:$0xff]
    %v2348 = vld [vmem:[%s2333 + $0x70] sm:$0xff]
    %v2349 = vld [vmem:[%s2333 + $0x78] sm:$0xff]
    %s2350 = scalar_lea.vmem [#allocation14], 2
    %v2351 = vld [vmem:[%s2350] sm:$0x1]
    %v2353 = vperm.slane %v2351, 0
    %2355 = vmatpush.msra.mxu0 %v2349
    %2356 = vmatpush.msra.mxu0 %v2348
    %2357 = vmatpush.msra.mxu0 %v2347
    %2358 = vmatpush.msra.mxu0 %v2346
    %2359 = vmatpush.msra.mxu0 %v2345
    %2360 = vmatpush.msra.mxu0 %v2344
    %2361 = vmatpush.msra.mxu0 %v2343
    %2362 = vmatpush.msra.mxu0 %v2342
    %2363 = vmatpush.msra.mxu0 %v2341
    %2364 = vmatpush.msra.mxu0 %v2340
    %2365 = vmatpush.msra.mxu0 %v2339
    %2366 = vmatpush.msra.mxu0 %v2338
    %2367 = vmatpush.msra.mxu0 %v2337
    %2368 = vmatpush.msra.mxu0 %v2336
    %2369 = vmatpush.msra.mxu0 %v2335
    %2370 = vmatpush.msra.mxu0 %v2334
    %2371 = vmatmul.f32.gmra.mxu0 %v2329
    %v2372 = vpop.f32.mrf.mxu0
    %v2373 = vadd.f32 %v2353, %v2372
    %2374 = vmatmul.f32.gmra.mxu0 %v2330
    %v2375 = vpop.f32.mrf.mxu0
    %v2376 = vadd.f32 %v2353, %v2375
    %2377 = vmatmul.f32.gmra.mxu0 %v2331
    %v2378 = vpop.f32.mrf.mxu0
    %v2379 = vadd.f32 %v2353, %v2378
    %2380 = vmatmul.f32.gmra.mxu0 %v2332
    %v2381 = vpop.f32.mrf.mxu0
    %v2382 = vadd.f32 %v2353, %v2381
    %2383 = vdwg.mxu0
    %v2384 = vxor.u32 %v2373, 2147483648
    %v2385 = vxor.u32 %v2376, 2147483648
    %v2386 = vxor.u32 %v2379, 2147483648
    %v2387 = vxor.u32 %v2382, 2147483648
    %v2388 = vmul.f32 %v2384, 1.442695
    %v2389 = vpow.pop %v2388
    %v2390 = vmul.f32 %v2385, 1.442695
    %v2391 = vpow.pop %v2390
    %v2392 = vmul.f32 %v2386, 1.442695
    %v2393 = vpow.pop %v2392
    %v2394 = vmul.f32 %v2387, 1.442695
    %v2395 = vpow.pop %v2394
    %v2396 = vadd.f32 %v2389, 1.0
    %v2397 = vadd.f32 %v2391, 1.0
    %v2398 = vadd.f32 %v2393, 1.0
    %v2399 = vadd.f32 %v2395, 1.0
    %v2400 = vrcp.pop %v2396
    %v2401 = vmul.f32 %v2396, %v2400
    %v2402 = vsub.f32 1.0, %v2401
    %v2403 = vmul.f32 %v2400, %v2402
    %v2404 = vadd.f32 %v2400, %v2403
    %vm2405 = vweird.f32 %v2396
    %vm2406 = vweird.f32 %v2400
    %vm2407 = vmor %vm2405, %vm2406
    %v2408 = vsel %vm2407, %v2400, %v2404
    %v2409 = vand.u32 2147483647, %v2396
    %vm2410 = vcmp.eq.f32.partialorder %v2409, 8.507059e+37
    %v2411 = vand.u32 %v2396, 2147483648
    %v2412 = vor.u32 1.1754944e-38, %v2411
    %v2413 = vsel %vm2410, %v2412, %v2408
    %v2414 = vmul.f32 1.0, %v2413
    %v2415 = vrcp.pop %v2397
    %v2416 = vmul.f32 %v2397, %v2415
    %v2417 = vsub.f32 1.0, %v2416
    %v2418 = vmul.f32 %v2415, %v2417
    %v2419 = vadd.f32 %v2415, %v2418
    %vm2420 = vweird.f32 %v2397
    %vm2421 = vweird.f32 %v2415
    %vm2422 = vmor %vm2420, %vm2421
    %v2423 = vsel %vm2422, %v2415, %v2419
    %v2424 = vand.u32 2147483647, %v2397
    %vm2425 = vcmp.eq.f32.partialorder %v2424, 8.507059e+37
    %v2426 = vand.u32 %v2397, 2147483648
    %v2427 = vor.u32 1.1754944e-38, %v2426
    %v2428 = vsel %vm2425, %v2427, %v2423
    %v2429 = vmul.f32 1.0, %v2428
    %v2430 = vrcp.pop %v2398
    %v2431 = vmul.f32 %v2398, %v2430
    %v2432 = vsub.f32 1.0, %v2431
    %v2433 = vmul.f32 %v2430, %v2432
    %v2434 = vadd.f32 %v2430, %v2433
    %vm2435 = vweird.f32 %v2398
    %vm2436 = vweird.f32 %v2430
    %vm2437 = vmor %vm2435, %vm2436
    %v2438 = vsel %vm2437, %v2430, %v2434
    %v2439 = vand.u32 2147483647, %v2398
    %vm2440 = vcmp.eq.f32.partialorder %v2439, 8.507059e+37
    %v2441 = vand.u32 %v2398, 2147483648
    %v2442 = vor.u32 1.1754944e-38, %v2441
    %v2443 = vsel %vm2440, %v2442, %v2438
    %v2444 = vmul.f32 1.0, %v2443
    %v2445 = vrcp.pop %v2399
    %v2446 = vmul.f32 %v2399, %v2445
    %v2447 = vsub.f32 1.0, %v2446
    %v2448 = vmul.f32 %v2445, %v2447
    %v2449 = vadd.f32 %v2445, %v2448
    %vm2450 = vweird.f32 %v2399
    %vm2451 = vweird.f32 %v2445
    %vm2452 = vmor %vm2450, %vm2451
    %v2453 = vsel %vm2452, %v2445, %v2449
    %v2454 = vand.u32 2147483647, %v2399
    %vm2455 = vcmp.eq.f32.partialorder %v2454, 8.507059e+37
    %v2456 = vand.u32 %v2399, 2147483648
    %v2457 = vor.u32 1.1754944e-38, %v2456
    %v2458 = vsel %vm2455, %v2457, %v2453
    %v2459 = vmul.f32 1.0, %v2458
    %v2460 = vxor.u32 %v2191, 2147483648
    %v2461 = vxor.u32 %v2194, 2147483648
    %v2462 = vxor.u32 %v2197, 2147483648
    %v2463 = vxor.u32 %v2200, 2147483648
    %v2464 = vmul.f32 %v2460, 1.442695
    %v2465 = vpow.pop %v2464
    %v2466 = vmul.f32 %v2461, 1.442695
    %v2467 = vpow.pop %v2466
    %v2468 = vmul.f32 %v2462, 1.442695
    %v2469 = vpow.pop %v2468
    %v2470 = vmul.f32 %v2463, 1.442695
    %v2471 = vpow.pop %v2470
    %v2472 = vadd.f32 %v2465, 1.0
    %v2473 = vadd.f32 %v2467, 1.0
    %v2474 = vadd.f32 %v2469, 1.0
    %v2475 = vadd.f32 %v2471, 1.0
    %v2476 = vrcp.pop %v2472
    %v2477 = vmul.f32 %v2472, %v2476
    %v2478 = vsub.f32 1.0, %v2477
    %v2479 = vmul.f32 %v2476, %v2478
    %v2480 = vadd.f32 %v2476, %v2479
    %vm2481 = vweird.f32 %v2472
    %vm2482 = vweird.f32 %v2476
    %vm2483 = vmor %vm2481, %vm2482
    %v2484 = vsel %vm2483, %v2476, %v2480
    %v2485 = vand.u32 2147483647, %v2472
    %vm2486 = vcmp.eq.f32.partialorder %v2485, 8.507059e+37
    %v2487 = vand.u32 %v2472, 2147483648
    %v2488 = vor.u32 1.1754944e-38, %v2487
    %v2489 = vsel %vm2486, %v2488, %v2484
    %v2490 = vmul.f32 1.0, %v2489
    %v2491 = vrcp.pop %v2473
    %v2492 = vmul.f32 %v2473, %v2491
    %v2493 = vsub.f32 1.0, %v2492
    %v2494 = vmul.f32 %v2491, %v2493
    %v2495 = vadd.f32 %v2491, %v2494
    %vm2496 = vweird.f32 %v2473
    %vm2497 = vweird.f32 %v2491
    %vm2498 = vmor %vm2496, %vm2497
    %v2499 = vsel %vm2498, %v2491, %v2495
    %v2500 = vand.u32 2147483647, %v2473
    %vm2501 = vcmp.eq.f32.partialorder %v2500, 8.507059e+37
    %v2502 = vand.u32 %v2473, 2147483648
    %v2503 = vor.u32 1.1754944e-38, %v2502
    %v2504 = vsel %vm2501, %v2503, %v2499
    %v2505 = vmul.f32 1.0, %v2504
    %v2506 = vrcp.pop %v2474
    %v2507 = vmul.f32 %v2474, %v2506
    %v2508 = vsub.f32 1.0, %v2507
    %v2509 = vmul.f32 %v2506, %v2508
    %v2510 = vadd.f32 %v2506, %v2509
    %vm2511 = vweird.f32 %v2474
    %vm2512 = vweird.f32 %v2506
    %vm2513 = vmor %vm2511, %vm2512
    %v2514 = vsel %vm2513, %v2506, %v2510
    %v2515 = vand.u32 2147483647, %v2474
    %vm2516 = vcmp.eq.f32.partialorder %v2515, 8.507059e+37
    %v2517 = vand.u32 %v2474, 2147483648
    %v2518 = vor.u32 1.1754944e-38, %v2517
    %v2519 = vsel %vm2516, %v2518, %v2514
    %v2520 = vmul.f32 1.0, %v2519
    %v2521 = vrcp.pop %v2475
    %v2522 = vmul.f32 %v2475, %v2521
    %v2523 = vsub.f32 1.0, %v2522
    %v2524 = vmul.f32 %v2521, %v2523
    %v2525 = vadd.f32 %v2521, %v2524
    %vm2526 = vweird.f32 %v2475
    %vm2527 = vweird.f32 %v2521
    %vm2528 = vmor %vm2526, %vm2527
    %v2529 = vsel %vm2528, %v2521, %v2525
    %v2530 = vand.u32 2147483647, %v2475
    %vm2531 = vcmp.eq.f32.partialorder %v2530, 8.507059e+37
    %v2532 = vand.u32 %v2475, 2147483648
    %v2533 = vor.u32 1.1754944e-38, %v2532
    %v2534 = vsel %vm2531, %v2533, %v2529
    %v2535 = vmul.f32 1.0, %v2534
    %v2536 = vxor.u32 %v2094, 2147483648
    %v2537 = vxor.u32 %v2097, 2147483648
    %v2538 = vxor.u32 %v2100, 2147483648
    %v2539 = vxor.u32 %v2103, 2147483648
    %v2540 = vmul.f32 %v2536, 1.442695
    %v2541 = vpow.pop %v2540
    %v2542 = vmul.f32 %v2537, 1.442695
    %v2543 = vpow.pop %v2542
    %v2544 = vmul.f32 %v2538, 1.442695
    %v2545 = vpow.pop %v2544
    %v2546 = vmul.f32 %v2539, 1.442695
    %v2547 = vpow.pop %v2546
    %v2548 = vadd.f32 %v2541, 1.0
    %v2549 = vadd.f32 %v2543, 1.0
    %v2550 = vadd.f32 %v2545, 1.0
    %v2551 = vadd.f32 %v2547, 1.0
    %v2552 = vrcp.pop %v2548
    %v2553 = vmul.f32 %v2548, %v2552
    %v2554 = vsub.f32 1.0, %v2553
    %v2555 = vmul.f32 %v2552, %v2554
    %v2556 = vadd.f32 %v2552, %v2555
    %vm2557 = vweird.f32 %v2548
    %vm2558 = vweird.f32 %v2552
    %vm2559 = vmor %vm2557, %vm2558
    %v2560 = vsel %vm2559, %v2552, %v2556
    %v2561 = vand.u32 2147483647, %v2548
    %vm2562 = vcmp.eq.f32.partialorder %v2561, 8.507059e+37
    %v2563 = vand.u32 %v2548, 2147483648
    %v2564 = vor.u32 1.1754944e-38, %v2563
    %v2565 = vsel %vm2562, %v2564, %v2560
    %v2566 = vmul.f32 1.0, %v2565
    %v2567 = vrcp.pop %v2549
    %v2568 = vmul.f32 %v2549, %v2567
    %v2569 = vsub.f32 1.0, %v2568
    %v2570 = vmul.f32 %v2567, %v2569
    %v2571 = vadd.f32 %v2567, %v2570
    %vm2572 = vweird.f32 %v2549
    %vm2573 = vweird.f32 %v2567
    %vm2574 = vmor %vm2572, %vm2573
    %v2575 = vsel %vm2574, %v2567, %v2571
    %v2576 = vand.u32 2147483647, %v2549
    %vm2577 = vcmp.eq.f32.partialorder %v2576, 8.507059e+37
    %v2578 = vand.u32 %v2549, 2147483648
    %v2579 = vor.u32 1.1754944e-38, %v2578
    %v2580 = vsel %vm2577, %v2579, %v2575
    %v2581 = vmul.f32 1.0, %v2580
    %v2582 = vrcp.pop %v2550
    %v2583 = vmul.f32 %v2550, %v2582
    %v2584 = vsub.f32 1.0, %v2583
    %v2585 = vmul.f32 %v2582, %v2584
    %v2586 = vadd.f32 %v2582, %v2585
    %vm2587 = vweird.f32 %v2550
    %vm2588 = vweird.f32 %v2582
    %vm2589 = vmor %vm2587, %vm2588
    %v2590 = vsel %vm2589, %v2582, %v2586
    %v2591 = vand.u32 2147483647, %v2550
    %vm2592 = vcmp.eq.f32.partialorder %v2591, 8.507059e+37
    %v2593 = vand.u32 %v2550, 2147483648
    %v2594 = vor.u32 1.1754944e-38, %v2593
    %v2595 = vsel %vm2592, %v2594, %v2590
    %v2596 = vmul.f32 1.0, %v2595
    %v2597 = vrcp.pop %v2551
    %v2598 = vmul.f32 %v2551, %v2597
    %v2599 = vsub.f32 1.0, %v2598
    %v2600 = vmul.f32 %v2597, %v2599
    %v2601 = vadd.f32 %v2597, %v2600
    %vm2602 = vweird.f32 %v2551
    %vm2603 = vweird.f32 %v2597
    %vm2604 = vmor %vm2602, %vm2603
    %v2605 = vsel %vm2604, %v2597, %v2601
    %v2606 = vand.u32 2147483647, %v2551
    %vm2607 = vcmp.eq.f32.partialorder %v2606, 8.507059e+37
    %v2608 = vand.u32 %v2551, 2147483648
    %v2609 = vor.u32 1.1754944e-38, %v2608
    %v2610 = vsel %vm2607, %v2609, %v2605
    %v2611 = vmul.f32 1.0, %v2610
    %s2612 = sld [smem:[#allocation16 + $0x100]]
    %v2613 = vstv %s2612
    %v2614 = vmul.f32 %v2414, %v2613
    %v2615 = vmul.f32 %v2429, %v2613
    %v2616 = vmul.f32 %v2444, %v2613
    %v2617 = vmul.f32 %v2459, %v2613
    %s2618 = sld [smem:[#allocation16 + $0x101]]
    %v2619 = vstv %s2618
    %v2620 = vmul.f32 %v2490, %v2619
    %v2621 = vmul.f32 %v2505, %v2619
    %v2622 = vmul.f32 %v2520, %v2619
    %v2623 = vmul.f32 %v2535, %v2619
    %v2624 = vadd.f32 %v2614, %v2620
    %v2625 = vadd.f32 %v2615, %v2621
    %v2626 = vadd.f32 %v2616, %v2622
    %v2627 = vadd.f32 %v2617, %v2623
    %s2628 = sld [smem:[#allocation16 + $0x102]]
    %v2629 = vstv %s2628
    %v2630 = vmul.f32 %v2566, %v2629
    %v2631 = vmul.f32 %v2581, %v2629
    %v2632 = vmul.f32 %v2596, %v2629
    %v2633 = vmul.f32 %v2611, %v2629
    %v2634 = vadd.f32 %v2624, %v2630
    %v2635 = vadd.f32 %v2625, %v2631
    %v2636 = vadd.f32 %v2626, %v2632
    %v2637 = vadd.f32 %v2627, %v2633
    %s2638 = sld [smem:[#allocation16 + $0x103]]
    %v2639 = vstv %s2638
    %v2640 = vmul.f32 %v2414, %v2639
    %v2641 = vmul.f32 %v2429, %v2639
    %v2642 = vmul.f32 %v2444, %v2639
    %v2643 = vmul.f32 %v2459, %v2639
    %s2644 = sld [smem:[#allocation16 + $0x104]]
    %v2645 = vstv %s2644
    %v2646 = vmul.f32 %v2490, %v2645
    %v2647 = vmul.f32 %v2505, %v2645
    %v2648 = vmul.f32 %v2520, %v2645
    %v2649 = vmul.f32 %v2535, %v2645
    %v2650 = vadd.f32 %v2640, %v2646
    %v2651 = vadd.f32 %v2641, %v2647
    %v2652 = vadd.f32 %v2642, %v2648
    %v2653 = vadd.f32 %v2643, %v2649
    %s2654 = sld [smem:[#allocation16 + $0x105]]
    %v2655 = vstv %s2654
    %v2656 = vmul.f32 %v2566, %v2655
    %v2657 = vmul.f32 %v2581, %v2655
    %v2658 = vmul.f32 %v2596, %v2655
    %v2659 = vmul.f32 %v2611, %v2655
    %v2660 = vadd.f32 %v2650, %v2656
    %v2661 = vadd.f32 %v2651, %v2657
    %v2662 = vadd.f32 %v2652, %v2658
    %v2663 = vadd.f32 %v2653, %v2659
    %s2664 = sld [smem:[#allocation16 + $0x106]]
    %v2665 = vstv %s2664
    %v2666 = vmul.f32 %v2414, %v2665
    %v2667 = vmul.f32 %v2429, %v2665
    %v2668 = vmul.f32 %v2444, %v2665
    %v2669 = vmul.f32 %v2459, %v2665
    %s2670 = sld [smem:[#allocation16 + $0x107]]
    %v2671 = vstv %s2670
    %v2672 = vmul.f32 %v2490, %v2671
    %v2673 = vmul.f32 %v2505, %v2671
    %v2674 = vmul.f32 %v2520, %v2671
    %v2675 = vmul.f32 %v2535, %v2671
    %v2676 = vadd.f32 %v2666, %v2672
    %v2677 = vadd.f32 %v2667, %v2673
    %v2678 = vadd.f32 %v2668, %v2674
    %v2679 = vadd.f32 %v2669, %v2675
    %s2680 = sld [smem:[#allocation16 + $0x108]]
    %v2681 = vstv %s2680
    %v2682 = vmul.f32 %v2566, %v2681
    %v2683 = vmul.f32 %v2581, %v2681
    %v2684 = vmul.f32 %v2596, %v2681
    %v2685 = vmul.f32 %v2611, %v2681
    %v2686 = vadd.f32 %v2676, %v2682
    %v2687 = vadd.f32 %v2677, %v2683
    %v2688 = vadd.f32 %v2678, %v2684
    %v2689 = vadd.f32 %v2679, %v2685
    %v2690 = vmax.f32 %v2634, %v2660
    %v2691 = vmax.f32 %v2635, %v2661
    %v2692 = vmax.f32 %v2636, %v2662
    %v2693 = vmax.f32 %v2637, %v2663
    %v2694 = vmax.f32 %v2690, %v2686
    %v2695 = vmax.f32 %v2691, %v2687
    %v2696 = vmax.f32 %v2692, %v2688
    %v2697 = vmax.f32 %v2693, %v2689
    %v2698 = vsub.f32 %v2634, %v2694
    %v2699 = vsub.f32 %v2635, %v2695
    %v2700 = vsub.f32 %v2636, %v2696
    %v2701 = vsub.f32 %v2637, %v2697
    %v2702 = vmul.f32 %v2698, 1.442695
    %v2703 = vpow.pop %v2702
    %v2704 = vmul.f32 %v2699, 1.442695
    %v2705 = vpow.pop %v2704
    %v2706 = vmul.f32 %v2700, 1.442695
    %v2707 = vpow.pop %v2706
    %v2708 = vmul.f32 %v2701, 1.442695
    %v2709 = vpow.pop %v2708
    %v2710 = vsub.f32 %v2660, %v2694
    %v2711 = vsub.f32 %v2661, %v2695
    %v2712 = vsub.f32 %v2662, %v2696
    %v2713 = vsub.f32 %v2663, %v2697
    %v2714 = vmul.f32 %v2710, 1.442695
    %v2715 = vpow.pop %v2714
    %v2716 = vmul.f32 %v2711, 1.442695
    %v2717 = vpow.pop %v2716
    %v2718 = vmul.f32 %v2712, 1.442695
    %v2719 = vpow.pop %v2718
    %v2720 = vmul.f32 %v2713, 1.442695
    %v2721 = vpow.pop %v2720
    %v2722 = vsub.f32 %v2686, %v2694
    %v2723 = vsub.f32 %v2687, %v2695
    %v2724 = vsub.f32 %v2688, %v2696
    %v2725 = vsub.f32 %v2689, %v2697
    %v2726 = vmul.f32 %v2722, 1.442695
    %v2727 = vpow.pop %v2726
    %v2728 = vmul.f32 %v2723, 1.442695
    %v2729 = vpow.pop %v2728
    %v2730 = vmul.f32 %v2724, 1.442695
    %v2731 = vpow.pop %v2730
    %v2732 = vmul.f32 %v2725, 1.442695
    %v2733 = vpow.pop %v2732
    %v2734 = vadd.f32 %v2703, %v2715
    %v2735 = vadd.f32 %v2705, %v2717
    %v2736 = vadd.f32 %v2707, %v2719
    %v2737 = vadd.f32 %v2709, %v2721
    %v2738 = vadd.f32 %v2734, %v2727
    %v2739 = vadd.f32 %v2735, %v2729
    %v2740 = vadd.f32 %v2736, %v2731
    %v2741 = vadd.f32 %v2737, %v2733
    %v2742 = vrcp.pop %v2738
    %v2743 = vrcp.pop %v2739
    %v2744 = vrcp.pop %v2740
    %v2745 = vrcp.pop %v2741
    %v2746 = vmul.f32 %v2738, %v2742
    %v2747 = vmul.f32 %v2739, %v2743
    %v2748 = vmul.f32 %v2740, %v2744
    %v2749 = vmul.f32 %v2741, %v2745
    %v2750 = vsub.f32 2.0, %v2746
    %v2751 = vsub.f32 2.0, %v2747
    %v2752 = vsub.f32 2.0, %v2748
    %v2753 = vsub.f32 2.0, %v2749
    %v2754 = vmul.f32 %v2742, %v2750
    %v2755 = vmul.f32 %v2743, %v2751
    %v2756 = vmul.f32 %v2744, %v2752
    %v2757 = vmul.f32 %v2745, %v2753
    %v2758 = vmul.f32 %v2703, %v2754
    %v2759 = vmul.f32 %v2705, %v2755
    %v2760 = vmul.f32 %v2707, %v2756
    %v2761 = vmul.f32 %v2709, %v2757
    %2763 = vset.pattern.permute.xlu0 8
    %2764 = vperm.xlu0 %2763, %v2758
    %v2765 = vpop.permute.xlu0 %2764
    %2768 = vset.pattern.permute.xlu0 8
    %2769 = vperm.xlu0 %2768, %v2759
    %v2770 = vpop.permute.xlu0 %2769
    %2773 = vset.pattern.permute.xlu0 8
    %2774 = vperm.xlu0 %2773, %v2760
    %v2775 = vpop.permute.xlu0 %2774
    %2778 = vset.pattern.permute.xlu0 8
    %2779 = vperm.xlu0 %2778, %v2761
    %v2780 = vpop.permute.xlu0 %2779
    %v2782 = vmul.f32 %v2765, %v2373
    %v2783 = vmul.f32 %v2770, %v2376
    %v2784 = vmul.f32 %v2775, %v2379
    %v2785 = vmul.f32 %v2780, %v2382
    %v2786 = vmul.f32 %v2715, %v2754
    %v2787 = vmul.f32 %v2717, %v2755
    %v2788 = vmul.f32 %v2719, %v2756
    %v2789 = vmul.f32 %v2721, %v2757
    %2791 = vset.pattern.permute.xlu0 8
    %2792 = vperm.xlu0 %2791, %v2786
    %v2793 = vpop.permute.xlu0 %2792
    %2796 = vset.pattern.permute.xlu0 8
    %2797 = vperm.xlu0 %2796, %v2787
    %v2798 = vpop.permute.xlu0 %2797
    %2801 = vset.pattern.permute.xlu0 8
    %2802 = vperm.xlu0 %2801, %v2788
    %v2803 = vpop.permute.xlu0 %2802
    %2806 = vset.pattern.permute.xlu0 8
    %2807 = vperm.xlu0 %2806, %v2789
    %v2808 = vpop.permute.xlu0 %2807
    %v2810 = vmul.f32 %v2793, %v2191
    %v2811 = vmul.f32 %v2798, %v2194
    %v2812 = vmul.f32 %v2803, %v2197
    %v2813 = vmul.f32 %v2808, %v2200
    %v2814 = vadd.f32 %v2782, %v2810
    %v2815 = vadd.f32 %v2783, %v2811
    %v2816 = vadd.f32 %v2784, %v2812
    %v2817 = vadd.f32 %v2785, %v2813
    %v2818 = vmul.f32 %v2727, %v2754
    %v2819 = vmul.f32 %v2729, %v2755
    %v2820 = vmul.f32 %v2731, %v2756
    %v2821 = vmul.f32 %v2733, %v2757
    %2823 = vset.pattern.permute.xlu0 8
    %2824 = vperm.xlu0 %2823, %v2818
    %v2825 = vpop.permute.xlu0 %2824
    %2828 = vset.pattern.permute.xlu0 8
    %2829 = vperm.xlu0 %2828, %v2819
    %v2830 = vpop.permute.xlu0 %2829
    %2833 = vset.pattern.permute.xlu0 8
    %2834 = vperm.xlu0 %2833, %v2820
    %v2835 = vpop.permute.xlu0 %2834
    %2838 = vset.pattern.permute.xlu0 8
    %2839 = vperm.xlu0 %2838, %v2821
    %v2840 = vpop.permute.xlu0 %2839
    %v2842 = vmul.f32 %v2825, %v2094
    %v2843 = vmul.f32 %v2830, %v2097
    %v2844 = vmul.f32 %v2835, %v2100
    %v2845 = vmul.f32 %v2840, %v2103
    %v2846 = vadd.f32 %v2814, %v2842
    %v2847 = vadd.f32 %v2815, %v2843
    %v2848 = vadd.f32 %v2816, %v2844
    %v2849 = vadd.f32 %v2817, %v2845
    %2850 = vst [vmem:[#allocation17] sm:$0xff] %v2846
    %2851 = vst [vmem:[#allocation17 + $0x8] sm:$0xff] %v2847
    %2852 = vst [vmem:[#allocation17 + $0x10] sm:$0xff] %v2848
    %2853 = vst [vmem:[#allocation17 + $0x18] sm:$0xff] %v2849
    // Predicated region
    $region58: #{tpu_custom_call.1} parent=1 // pred_check
      _
    $region59: #{tpu_custom_call.1} parent=1 // pred_check_branch
      %2855 = sbr.rel (0) target = $region61
    $region60: #{tpu_custom_call.1} parent=1 // pred_region
      %2857 = vsyncadd [#allocation6], 0
      %s2858 = sshll.u32 [#allocation17], 4
      %s2859 = int_to_ptr.vmem [resolvable:$true] %s2858
      %s2860 = sshll.u32 %s7, 4
      %s2861 = int_to_ptr.hbm [resolvable:$true] %s2860
      %2866 = dma.vmem_to_hbm [thread:$0]  %s2859, 512, %s2861, [#allocation6], 128, 128, 8
    $region61: #{tpu_custom_call.1} parent=1 // pred_fallthru
      _
    // Predicated region
    $region62: #{tpu_custom_call.1} parent=1 // pred_check
      _
    $region63: #{tpu_custom_call.1} parent=1 // pred_check_branch
      %2868 = sbr.rel (0) target = $region65
    $region64: #{tpu_custom_call.1} parent=1 // pred_region
      %2870 = dma.done [#allocation6], 512
    $region65: #{tpu_custom_call.1} parent=1 // pred_fallthru
      _
    %2871 = vsyncpa [#allocation5], 1
    %2872 = vsyncpa [#allocation9], 1
    %2873 = vsyncpa [#allocation12], 1
    %2874 = vsyncpa [#allocation15], 1
    %2875 = vsyncpa [#allocation6], 1
    %2876 = vsyncpa [#allocation7], 1

</llo_original>
